<compile_context>
chip_gen: v7x
topology: tpu7x:2x2x1
jax: 0.10.0
libtpu: 0.0.40
codegen_flags: <defaults>
</compile_context>

<pallas_src>
import numpy as np
import jax
import jax.numpy as jnp
from jax.experimental import pallas as pl
from jax.experimental.pallas import tpu as pltpu

_BN_EPS = 1e-5
_GELU_C = 0.7978845608028654  # sqrt(2/pi)
_MXU_DTYPE = jnp.float32      # bf16 candidate on v6e/v7x (see TODO above)


def _gelu_tanh(x):
    # tanh-approximate GELU (EUP tanh instead of a long VALU erf polynomial).
    return 0.5 * x * (1.0 + jnp.tanh(_GELU_C * (x + 0.044715 * x * x * x)))


def _interp_matrix(n_in, n_out):
    """1-D operator for F.interpolate(mode='bilinear', align_corners=True)."""
    m = np.zeros((n_out, n_in), np.float32)
    if n_in == 1:
        m[:, 0] = 1.0
        return m
    coords = np.arange(n_out) * (n_in - 1) / (n_out - 1)
    lo = np.minimum(np.floor(coords).astype(np.int64), n_in - 1)
    hi = np.minimum(lo + 1, n_in - 1)
    frac = (coords - lo).astype(np.float32)
    rows = np.arange(n_out)
    m[rows, lo] += 1.0 - frac
    m[rows, hi] += frac
    return m


def _band_weights(w_oihw, W2):
    """Per-dy block-banded weights folding the W axis (incl. zero padding) into
    the matmul N dim:  band[dy][q_in*Cin+c, q_out*Cout+co] = w[co,c,dy,dx]
    where q_in = q_out + dx - 1 (out-of-range q_in blocks are omitted = pad)."""
    Cout, Cin = int(w_oihw.shape[0]), int(w_oihw.shape[1])
    bands = []
    for dy in range(3):
        acc = jnp.zeros((W2 * Cin, W2 * Cout), jnp.float32)
        for dx in range(3):
            D = np.zeros((W2, W2), np.float32)
            for q_out in range(W2):
                q_in = q_out + dx - 1
                if 0 <= q_in < W2:
                    D[q_in, q_out] = 1.0
            acc = acc + jnp.kron(jnp.asarray(D), jnp.transpose(w_oihw[:, :, dy, dx]))
        bands.append(acc)
    return jnp.stack(bands, axis=0)       # (3, W2*Cin, W2*Cout)


# ----------------------------- Pallas kernel ------------------------------ #
def _de_mbconv_kernel(x1f_ref, x2_ref, whb_ref, wwk_ref, bcht_ref,
                      w1b_ref, b1t_ref, g1_ref, be1_ref,
                      w2b_ref, b2t_ref, g2_ref, be2_ref,
                      gsa_ref, bsa_ref, gsb_ref, bsb_ref,
                      scw_ref, bsct_ref,
                      fo_ref, uo_ref, fx_ref, ux_ref,
                      o_ref,
                      pcat_ref, pa1_ref):
    B, H2, Lx = x2_ref.shape            # Lx   = W2*Cx2
    Lo = o_ref.shape[-1]                # Lo   = W2*Cout
    Lcat = pcat_ref.shape[-1]           # Lcat = W2*Cup
    Cout = fo_ref.shape[-1]
    W2 = Lo // Cout
    R = B * H2
    inv_n = 1.0 / float(R * W2)
    f32 = jnp.float32

    def mm(a, b):
        # heavy MXU dots; _MXU_DTYPE switchable to bf16 on v6e/v7x
        return jnp.dot(a.astype(_MXU_DTYPE), b.astype(_MXU_DTYPE),
                       preferred_element_type=f32)

    def bn_gelu(x, gamma, beta, fold, unfold):
        # training-mode BN (biased batch stats) on a lane-dense (R, W2*C) slab.
        # Per-channel stats via tiny selector matmuls (fold: (W2*C,C), unfold: (C,W2*C)).
        s = jnp.sum(x, axis=0, keepdims=True)                # (1, W2*C)
        ss = jnp.sum(x * x, axis=0, keepdims=True)
        mean_c = jnp.dot(s, fold, preferred_element_type=f32) * inv_n   # (1, C)
        msq_c = jnp.dot(ss, fold, preferred_element_type=f32) * inv_n
        var_c = jnp.maximum(msq_c - mean_c * mean_c, 0.0)    # clamp: no NaN from cancellation
        scale_c = gamma * jax.lax.rsqrt(var_c + _BN_EPS)
        shift_c = beta - mean_c * scale_c
        scale = jnp.dot(scale_c, unfold, preferred_element_type=f32)    # (1, W2*C)
        shift = jnp.dot(shift_c, unfold, preferred_element_type=f32)
        return _gelu_tanh(x * scale + shift)

    def conv3x3_band(pad_ref, band_ref, bias_t):
        # 3x3 'SAME' conv = 3 accumulated dy-shifted dots, N = W2*Cout (lane-dense).
        L = pad_ref.shape[-1]
        acc = mm(pad_ref[:, 0:H2, :].reshape(R, L), band_ref[0])
        acc = acc + mm(pad_ref[:, 1:H2 + 1, :].reshape(R, L), band_ref[1])
        acc = acc + mm(pad_ref[:, 2:H2 + 2, :].reshape(R, L), band_ref[2])
        return acc + bias_t

    # ---- bilinear upsample (separable) fused with conv_ch 1x1: 2 dots ----
    t = mm(x1f_ref[...], wwk_ref[...])                    # (B*H, W2*Cout): col-up + 1x1
    x1c = mm(whb_ref[...], t) + bcht_ref[...]             # (B*H2, W2*Cout): row-up

    # ---- H-padded lane-dense concat buffer: [x2 block | x1c block] ----
    zrow_cat = jnp.zeros((B, 1, Lcat), f32)
    pcat_ref[:, 0:1, :] = zrow_cat
    pcat_ref[:, H2 + 1:H2 + 2, :] = zrow_cat
    pcat_ref[:, 1:H2 + 1, :Lx] = x2_ref[...]
    pcat_ref[:, 1:H2 + 1, Lx:] = x1c.reshape(B, H2, Lo)

    # ---- double_conv: conv3x3 -> BN -> GELU -> conv3x3 -> BN -> GELU ----
    y1 = conv3x3_band(pcat_ref, w1b_ref, b1t_ref[...])    # (R, Lo)
    a1 = bn_gelu(y1, g1_ref[...], be1_ref[...], fo_ref[...], uo_ref[...])

    zrow_o = jnp.zeros((B, 1, Lo), f32)
    pa1_ref[:, 0:1, :] = zrow_o
    pa1_ref[:, H2 + 1:H2 + 2, :] = zrow_o
    pa1_ref[:, 1:H2 + 1, :] = a1.reshape(B, H2, Lo)

    y2 = conv3x3_band(pa1_ref, w2b_ref, b2t_ref[...])     # (R, Lo)
    a2 = bn_gelu(y2, g2_ref[...], be2_ref[...], fo_ref[...], uo_ref[...])

    # ---- shortcut: BN -> GELU per branch, single fused 1x1 dot ----
    sa = bn_gelu(x2_ref[...].reshape(R, Lx),
                 gsa_ref[...], bsa_ref[...], fx_ref[...], ux_ref[...])
    sb = bn_gelu(x1c, gsb_ref[...], bsb_ref[...], fo_ref[...], uo_ref[...])
    s_cat = jnp.concatenate([sa, sb], axis=-1)            # (R, Lcat)
    sc = mm(s_cat, scw_ref[...]) + bsct_ref[...]

    # ---- lane-dense output store (last dim = W2*Cout = 128) ----
    o_ref[...] = (a2 + sc).reshape(B, H2, Lo)


# ------------------------------- wrapper ----------------------------------- #
def de_mbconv_forward(x1_nchw, x2_nchw, params):
    Cout, Cin = params["conv_ch_w"].shape[:2]
    Cup = params["dc1_w"].shape[1]
    Cx2 = Cup - Cout
    B, _, H, W = x1_nchw.shape
    H2, W2 = 2 * H, 2 * W
    assert x2_nchw.shape == (B, Cx2, H2, W2)
    f32 = jnp.float32

    # lane-dense inputs
    x1f = jnp.transpose(x1_nchw, (0, 2, 3, 1)).astype(f32).reshape(B * H, W * Cin)
    x2ld = jnp.transpose(x2_nchw, (0, 2, 3, 1)).astype(f32).reshape(B, H2, W2 * Cx2)

    # separable bilinear (align_corners=True) operators
    Wh = _interp_matrix(H, H2)                                        # (H2, H)
    Ww = _interp_matrix(W, W2)                                        # (W2, W)
    whb = jnp.asarray(np.kron(np.eye(B, dtype=np.float32), Wh), f32)  # (B*H2, B*H)
    wch2d = params["conv_ch_w"][:, :, 0, 0].T                         # (Cin, Cout)
    wwk = jnp.kron(jnp.asarray(Ww.T, f32), wch2d)                     # (W*Cin, W2*Cout)
    bcht = jnp.tile(params["conv_ch_b"], W2).reshape(1, W2 * Cout)

    # block-banded 3x3 conv weights (W axis + padding folded into matmul N)
    w1band = jnp.concatenate(
        [_band_weights(params["dc1_w"][:, :Cx2], W2),                 # x2 block
         _band_weights(params["dc1_w"][:, Cx2:], W2)], axis=1)        # x1c block
    b1t = jnp.tile(params["dc1_b"], W2).reshape(1, W2 * Cout)
    g1, be1 = params["bn1_g"].reshape(1, Cout), params["bn1_b"].reshape(1, Cout)
    w2band = _band_weights(params["dc2_w"], W2)                       # (3, W2*Cout, W2*Cout)
    b2t = jnp.tile(params["dc2_b"], W2).reshape(1, W2 * Cout)
    g2, be2 = params["bn2_g"].reshape(1, Cout), params["bn2_b"].reshape(1, Cout)

    # shortcut: per-branch BN params + fused block-diagonal 1x1 conv weight
    gsa = params["bns_g"][:Cx2].reshape(1, Cx2)
    bsa = params["bns_b"][:Cx2].reshape(1, Cx2)
    gsb = params["bns_g"][Cx2:].reshape(1, Cout)
    bsb = params["bns_b"][Cx2:].reshape(1, Cout)
    ws2d = params["sc_w"][:, :, 0, 0].T                               # (Cup, Cout)
    eyeW2 = jnp.eye(W2, dtype=f32)
    scw = jnp.concatenate([jnp.kron(eyeW2, ws2d[:Cx2]),
                           jnp.kron(eyeW2, ws2d[Cx2:])], axis=0)      # (W2*Cup, W2*Cout)
    bsct = jnp.tile(params["sc_b"], W2).reshape(1, W2 * Cout)

    # BN channel fold/unfold selectors (lane-group <-> per-channel)
    fold_o = jnp.asarray(np.tile(np.eye(Cout, dtype=np.float32), (W2, 1)))
    unfold_o = fold_o.T
    fold_x = jnp.asarray(np.tile(np.eye(Cx2, dtype=np.float32), (W2, 1)))
    unfold_x = fold_x.T

    args = (x1f, x2ld, whb, wwk, bcht,
            w1band, b1t, g1, be1,
            w2band, b2t, g2, be2,
            gsa, bsa, gsb, bsb,
            scw, bsct,
            fold_o, unfold_o, fold_x, unfold_x)

    out_ld = pl.pallas_call(
        _de_mbconv_kernel,
        out_shape=jax.ShapeDtypeStruct((B, H2, W2 * Cout), jnp.float32),
        in_specs=[pl.BlockSpec(memory_space=pltpu.MemorySpace.VMEM)] * len(args),
        out_specs=pl.BlockSpec(memory_space=pltpu.MemorySpace.VMEM),
        scratch_shapes=[
            pltpu.VMEM((B, H2 + 2, W2 * Cup), jnp.float32),   # H-padded concat (lane-dense)
            pltpu.VMEM((B, H2 + 2, W2 * Cout), jnp.float32),  # H-padded 1st-conv activation
        ],
        compiler_params=pltpu.CompilerParams(vmem_limit_bytes=32 * 1024 * 1024),
    )(*args)

    # lane-dense -> NCHW in the wrapper (keeps the kernel's store path unmasked)
    return jnp.transpose(out_ld.reshape(B, H2, W2, Cout), (0, 3, 1, 2))


# --------------------------- pure-JAX reference ----------------------------- #
def _reference(x1, x2, p):
    B, Cin, H, W = x1.shape
    H2, W2 = 2 * H, 2 * W
    Wh = jnp.asarray(_interp_matrix(H, H2), jnp.float32)
    Ww = jnp.asarray(_interp_matrix(W, W2), jnp.float32)
    up = jnp.einsum("ph,bchw->bcpw", Wh, x1)
    up = jnp.einsum("qw,bcpw->bcpq", Ww, up)

    def conv(x, w, b, pad):
        y = jax.lax.conv_general_dilated(
            x, w, (1, 1), [(pad, pad)] * 2,
            dimension_numbers=("NCHW", "OIHW", "NCHW"))
        return y + b.reshape(1, -1, 1, 1)

    def bn(x, g, bt):
        m = jnp.mean(x, axis=(0, 2, 3), keepdims=True)
        v = jnp.mean((x - m) ** 2, axis=(0, 2, 3), keepdims=True)
        return ((x - m) * jax.lax.rsqrt(v + _BN_EPS)
                * g.reshape(1, -1, 1, 1) + bt.reshape(1, -1, 1, 1))

    gelu = lambda t: jax.nn.gelu(t, approximate=False)   # torch nn.GELU() default

    x1c = conv(up, p["conv_ch_w"], p["conv_ch_b"], 0)
    cat = jnp.concatenate([x2, x1c], axis=1)
    y = gelu(bn(conv(cat, p["dc1_w"], p["dc1_b"], 1), p["bn1_g"], p["bn1_b"]))
    y = gelu(bn(conv(y, p["dc2_w"], p["dc2_b"], 1), p["bn2_g"], p["bn2_b"]))
    sc = conv(gelu(bn(cat, p["bns_g"], p["bns_b"])), p["sc_w"], p["sc_b"], 0)
    return y + sc


def init_params(key, in_channels, out_channels, up_in_channels):
    Cin, Cout, Cup = in_channels, out_channels, up_in_channels
    ks = iter(jax.random.split(key, 20))
    n = lambda shape, s=0.1: s * jax.random.normal(next(ks), shape, jnp.float32)
    return dict(
        conv_ch_w=n((Cout, Cin, 1, 1)), conv_ch_b=n((Cout,)),
        dc1_w=n((Cout, Cup, 3, 3)), dc1_b=n((Cout,)),
        bn1_g=1.0 + n((Cout,)), bn1_b=n((Cout,)),
        dc2_w=n((Cout, Cout, 3, 3)), dc2_b=n((Cout,)),
        bn2_g=1.0 + n((Cout,)), bn2_b=n((Cout,)),
        bns_g=1.0 + n((Cup,)), bns_b=n((Cup,)),
        sc_w=n((Cout, Cup, 1, 1)), sc_b=n((Cout,)),
    )


if __name__ == "__main__":
    in_channels, out_channels, up_in_channels = 4, 8, 16   # de_MBconv(4, 8, 16)
    B, H, W = 2, 8, 8

    key = jax.random.PRNGKey(0)
    kp, k1, k2 = jax.random.split(key, 3)
    params = init_params(kp, in_channels, out_channels, up_in_channels)
    x1 = jax.random.normal(k1, (B, in_channels, H, W), jnp.float32)
    x2 = jax.random.normal(k2, (B, up_in_channels - out_channels, 2 * H, 2 * W),
                           jnp.float32)

    out = de_mbconv_forward(x1, x2, params)
    out = jax.block_until_ready(out)

    ref = _reference(x1, x2, params)
    assert out.shape == ref.shape == (B, out_channels, 2 * H, 2 * W)
    if not jnp.allclose(out, ref, atol=3e-2, rtol=3e-2):
        raise AssertionError(
            f"mismatch vs reference: max abs err = {float(jnp.max(jnp.abs(out - ref)))}")
    print("KERNEL_OK")
</pallas_src>

<mosaic_0001>
module attributes {stable_mosaic.version = 11 : i64} {
  func.func @_de_mbconv_kernel(%arg0: memref<16x32xf32, #tpu.memory_space<vmem>>, %arg1: memref<2x16x128xf32, #tpu.memory_space<vmem>>, %arg2: memref<32x16xf32, #tpu.memory_space<vmem>>, %arg3: memref<32x128xf32, #tpu.memory_space<vmem>>, %arg4: memref<1x128xf32, #tpu.memory_space<vmem>>, %arg5: memref<3x256x128xf32, #tpu.memory_space<vmem>>, %arg6: memref<1x128xf32, #tpu.memory_space<vmem>>, %arg7: memref<1x8xf32, #tpu.memory_space<vmem>>, %arg8: memref<1x8xf32, #tpu.memory_space<vmem>>, %arg9: memref<3x128x128xf32, #tpu.memory_space<vmem>>, %arg10: memref<1x128xf32, #tpu.memory_space<vmem>>, %arg11: memref<1x8xf32, #tpu.memory_space<vmem>>, %arg12: memref<1x8xf32, #tpu.memory_space<vmem>>, %arg13: memref<1x8xf32, #tpu.memory_space<vmem>>, %arg14: memref<1x8xf32, #tpu.memory_space<vmem>>, %arg15: memref<1x8xf32, #tpu.memory_space<vmem>>, %arg16: memref<1x8xf32, #tpu.memory_space<vmem>>, %arg17: memref<256x128xf32, #tpu.memory_space<vmem>>, %arg18: memref<1x128xf32, #tpu.memory_space<vmem>>, %arg19: memref<128x8xf32, #tpu.memory_space<vmem>>, %arg20: memref<8x128xf32, #tpu.memory_space<vmem>>, %arg21: memref<128x8xf32, #tpu.memory_space<vmem>>, %arg22: memref<8x128xf32, #tpu.memory_space<vmem>>, %arg23: memref<2x16x128xf32, #tpu.memory_space<vmem>>, %arg24: memref<2x18x256xf32, #tpu.memory_space<vmem>>, %arg25: memref<2x18x128xf32, #tpu.memory_space<vmem>>) attributes {dimension_semantics = [], scalar_prefetch = 0 : i64, scratch_operands = 2 : i64, tpu.core_type = #tpu.core_type<tc>} {
    %c0 = arith.constant 0 : index
    %c0_0 = arith.constant 0 : index
    %0 = vector.load %arg0[%c0, %c0_0] : memref<16x32xf32, #tpu.memory_space<vmem>>, vector<16x32xf32>
    %c0_1 = arith.constant 0 : index
    %c0_2 = arith.constant 0 : index
    %1 = vector.load %arg3[%c0_1, %c0_2] : memref<32x128xf32, #tpu.memory_space<vmem>>, vector<32x128xf32>
    %cst = arith.constant dense<0.000000e+00> : vector<16x128xf32>
    %2 = tpu.matmul %0, %1, %cst {dimension_numbers = #tpu.dot_dimension_numbers<[1], [0], [0], [1], [0, 0, 1, 1], [], []>} : vector<16x32xf32>, vector<32x128xf32>, vector<16x128xf32> -> vector<16x128xf32>
    %c0_3 = arith.constant 0 : index
    %c0_4 = arith.constant 0 : index
    %3 = vector.load %arg2[%c0_3, %c0_4] : memref<32x16xf32, #tpu.memory_space<vmem>>, vector<32x16xf32>
    %cst_5 = arith.constant dense<0.000000e+00> : vector<32x128xf32>
    %4 = tpu.matmul %3, %2, %cst_5 {dimension_numbers = #tpu.dot_dimension_numbers<[1], [0], [0], [1], [0, 0, 1, 1], [], []>} : vector<32x16xf32>, vector<16x128xf32>, vector<32x128xf32> -> vector<32x128xf32>
    %c0_6 = arith.constant 0 : index
    %c0_7 = arith.constant 0 : index
    %5 = vector.load %arg4[%c0_6, %c0_7] : memref<1x128xf32, #tpu.memory_space<vmem>>, vector<1x128xf32>
    %6 = vector.broadcast %5 : vector<1x128xf32> to vector<32x128xf32>
    %7 = arith.addf %4, %6 : vector<32x128xf32>
    %cst_8 = arith.constant 0.000000e+00 : f32
    %8 = vector.broadcast %cst_8 : f32 to vector<2x1x256xf32>
    %c0_9 = arith.constant 0 : index
    %c0_10 = arith.constant 0 : index
    %c0_11 = arith.constant 0 : index
    %9 = vector.load %arg24[%c0_9, %c0_10, %c0_11] : memref<2x18x256xf32, #tpu.memory_space<vmem>>, vector<2x1x256xf32>
    tpu.vector_store %arg24[%c0_9, %c0_10, %c0_11], %8 {strides = array<i32>} : memref<2x18x256xf32, #tpu.memory_space<vmem>>, vector<2x1x256xf32>,
    %c0_12 = arith.constant 0 : index
    %c17 = arith.constant 17 : index
    %c0_13 = arith.constant 0 : index
    %10 = vector.load %arg24[%c0_12, %c17, %c0_13] : memref<2x18x256xf32, #tpu.memory_space<vmem>>, vector<2x1x256xf32>
    tpu.vector_store %arg24[%c0_12, %c17, %c0_13], %8 {strides = array<i32>} : memref<2x18x256xf32, #tpu.memory_space<vmem>>, vector<2x1x256xf32>,
    %c0_14 = arith.constant 0 : index
    %c0_15 = arith.constant 0 : index
    %c0_16 = arith.constant 0 : index
    %11 = vector.load %arg1[%c0_14, %c0_15, %c0_16] : memref<2x16x128xf32, #tpu.memory_space<vmem>>, vector<2x16x128xf32>
    %c0_17 = arith.constant 0 : index
    %c1 = arith.constant 1 : index
    %c0_18 = arith.constant 0 : index
    %12 = vector.load %arg24[%c0_17, %c1, %c0_18] : memref<2x18x256xf32, #tpu.memory_space<vmem>>, vector<2x16x128xf32>
    tpu.vector_store %arg24[%c0_17, %c1, %c0_18], %11 {strides = array<i32>} : memref<2x18x256xf32, #tpu.memory_space<vmem>>, vector<2x16x128xf32>,
    %13 = vector.shape_cast %7 : vector<32x128xf32> to vector<2x16x128xf32>
    %c0_19 = arith.constant 0 : index
    %c1_20 = arith.constant 1 : index
    %c128 = arith.constant 128 : index
    %14 = vector.load %arg24[%c0_19, %c1_20, %c128] : memref<2x18x256xf32, #tpu.memory_space<vmem>>, vector<2x16x128xf32>
    tpu.vector_store %arg24[%c0_19, %c1_20, %c128], %13 {strides = array<i32>} : memref<2x18x256xf32, #tpu.memory_space<vmem>>, vector<2x16x128xf32>,
    %c0_21 = arith.constant 0 : index
    %c0_22 = arith.constant 0 : index
    %15 = vector.load %arg6[%c0_21, %c0_22] : memref<1x128xf32, #tpu.memory_space<vmem>>, vector<1x128xf32>
    %c0_23 = arith.constant 0 : index
    %c0_24 = arith.constant 0 : index
    %c0_25 = arith.constant 0 : index
    %16 = vector.load %arg24[%c0_23, %c0_24, %c0_25] : memref<2x18x256xf32, #tpu.memory_space<vmem>>, vector<2x16x256xf32>
    %17 = vector.shape_cast %16 : vector<2x16x256xf32> to vector<32x256xf32>
    %c0_26 = arith.constant 0 : index
    %c0_27 = arith.constant 0 : index
    %c0_28 = arith.constant 0 : index
    %18 = vector.load %arg5[%c0_26, %c0_27, %c0_28] : memref<3x256x128xf32, #tpu.memory_space<vmem>>, vector<1x256x128xf32>
    %19 = vector.shape_cast %18 : vector<1x256x128xf32> to vector<256x128xf32>
    %cst_29 = arith.constant dense<0.000000e+00> : vector<32x128xf32>
    %20 = tpu.matmul %17, %19, %cst_29 {dimension_numbers = #tpu.dot_dimension_numbers<[1], [0], [0], [1], [0, 0, 1, 1], [], []>} : vector<32x256xf32>, vector<256x128xf32>, vector<32x128xf32> -> vector<32x128xf32>
    %c0_30 = arith.constant 0 : index
    %c1_31 = arith.constant 1 : index
    %c0_32 = arith.constant 0 : index
    %21 = vector.load %arg24[%c0_30, %c1_31, %c0_32] : memref<2x18x256xf32, #tpu.memory_space<vmem>>, vector<2x16x256xf32>
    %22 = vector.shape_cast %21 : vector<2x16x256xf32> to vector<32x256xf32>
    %c1_33 = arith.constant 1 : index
    %c0_34 = arith.constant 0 : index
    %c0_35 = arith.constant 0 : index
    %23 = vector.load %arg5[%c1_33, %c0_34, %c0_35] : memref<3x256x128xf32, #tpu.memory_space<vmem>>, vector<1x256x128xf32>
    %24 = vector.shape_cast %23 : vector<1x256x128xf32> to vector<256x128xf32>
    %cst_36 = arith.constant dense<0.000000e+00> : vector<32x128xf32>
    %25 = tpu.matmul %22, %24, %cst_36 {dimension_numbers = #tpu.dot_dimension_numbers<[1], [0], [0], [1], [0, 0, 1, 1], [], []>} : vector<32x256xf32>, vector<256x128xf32>, vector<32x128xf32> -> vector<32x128xf32>
    %26 = arith.addf %20, %25 : vector<32x128xf32>
    %c0_37 = arith.constant 0 : index
    %c2 = arith.constant 2 : index
    %c0_38 = arith.constant 0 : index
    %27 = vector.load %arg24[%c0_37, %c2, %c0_38] : memref<2x18x256xf32, #tpu.memory_space<vmem>>, vector<2x16x256xf32>
    %28 = vector.shape_cast %27 : vector<2x16x256xf32> to vector<32x256xf32>
    %c2_39 = arith.constant 2 : index
    %c0_40 = arith.constant 0 : index
    %c0_41 = arith.constant 0 : index
    %29 = vector.load %arg5[%c2_39, %c0_40, %c0_41] : memref<3x256x128xf32, #tpu.memory_space<vmem>>, vector<1x256x128xf32>
    %30 = vector.shape_cast %29 : vector<1x256x128xf32> to vector<256x128xf32>
    %cst_42 = arith.constant dense<0.000000e+00> : vector<32x128xf32>
    %31 = tpu.matmul %28, %30, %cst_42 {dimension_numbers = #tpu.dot_dimension_numbers<[1], [0], [0], [1], [0, 0, 1, 1], [], []>} : vector<32x256xf32>, vector<256x128xf32>, vector<32x128xf32> -> vector<32x128xf32>
    %32 = arith.addf %26, %31 : vector<32x128xf32>
    %33 = vector.broadcast %15 : vector<1x128xf32> to vector<32x128xf32>
    %34 = arith.addf %32, %33 : vector<32x128xf32>
    %c0_43 = arith.constant 0 : index
    %c0_44 = arith.constant 0 : index
    %35 = vector.load %arg7[%c0_43, %c0_44] : memref<1x8xf32, #tpu.memory_space<vmem>>, vector<1x8xf32>
    %c0_45 = arith.constant 0 : index
    %c0_46 = arith.constant 0 : index
    %36 = vector.load %arg8[%c0_45, %c0_46] : memref<1x8xf32, #tpu.memory_space<vmem>>, vector<1x8xf32>
    %c0_47 = arith.constant 0 : index
    %c0_48 = arith.constant 0 : index
    %37 = vector.load %arg19[%c0_47, %c0_48] : memref<128x8xf32, #tpu.memory_space<vmem>>, vector<128x8xf32>
    %c0_49 = arith.constant 0 : index
    %c0_50 = arith.constant 0 : index
    %38 = vector.load %arg20[%c0_49, %c0_50] : memref<8x128xf32, #tpu.memory_space<vmem>>, vector<8x128xf32>
    %cst_51 = arith.constant dense<0.000000e+00> : vector<128xf32>
    %39 = vector.multi_reduction <add>, %34, %cst_51 [0] : vector<32x128xf32> to vector<128xf32>
    %40 = vector.shape_cast %39 : vector<128xf32> to vector<1x128xf32>
    %41 = arith.mulf %34, %34 : vector<32x128xf32>
    %cst_52 = arith.constant dense<0.000000e+00> : vector<128xf32>
    %42 = vector.multi_reduction <add>, %41, %cst_52 [0] : vector<32x128xf32> to vector<128xf32>
    %43 = vector.shape_cast %42 : vector<128xf32> to vector<1x128xf32>
    %cst_53 = arith.constant dense<0.000000e+00> : vector<1x8xf32>
    %44 = tpu.matmul %40, %37, %cst_53 {dimension_numbers = #tpu.dot_dimension_numbers<[1], [0], [0], [1], [0, 0, 1, 1], [], []>} : vector<1x128xf32>, vector<128x8xf32>, vector<1x8xf32> -> vector<1x8xf32>
    %cst_54 = arith.constant 0.001953125 : f32
    %45 = vector.broadcast %cst_54 : f32 to vector<1x8xf32>
    %46 = arith.mulf %44, %45 : vector<1x8xf32>
    %cst_55 = arith.constant dense<0.000000e+00> : vector<1x8xf32>
    %47 = tpu.matmul %43, %37, %cst_55 {dimension_numbers = #tpu.dot_dimension_numbers<[1], [0], [0], [1], [0, 0, 1, 1], [], []>} : vector<1x128xf32>, vector<128x8xf32>, vector<1x8xf32> -> vector<1x8xf32>
    %cst_56 = arith.constant 0.001953125 : f32
    %48 = vector.broadcast %cst_56 : f32 to vector<1x8xf32>
    %49 = arith.mulf %47, %48 : vector<1x8xf32>
    %50 = arith.mulf %46, %46 : vector<1x8xf32>
    %51 = arith.subf %49, %50 : vector<1x8xf32>
    %cst_57 = arith.constant 0.000000e+00 : f32
    %52 = vector.broadcast %cst_57 : f32 to vector<1x8xf32>
    %53 = arith.maximumf %51, %52 : vector<1x8xf32>
    %cst_58 = arith.constant 9.99999974E-6 : f32
    %54 = vector.broadcast %cst_58 : f32 to vector<1x8xf32>
    %55 = arith.addf %53, %54 : vector<1x8xf32>
    %56 = math.rsqrt %55 : vector<1x8xf32>
    %57 = arith.mulf %35, %56 : vector<1x8xf32>
    %58 = arith.mulf %46, %57 : vector<1x8xf32>
    %59 = arith.subf %36, %58 : vector<1x8xf32>
    %cst_59 = arith.constant dense<0.000000e+00> : vector<1x128xf32>
    %60 = tpu.matmul %57, %38, %cst_59 {dimension_numbers = #tpu.dot_dimension_numbers<[1], [0], [0], [1], [0, 0, 1, 1], [], []>} : vector<1x8xf32>, vector<8x128xf32>, vector<1x128xf32> -> vector<1x128xf32>
    %cst_60 = arith.constant dense<0.000000e+00> : vector<1x128xf32>
    %61 = tpu.matmul %59, %38, %cst_60 {dimension_numbers = #tpu.dot_dimension_numbers<[1], [0], [0], [1], [0, 0, 1, 1], [], []>} : vector<1x8xf32>, vector<8x128xf32>, vector<1x128xf32> -> vector<1x128xf32>
    %62 = vector.broadcast %60 : vector<1x128xf32> to vector<32x128xf32>
    %63 = arith.mulf %34, %62 : vector<32x128xf32>
    %64 = vector.broadcast %61 : vector<1x128xf32> to vector<32x128xf32>
    %65 = arith.addf %63, %64 : vector<32x128xf32>
    %cst_61 = arith.constant 5.000000e-01 : f32
    %66 = vector.broadcast %cst_61 : f32 to vector<32x128xf32>
    %67 = arith.mulf %66, %65 : vector<32x128xf32>
    %cst_62 = arith.constant 4.471500e-02 : f32
    %68 = vector.broadcast %cst_62 : f32 to vector<32x128xf32>
    %69 = arith.mulf %68, %65 : vector<32x128xf32>
    %70 = arith.mulf %69, %65 : vector<32x128xf32>
    %71 = arith.mulf %70, %65 : vector<32x128xf32>
    %72 = arith.addf %65, %71 : vector<32x128xf32>
    %cst_63 = arith.constant 0.797884583 : f32
    %73 = vector.broadcast %cst_63 : f32 to vector<32x128xf32>
    %74 = arith.mulf %73, %72 : vector<32x128xf32>
    %75 = math.tanh %74 : vector<32x128xf32>
    %cst_64 = arith.constant 1.000000e+00 : f32
    %76 = vector.broadcast %cst_64 : f32 to vector<32x128xf32>
    %77 = arith.addf %76, %75 : vector<32x128xf32>
    %78 = arith.mulf %67, %77 : vector<32x128xf32>
    %cst_65 = arith.constant 0.000000e+00 : f32
    %79 = vector.broadcast %cst_65 : f32 to vector<2x1x128xf32>
    %c0_66 = arith.constant 0 : index
    %c0_67 = arith.constant 0 : index
    %c0_68 = arith.constant 0 : index
    %80 = vector.load %arg25[%c0_66, %c0_67, %c0_68] : memref<2x18x128xf32, #tpu.memory_space<vmem>>, vector<2x1x128xf32>
    tpu.vector_store %arg25[%c0_66, %c0_67, %c0_68], %79 {strides = array<i32>} : memref<2x18x128xf32, #tpu.memory_space<vmem>>, vector<2x1x128xf32>,
    %c0_69 = arith.constant 0 : index
    %c17_70 = arith.constant 17 : index
    %c0_71 = arith.constant 0 : index
    %81 = vector.load %arg25[%c0_69, %c17_70, %c0_71] : memref<2x18x128xf32, #tpu.memory_space<vmem>>, vector<2x1x128xf32>
    tpu.vector_store %arg25[%c0_69, %c17_70, %c0_71], %79 {strides = array<i32>} : memref<2x18x128xf32, #tpu.memory_space<vmem>>, vector<2x1x128xf32>,
    %82 = vector.shape_cast %78 : vector<32x128xf32> to vector<2x16x128xf32>
    %c0_72 = arith.constant 0 : index
    %c1_73 = arith.constant 1 : index
    %c0_74 = arith.constant 0 : index
    %83 = vector.load %arg25[%c0_72, %c1_73, %c0_74] : memref<2x18x128xf32, #tpu.memory_space<vmem>>, vector<2x16x128xf32>
    tpu.vector_store %arg25[%c0_72, %c1_73, %c0_74], %82 {strides = array<i32>} : memref<2x18x128xf32, #tpu.memory_space<vmem>>, vector<2x16x128xf32>,
    %c0_75 = arith.constant 0 : index
    %c0_76 = arith.constant 0 : index
    %84 = vector.load %arg10[%c0_75, %c0_76] : memref<1x128xf32, #tpu.memory_space<vmem>>, vector<1x128xf32>
    %c0_77 = arith.constant 0 : index
    %c0_78 = arith.constant 0 : index
    %c0_79 = arith.constant 0 : index
    %85 = vector.load %arg25[%c0_77, %c0_78, %c0_79] : memref<2x18x128xf32, #tpu.memory_space<vmem>>, vector<2x16x128xf32>
    %86 = vector.shape_cast %85 : vector<2x16x128xf32> to vector<32x128xf32>
    %c0_80 = arith.constant 0 : index
    %c0_81 = arith.constant 0 : index
    %c0_82 = arith.constant 0 : index
    %87 = vector.load %arg9[%c0_80, %c0_81, %c0_82] : memref<3x128x128xf32, #tpu.memory_space<vmem>>, vector<1x128x128xf32>
    %88 = vector.shape_cast %87 : vector<1x128x128xf32> to vector<128x128xf32>
    %cst_83 = arith.constant dense<0.000000e+00> : vector<32x128xf32>
    %89 = tpu.matmul %86, %88, %cst_83 {dimension_numbers = #tpu.dot_dimension_numbers<[1], [0], [0], [1], [0, 0, 1, 1], [], []>} : vector<32x128xf32>, vector<128x128xf32>, vector<32x128xf32> -> vector<32x128xf32>
    %c0_84 = arith.constant 0 : index
    %c1_85 = arith.constant 1 : index
    %c0_86 = arith.constant 0 : index
    %90 = vector.load %arg25[%c0_84, %c1_85, %c0_86] : memref<2x18x128xf32, #tpu.memory_space<vmem>>, vector<2x16x128xf32>
    %91 = vector.shape_cast %90 : vector<2x16x128xf32> to vector<32x128xf32>
    %c1_87 = arith.constant 1 : index
    %c0_88 = arith.constant 0 : index
    %c0_89 = arith.constant 0 : index
    %92 = vector.load %arg9[%c1_87, %c0_88, %c0_89] : memref<3x128x128xf32, #tpu.memory_space<vmem>>, vector<1x128x128xf32>
    %93 = vector.shape_cast %92 : vector<1x128x128xf32> to vector<128x128xf32>
    %cst_90 = arith.constant dense<0.000000e+00> : vector<32x128xf32>
    %94 = tpu.matmul %91, %93, %cst_90 {dimension_numbers = #tpu.dot_dimension_numbers<[1], [0], [0], [1], [0, 0, 1, 1], [], []>} : vector<32x128xf32>, vector<128x128xf32>, vector<32x128xf32> -> vector<32x128xf32>
    %95 = arith.addf %89, %94 : vector<32x128xf32>
    %c0_91 = arith.constant 0 : index
    %c2_92 = arith.constant 2 : index
    %c0_93 = arith.constant 0 : index
    %96 = vector.load %arg25[%c0_91, %c2_92, %c0_93] : memref<2x18x128xf32, #tpu.memory_space<vmem>>, vector<2x16x128xf32>
    %97 = vector.shape_cast %96 : vector<2x16x128xf32> to vector<32x128xf32>
    %c2_94 = arith.constant 2 : index
    %c0_95 = arith.constant 0 : index
    %c0_96 = arith.constant 0 : index
    %98 = vector.load %arg9[%c2_94, %c0_95, %c0_96] : memref<3x128x128xf32, #tpu.memory_space<vmem>>, vector<1x128x128xf32>
    %99 = vector.shape_cast %98 : vector<1x128x128xf32> to vector<128x128xf32>
    %cst_97 = arith.constant dense<0.000000e+00> : vector<32x128xf32>
    %100 = tpu.matmul %97, %99, %cst_97 {dimension_numbers = #tpu.dot_dimension_numbers<[1], [0], [0], [1], [0, 0, 1, 1], [], []>} : vector<32x128xf32>, vector<128x128xf32>, vector<32x128xf32> -> vector<32x128xf32>
    %101 = arith.addf %95, %100 : vector<32x128xf32>
    %102 = vector.broadcast %84 : vector<1x128xf32> to vector<32x128xf32>
    %103 = arith.addf %101, %102 : vector<32x128xf32>
    %c0_98 = arith.constant 0 : index
    %c0_99 = arith.constant 0 : index
    %104 = vector.load %arg11[%c0_98, %c0_99] : memref<1x8xf32, #tpu.memory_space<vmem>>, vector<1x8xf32>
    %c0_100 = arith.constant 0 : index
    %c0_101 = arith.constant 0 : index
    %105 = vector.load %arg12[%c0_100, %c0_101] : memref<1x8xf32, #tpu.memory_space<vmem>>, vector<1x8xf32>
    %c0_102 = arith.constant 0 : index
    %c0_103 = arith.constant 0 : index
    %106 = vector.load %arg19[%c0_102, %c0_103] : memref<128x8xf32, #tpu.memory_space<vmem>>, vector<128x8xf32>
    %c0_104 = arith.constant 0 : index
    %c0_105 = arith.constant 0 : index
    %107 = vector.load %arg20[%c0_104, %c0_105] : memref<8x128xf32, #tpu.memory_space<vmem>>, vector<8x128xf32>
    %cst_106 = arith.constant dense<0.000000e+00> : vector<128xf32>
    %108 = vector.multi_reduction <add>, %103, %cst_106 [0] : vector<32x128xf32> to vector<128xf32>
    %109 = vector.shape_cast %108 : vector<128xf32> to vector<1x128xf32>
    %110 = arith.mulf %103, %103 : vector<32x128xf32>
    %cst_107 = arith.constant dense<0.000000e+00> : vector<128xf32>
    %111 = vector.multi_reduction <add>, %110, %cst_107 [0] : vector<32x128xf32> to vector<128xf32>
    %112 = vector.shape_cast %111 : vector<128xf32> to vector<1x128xf32>
    %cst_108 = arith.constant dense<0.000000e+00> : vector<1x8xf32>
    %113 = tpu.matmul %109, %106, %cst_108 {dimension_numbers = #tpu.dot_dimension_numbers<[1], [0], [0], [1], [0, 0, 1, 1], [], []>} : vector<1x128xf32>, vector<128x8xf32>, vector<1x8xf32> -> vector<1x8xf32>
    %cst_109 = arith.constant 0.001953125 : f32
    %114 = vector.broadcast %cst_109 : f32 to vector<1x8xf32>
    %115 = arith.mulf %113, %114 : vector<1x8xf32>
    %cst_110 = arith.constant dense<0.000000e+00> : vector<1x8xf32>
    %116 = tpu.matmul %112, %106, %cst_110 {dimension_numbers = #tpu.dot_dimension_numbers<[1], [0], [0], [1], [0, 0, 1, 1], [], []>} : vector<1x128xf32>, vector<128x8xf32>, vector<1x8xf32> -> vector<1x8xf32>
    %cst_111 = arith.constant 0.001953125 : f32
    %117 = vector.broadcast %cst_111 : f32 to vector<1x8xf32>
    %118 = arith.mulf %116, %117 : vector<1x8xf32>
    %119 = arith.mulf %115, %115 : vector<1x8xf32>
    %120 = arith.subf %118, %119 : vector<1x8xf32>
    %cst_112 = arith.constant 0.000000e+00 : f32
    %121 = vector.broadcast %cst_112 : f32 to vector<1x8xf32>
    %122 = arith.maximumf %120, %121 : vector<1x8xf32>
    %cst_113 = arith.constant 9.99999974E-6 : f32
    %123 = vector.broadcast %cst_113 : f32 to vector<1x8xf32>
    %124 = arith.addf %122, %123 : vector<1x8xf32>
    %125 = math.rsqrt %124 : vector<1x8xf32>
    %126 = arith.mulf %104, %125 : vector<1x8xf32>
    %127 = arith.mulf %115, %126 : vector<1x8xf32>
    %128 = arith.subf %105, %127 : vector<1x8xf32>
    %cst_114 = arith.constant dense<0.000000e+00> : vector<1x128xf32>
    %129 = tpu.matmul %126, %107, %cst_114 {dimension_numbers = #tpu.dot_dimension_numbers<[1], [0], [0], [1], [0, 0, 1, 1], [], []>} : vector<1x8xf32>, vector<8x128xf32>, vector<1x128xf32> -> vector<1x128xf32>
    %cst_115 = arith.constant dense<0.000000e+00> : vector<1x128xf32>
    %130 = tpu.matmul %128, %107, %cst_115 {dimension_numbers = #tpu.dot_dimension_numbers<[1], [0], [0], [1], [0, 0, 1, 1], [], []>} : vector<1x8xf32>, vector<8x128xf32>, vector<1x128xf32> -> vector<1x128xf32>
    %131 = vector.broadcast %129 : vector<1x128xf32> to vector<32x128xf32>
    %132 = arith.mulf %103, %131 : vector<32x128xf32>
    %133 = vector.broadcast %130 : vector<1x128xf32> to vector<32x128xf32>
    %134 = arith.addf %132, %133 : vector<32x128xf32>
    %cst_116 = arith.constant 5.000000e-01 : f32
    %135 = vector.broadcast %cst_116 : f32 to vector<32x128xf32>
    %136 = arith.mulf %135, %134 : vector<32x128xf32>
    %cst_117 = arith.constant 4.471500e-02 : f32
    %137 = vector.broadcast %cst_117 : f32 to vector<32x128xf32>
    %138 = arith.mulf %137, %134 : vector<32x128xf32>
    %139 = arith.mulf %138, %134 : vector<32x128xf32>
    %140 = arith.mulf %139, %134 : vector<32x128xf32>
    %141 = arith.addf %134, %140 : vector<32x128xf32>
    %cst_118 = arith.constant 0.797884583 : f32
    %142 = vector.broadcast %cst_118 : f32 to vector<32x128xf32>
    %143 = arith.mulf %142, %141 : vector<32x128xf32>
    %144 = math.tanh %143 : vector<32x128xf32>
    %cst_119 = arith.constant 1.000000e+00 : f32
    %145 = vector.broadcast %cst_119 : f32 to vector<32x128xf32>
    %146 = arith.addf %145, %144 : vector<32x128xf32>
    %147 = arith.mulf %136, %146 : vector<32x128xf32>
    %c0_120 = arith.constant 0 : index
    %c0_121 = arith.constant 0 : index
    %c0_122 = arith.constant 0 : index
    %148 = vector.load %arg1[%c0_120, %c0_121, %c0_122] : memref<2x16x128xf32, #tpu.memory_space<vmem>>, vector<2x16x128xf32>
    %149 = vector.shape_cast %148 : vector<2x16x128xf32> to vector<32x128xf32>
    %c0_123 = arith.constant 0 : index
    %c0_124 = arith.constant 0 : index
    %150 = vector.load %arg13[%c0_123, %c0_124] : memref<1x8xf32, #tpu.memory_space<vmem>>, vector<1x8xf32>
    %c0_125 = arith.constant 0 : index
    %c0_126 = arith.constant 0 : index
    %151 = vector.load %arg14[%c0_125, %c0_126] : memref<1x8xf32, #tpu.memory_space<vmem>>, vector<1x8xf32>
    %c0_127 = arith.constant 0 : index
    %c0_128 = arith.constant 0 : index
    %152 = vector.load %arg21[%c0_127, %c0_128] : memref<128x8xf32, #tpu.memory_space<vmem>>, vector<128x8xf32>
    %c0_129 = arith.constant 0 : index
    %c0_130 = arith.constant 0 : index
    %153 = vector.load %arg22[%c0_129, %c0_130] : memref<8x128xf32, #tpu.memory_space<vmem>>, vector<8x128xf32>
    %cst_131 = arith.constant dense<0.000000e+00> : vector<128xf32>
    %154 = vector.multi_reduction <add>, %149, %cst_131 [0] : vector<32x128xf32> to vector<128xf32>
    %155 = vector.shape_cast %154 : vector<128xf32> to vector<1x128xf32>
    %156 = arith.mulf %149, %149 : vector<32x128xf32>
    %cst_132 = arith.constant dense<0.000000e+00> : vector<128xf32>
    %157 = vector.multi_reduction <add>, %156, %cst_132 [0] : vector<32x128xf32> to vector<128xf32>
    %158 = vector.shape_cast %157 : vector<128xf32> to vector<1x128xf32>
    %cst_133 = arith.constant dense<0.000000e+00> : vector<1x8xf32>
    %159 = tpu.matmul %155, %152, %cst_133 {dimension_numbers = #tpu.dot_dimension_numbers<[1], [0], [0], [1], [0, 0, 1, 1], [], []>} : vector<1x128xf32>, vector<128x8xf32>, vector<1x8xf32> -> vector<1x8xf32>
    %cst_134 = arith.constant 0.001953125 : f32
    %160 = vector.broadcast %cst_134 : f32 to vector<1x8xf32>
    %161 = arith.mulf %159, %160 : vector<1x8xf32>
    %cst_135 = arith.constant dense<0.000000e+00> : vector<1x8xf32>
    %162 = tpu.matmul %158, %152, %cst_135 {dimension_numbers = #tpu.dot_dimension_numbers<[1], [0], [0], [1], [0, 0, 1, 1], [], []>} : vector<1x128xf32>, vector<128x8xf32>, vector<1x8xf32> -> vector<1x8xf32>
    %cst_136 = arith.constant 0.001953125 : f32
    %163 = vector.broadcast %cst_136 : f32 to vector<1x8xf32>
    %164 = arith.mulf %162, %163 : vector<1x8xf32>
    %165 = arith.mulf %161, %161 : vector<1x8xf32>
    %166 = arith.subf %164, %165 : vector<1x8xf32>
    %cst_137 = arith.constant 0.000000e+00 : f32
    %167 = vector.broadcast %cst_137 : f32 to vector<1x8xf32>
    %168 = arith.maximumf %166, %167 : vector<1x8xf32>
    %cst_138 = arith.constant 9.99999974E-6 : f32
    %169 = vector.broadcast %cst_138 : f32 to vector<1x8xf32>
    %170 = arith.addf %168, %169 : vector<1x8xf32>
    %171 = math.rsqrt %170 : vector<1x8xf32>
    %172 = arith.mulf %150, %171 : vector<1x8xf32>
    %173 = arith.mulf %161, %172 : vector<1x8xf32>
    %174 = arith.subf %151, %173 : vector<1x8xf32>
    %cst_139 = arith.constant dense<0.000000e+00> : vector<1x128xf32>
    %175 = tpu.matmul %172, %153, %cst_139 {dimension_numbers = #tpu.dot_dimension_numbers<[1], [0], [0], [1], [0, 0, 1, 1], [], []>} : vector<1x8xf32>, vector<8x128xf32>, vector<1x128xf32> -> vector<1x128xf32>
    %cst_140 = arith.constant dense<0.000000e+00> : vector<1x128xf32>
    %176 = tpu.matmul %174, %153, %cst_140 {dimension_numbers = #tpu.dot_dimension_numbers<[1], [0], [0], [1], [0, 0, 1, 1], [], []>} : vector<1x8xf32>, vector<8x128xf32>, vector<1x128xf32> -> vector<1x128xf32>
    %177 = vector.broadcast %175 : vector<1x128xf32> to vector<32x128xf32>
    %178 = arith.mulf %149, %177 : vector<32x128xf32>
    %179 = vector.broadcast %176 : vector<1x128xf32> to vector<32x128xf32>
    %180 = arith.addf %178, %179 : vector<32x128xf32>
    %cst_141 = arith.constant 5.000000e-01 : f32
    %181 = vector.broadcast %cst_141 : f32 to vector<32x128xf32>
    %182 = arith.mulf %181, %180 : vector<32x128xf32>
    %cst_142 = arith.constant 4.471500e-02 : f32
    %183 = vector.broadcast %cst_142 : f32 to vector<32x128xf32>
    %184 = arith.mulf %183, %180 : vector<32x128xf32>
    %185 = arith.mulf %184, %180 : vector<32x128xf32>
    %186 = arith.mulf %185, %180 : vector<32x128xf32>
    %187 = arith.addf %180, %186 : vector<32x128xf32>
    %cst_143 = arith.constant 0.797884583 : f32
    %188 = vector.broadcast %cst_143 : f32 to vector<32x128xf32>
    %189 = arith.mulf %188, %187 : vector<32x128xf32>
    %190 = math.tanh %189 : vector<32x128xf32>
    %cst_144 = arith.constant 1.000000e+00 : f32
    %191 = vector.broadcast %cst_144 : f32 to vector<32x128xf32>
    %192 = arith.addf %191, %190 : vector<32x128xf32>
    %193 = arith.mulf %182, %192 : vector<32x128xf32>
    %c0_145 = arith.constant 0 : index
    %c0_146 = arith.constant 0 : index
    %194 = vector.load %arg15[%c0_145, %c0_146] : memref<1x8xf32, #tpu.memory_space<vmem>>, vector<1x8xf32>
    %c0_147 = arith.constant 0 : index
    %c0_148 = arith.constant 0 : index
    %195 = vector.load %arg16[%c0_147, %c0_148] : memref<1x8xf32, #tpu.memory_space<vmem>>, vector<1x8xf32>
    %c0_149 = arith.constant 0 : index
    %c0_150 = arith.constant 0 : index
    %196 = vector.load %arg19[%c0_149, %c0_150] : memref<128x8xf32, #tpu.memory_space<vmem>>, vector<128x8xf32>
    %c0_151 = arith.constant 0 : index
    %c0_152 = arith.constant 0 : index
    %197 = vector.load %arg20[%c0_151, %c0_152] : memref<8x128xf32, #tpu.memory_space<vmem>>, vector<8x128xf32>
    %cst_153 = arith.constant dense<0.000000e+00> : vector<128xf32>
    %198 = vector.multi_reduction <add>, %7, %cst_153 [0] : vector<32x128xf32> to vector<128xf32>
    %199 = vector.shape_cast %198 : vector<128xf32> to vector<1x128xf32>
    %200 = arith.mulf %7, %7 : vector<32x128xf32>
    %cst_154 = arith.constant dense<0.000000e+00> : vector<128xf32>
    %201 = vector.multi_reduction <add>, %200, %cst_154 [0] : vector<32x128xf32> to vector<128xf32>
    %202 = vector.shape_cast %201 : vector<128xf32> to vector<1x128xf32>
    %cst_155 = arith.constant dense<0.000000e+00> : vector<1x8xf32>
    %203 = tpu.matmul %199, %196, %cst_155 {dimension_numbers = #tpu.dot_dimension_numbers<[1], [0], [0], [1], [0, 0, 1, 1], [], []>} : vector<1x128xf32>, vector<128x8xf32>, vector<1x8xf32> -> vector<1x8xf32>
    %cst_156 = arith.constant 0.001953125 : f32
    %204 = vector.broadcast %cst_156 : f32 to vector<1x8xf32>
    %205 = arith.mulf %203, %204 : vector<1x8xf32>
    %cst_157 = arith.constant dense<0.000000e+00> : vector<1x8xf32>
    %206 = tpu.matmul %202, %196, %cst_157 {dimension_numbers = #tpu.dot_dimension_numbers<[1], [0], [0], [1], [0, 0, 1, 1], [], []>} : vector<1x128xf32>, vector<128x8xf32>, vector<1x8xf32> -> vector<1x8xf32>
    %cst_158 = arith.constant 0.001953125 : f32
    %207 = vector.broadcast %cst_158 : f32 to vector<1x8xf32>
    %208 = arith.mulf %206, %207 : vector<1x8xf32>
    %209 = arith.mulf %205, %205 : vector<1x8xf32>
    %210 = arith.subf %208, %209 : vector<1x8xf32>
    %cst_159 = arith.constant 0.000000e+00 : f32
    %211 = vector.broadcast %cst_159 : f32 to vector<1x8xf32>
    %212 = arith.maximumf %210, %211 : vector<1x8xf32>
    %cst_160 = arith.constant 9.99999974E-6 : f32
    %213 = vector.broadcast %cst_160 : f32 to vector<1x8xf32>
    %214 = arith.addf %212, %213 : vector<1x8xf32>
    %215 = math.rsqrt %214 : vector<1x8xf32>
    %216 = arith.mulf %194, %215 : vector<1x8xf32>
    %217 = arith.mulf %205, %216 : vector<1x8xf32>
    %218 = arith.subf %195, %217 : vector<1x8xf32>
    %cst_161 = arith.constant dense<0.000000e+00> : vector<1x128xf32>
    %219 = tpu.matmul %216, %197, %cst_161 {dimension_numbers = #tpu.dot_dimension_numbers<[1], [0], [0], [1], [0, 0, 1, 1], [], []>} : vector<1x8xf32>, vector<8x128xf32>, vector<1x128xf32> -> vector<1x128xf32>
    %cst_162 = arith.constant dense<0.000000e+00> : vector<1x128xf32>
    %220 = tpu.matmul %218, %197, %cst_162 {dimension_numbers = #tpu.dot_dimension_numbers<[1], [0], [0], [1], [0, 0, 1, 1], [], []>} : vector<1x8xf32>, vector<8x128xf32>, vector<1x128xf32> -> vector<1x128xf32>
    %221 = vector.broadcast %219 : vector<1x128xf32> to vector<32x128xf32>
    %222 = arith.mulf %7, %221 : vector<32x128xf32>
    %223 = vector.broadcast %220 : vector<1x128xf32> to vector<32x128xf32>
    %224 = arith.addf %222, %223 : vector<32x128xf32>
    %cst_163 = arith.constant 5.000000e-01 : f32
    %225 = vector.broadcast %cst_163 : f32 to vector<32x128xf32>
    %226 = arith.mulf %225, %224 : vector<32x128xf32>
    %cst_164 = arith.constant 4.471500e-02 : f32
    %227 = vector.broadcast %cst_164 : f32 to vector<32x128xf32>
    %228 = arith.mulf %227, %224 : vector<32x128xf32>
    %229 = arith.mulf %228, %224 : vector<32x128xf32>
    %230 = arith.mulf %229, %224 : vector<32x128xf32>
    %231 = arith.addf %224, %230 : vector<32x128xf32>
    %cst_165 = arith.constant 0.797884583 : f32
    %232 = vector.broadcast %cst_165 : f32 to vector<32x128xf32>
    %233 = arith.mulf %232, %231 : vector<32x128xf32>
    %234 = math.tanh %233 : vector<32x128xf32>
    %cst_166 = arith.constant 1.000000e+00 : f32
    %235 = vector.broadcast %cst_166 : f32 to vector<32x128xf32>
    %236 = arith.addf %235, %234 : vector<32x128xf32>
    %237 = arith.mulf %226, %236 : vector<32x128xf32>
    %238 = tpu.concatenate %193, %237 in 1 : vector<32x128xf32>, vector<32x128xf32> -> vector<32x256xf32>
    %c0_167 = arith.constant 0 : index
    %c0_168 = arith.constant 0 : index
    %239 = vector.load %arg17[%c0_167, %c0_168] : memref<256x128xf32, #tpu.memory_space<vmem>>, vector<256x128xf32>
    %cst_169 = arith.constant dense<0.000000e+00> : vector<32x128xf32>
    %240 = tpu.matmul %238, %239, %cst_169 {dimension_numbers = #tpu.dot_dimension_numbers<[1], [0], [0], [1], [0, 0, 1, 1], [], []>} : vector<32x256xf32>, vector<256x128xf32>, vector<32x128xf32> -> vector<32x128xf32>
    %c0_170 = arith.constant 0 : index
    %c0_171 = arith.constant 0 : index
    %241 = vector.load %arg18[%c0_170, %c0_171] : memref<1x128xf32, #tpu.memory_space<vmem>>, vector<1x128xf32>
    %242 = vector.broadcast %241 : vector<1x128xf32> to vector<32x128xf32>
    %243 = arith.addf %240, %242 : vector<32x128xf32>
    %244 = arith.addf %147, %243 : vector<32x128xf32>
    %245 = vector.shape_cast %244 : vector<32x128xf32> to vector<2x16x128xf32>
    %c0_172 = arith.constant 0 : index
    %c0_173 = arith.constant 0 : index
    %c0_174 = arith.constant 0 : index
    %246 = vector.load %arg23[%c0_172, %c0_173, %c0_174] : memref<2x16x128xf32, #tpu.memory_space<vmem>>, vector<2x16x128xf32>
    tpu.vector_store %arg23[%c0_172, %c0_173, %c0_174], %245 {strides = array<i32>} : memref<2x16x128xf32, #tpu.memory_space<vmem>>, vector<2x16x128xf32>,
    return
  }
}

</mosaic_0001>

<llo_original>
// kernel: tpu_custom_call.1
$region0: #{tpu_custom_call.1}
  #allocation0 [shape = 'u32[]', space=smem, size = 0x4, offset = 0x4, fixed_abs, tag = 'smem constant byte address 0x4 - core index']
  #allocation1 [shape = 'u32[144,128]{1,0:T(1,128)}', space=vmem, size = 0x12000, scoped, tag = 'internal scratch']
  #allocation2 [shape = 'f32[2,18,256]{2,1,0:T(8,128)}', space=vmem, size = 0xc000, scoped, tag = 'scratch operand']
  #allocation3 [shape = 'f32[2,18,128]{2,1,0:T(8,128)}', space=vmem, size = 0x6000, scoped, tag = 'scratch operand']
  %s0 = inlined_call_operand.vmem [shape: f32[16,32], index: 0, kind: input, shape index: {}]
  %s1 = inlined_call_operand.vmem [shape: f32[2,16,128], index: 1, kind: input, shape index: {}]
  %s2 = inlined_call_operand.vmem [shape: f32[32,16], index: 2, kind: input, shape index: {}]
  %s3 = inlined_call_operand.vmem [shape: f32[32,128], index: 3, kind: input, shape index: {}]
  %s4 = inlined_call_operand.vmem [shape: f32[1,128], index: 4, kind: input, shape index: {}]
  %s5 = inlined_call_operand.hbm [shape: f32[3,256,128], index: 5, kind: input, shape index: {}]
  %s6 = inlined_call_operand.vmem [shape: f32[1,128], index: 6, kind: input, shape index: {}]
  %s7 = inlined_call_operand.vmem [shape: f32[1,8], index: 7, kind: input, shape index: {}]
  %s8 = inlined_call_operand.vmem [shape: f32[1,8], index: 8, kind: input, shape index: {}]
  %s9 = inlined_call_operand.hbm [shape: f32[3,128,128], index: 9, kind: input, shape index: {}]
  %s10 = inlined_call_operand.vmem [shape: f32[1,128], index: 10, kind: input, shape index: {}]
  %s11 = inlined_call_operand.vmem [shape: f32[1,8], index: 11, kind: input, shape index: {}]
  %s12 = inlined_call_operand.vmem [shape: f32[1,8], index: 12, kind: input, shape index: {}]
  %s13 = inlined_call_operand.vmem [shape: f32[1,8], index: 13, kind: input, shape index: {}]
  %s14 = inlined_call_operand.vmem [shape: f32[1,8], index: 14, kind: input, shape index: {}]
  %s15 = inlined_call_operand.vmem [shape: f32[1,8], index: 15, kind: input, shape index: {}]
  %s16 = inlined_call_operand.vmem [shape: f32[1,8], index: 16, kind: input, shape index: {}]
  %s17 = inlined_call_operand.vmem [shape: f32[256,128], index: 17, kind: input, shape index: {}]
  %s18 = inlined_call_operand.vmem [shape: f32[1,128], index: 18, kind: input, shape index: {}]
  %s19 = inlined_call_operand.vmem [shape: f32[128,8], index: 19, kind: input, shape index: {}]
  %s20 = inlined_call_operand.vmem [shape: f32[8,128], index: 20, kind: input, shape index: {}]
  %s21 = inlined_call_operand.vmem [shape: f32[128,8], index: 21, kind: input, shape index: {}]
  %s22 = inlined_call_operand.vmem [shape: f32[8,128], index: 22, kind: input, shape index: {}]
  %s23 = inlined_call_operand.hbm [shape: f32[2,16,128], index: 23, kind: output, shape index: {}]
  %s24 = sld [smem:[#allocation0]]
  $region110: #{tpu_custom_call.1} parent=0
    _
  %s26 = ssub.s32 1, %s24
  %s27 = scalar_select 0, %s26, %s24
  $region1: #{tpu_custom_call.1} parent=0
    #allocation4 [shape = 'u8[393216]{0}', space=vmem, size = 0x60000, scoped, tag = 'input window, operand 5, single buffered']
    #allocation5 [shape = 's32[1]{0}', space=sflag, size = 0x4, scoped, tag = 'scoped memory for tpu_custom_call.1']
    #allocation6 [shape = 's32[1]{0}', space=sflag, size = 0x4, scoped, tag = 'scoped memory for tpu_custom_call.1']
    #allocation7 [shape = 'u8[196608]{0}', space=vmem, size = 0x30000, scoped, tag = 'input window, operand 9, single buffered']
    #allocation8 [shape = 's32[1]{0}', space=sflag, size = 0x4, scoped, tag = 'scoped memory for tpu_custom_call.1']
    #allocation9 [shape = 'u8[16384]{0}', space=vmem, size = 0x4000, scoped, tag = 'output window, operand 0, single buffered']
    %28 = vsyncpa [#allocation5], 0
    %29 = vsyncpa [#allocation8], 0
    %30 = vsyncpa [#allocation6], 0
    // Predicated region
    $region2: #{tpu_custom_call.1} parent=1 // pred_check
      _
    $region3: #{tpu_custom_call.1} parent=1 // pred_check_branch
      %32 = sbr.rel (0) target = $region5
    $region4: #{tpu_custom_call.1} parent=1 // pred_region
      _
    $region5: #{tpu_custom_call.1} parent=1 // pred_fallthru
      _
    // Predicated region
    $region6: #{tpu_custom_call.1} parent=1 // pred_check
      _
    $region7: #{tpu_custom_call.1} parent=1 // pred_check_branch
      %34 = sbr.rel (0) target = $region9
    $region8: #{tpu_custom_call.1} parent=1 // pred_region
      _
    $region9: #{tpu_custom_call.1} parent=1 // pred_fallthru
      _
    // Predicated region
    $region10: #{tpu_custom_call.1} parent=1 // pred_check
      _
    $region11: #{tpu_custom_call.1} parent=1 // pred_check_branch
      %36 = sbr.rel (0) target = $region13
    $region12: #{tpu_custom_call.1} parent=1 // pred_region
      _
    $region13: #{tpu_custom_call.1} parent=1 // pred_fallthru
      _
    // Predicated region
    $region14: #{tpu_custom_call.1} parent=1 // pred_check
      _
    $region15: #{tpu_custom_call.1} parent=1 // pred_check_branch
      %38 = sbr.rel (0) target = $region17
    $region16: #{tpu_custom_call.1} parent=1 // pred_region
      _
    $region17: #{tpu_custom_call.1} parent=1 // pred_fallthru
      _
    // Predicated region
    $region18: #{tpu_custom_call.1} parent=1 // pred_check
      _
    $region19: #{tpu_custom_call.1} parent=1 // pred_check_branch
      %40 = sbr.rel (0) target = $region21
    $region20: #{tpu_custom_call.1} parent=1 // pred_region
      _
    $region21: #{tpu_custom_call.1} parent=1 // pred_fallthru
      _
    // Predicated region
    $region22: #{tpu_custom_call.1} parent=1 // pred_check
      _
    $region23: #{tpu_custom_call.1} parent=1 // pred_check_branch
      %42 = sbr.rel (0) target = $region25
    $region24: #{tpu_custom_call.1} parent=1 // pred_region
      %s44 = ssub.s32 12288, 12288
      %45 = vsyncadd [#allocation5], %s44
      %s46 = sshll.u32 [#allocation4], 4
      %s47 = int_to_ptr.vmem [resolvable:$true] %s46
      %52 = dma.hbm_to_vmem [thread:$0]  %s5, 12288, %s47, [#allocation5], 128, 128, 8
    $region25: #{tpu_custom_call.1} parent=1 // pred_fallthru
      _
    // Predicated region
    $region26: #{tpu_custom_call.1} parent=1 // pred_check
      _
    $region27: #{tpu_custom_call.1} parent=1 // pred_check_branch
      %54 = sbr.rel (0) target = $region29
    $region28: #{tpu_custom_call.1} parent=1 // pred_region
      _
    $region29: #{tpu_custom_call.1} parent=1 // pred_fallthru
      _
    // Predicated region
    $region30: #{tpu_custom_call.1} parent=1 // pred_check
      _
    $region31: #{tpu_custom_call.1} parent=1 // pred_check_branch
      %56 = sbr.rel (0) target = $region33
    $region32: #{tpu_custom_call.1} parent=1 // pred_region
      _
    $region33: #{tpu_custom_call.1} parent=1 // pred_fallthru
      _
    // Predicated region
    $region34: #{tpu_custom_call.1} parent=1 // pred_check
      _
    $region35: #{tpu_custom_call.1} parent=1 // pred_check_branch
      %58 = sbr.rel (0) target = $region37
    $region36: #{tpu_custom_call.1} parent=1 // pred_region
      _
    $region37: #{tpu_custom_call.1} parent=1 // pred_fallthru
      _
    // Predicated region
    $region38: #{tpu_custom_call.1} parent=1 // pred_check
      _
    $region39: #{tpu_custom_call.1} parent=1 // pred_check_branch
      %60 = sbr.rel (0) target = $region41
    $region40: #{tpu_custom_call.1} parent=1 // pred_region
      %s62 = ssub.s32 6144, 6144
      %63 = vsyncadd [#allocation8], %s62
      %s64 = sshll.u32 [#allocation7], 4
      %s65 = int_to_ptr.vmem [resolvable:$true] %s64
      %70 = dma.hbm_to_vmem [thread:$0]  %s9, 6144, %s65, [#allocation8], 128, 128, 8
    $region41: #{tpu_custom_call.1} parent=1 // pred_fallthru
      _
    // Predicated region
    $region42: #{tpu_custom_call.1} parent=1 // pred_check
      _
    $region43: #{tpu_custom_call.1} parent=1 // pred_check_branch
      %72 = sbr.rel (0) target = $region45
    $region44: #{tpu_custom_call.1} parent=1 // pred_region
      _
    $region45: #{tpu_custom_call.1} parent=1 // pred_fallthru
      _
    // Predicated region
    $region46: #{tpu_custom_call.1} parent=1 // pred_check
      _
    $region47: #{tpu_custom_call.1} parent=1 // pred_check_branch
      %74 = sbr.rel (0) target = $region49
    $region48: #{tpu_custom_call.1} parent=1 // pred_region
      _
    $region49: #{tpu_custom_call.1} parent=1 // pred_fallthru
      _
    // Predicated region
    $region50: #{tpu_custom_call.1} parent=1 // pred_check
      _
    $region51: #{tpu_custom_call.1} parent=1 // pred_check_branch
      %76 = sbr.rel (0) target = $region53
    $region52: #{tpu_custom_call.1} parent=1 // pred_region
      _
    $region53: #{tpu_custom_call.1} parent=1 // pred_fallthru
      _
    // Predicated region
    $region54: #{tpu_custom_call.1} parent=1 // pred_check
      _
    $region55: #{tpu_custom_call.1} parent=1 // pred_check_branch
      %78 = sbr.rel (0) target = $region57
    $region56: #{tpu_custom_call.1} parent=1 // pred_region
      _
    $region57: #{tpu_custom_call.1} parent=1 // pred_fallthru
      _
    // Predicated region
    $region58: #{tpu_custom_call.1} parent=1 // pred_check
      _
    $region59: #{tpu_custom_call.1} parent=1 // pred_check_branch
      %80 = sbr.rel (0) target = $region61
    $region60: #{tpu_custom_call.1} parent=1 // pred_region
      _
    $region61: #{tpu_custom_call.1} parent=1 // pred_fallthru
      _
    // Predicated region
    $region62: #{tpu_custom_call.1} parent=1 // pred_check
      _
    $region63: #{tpu_custom_call.1} parent=1 // pred_check_branch
      %82 = sbr.rel (0) target = $region65
    $region64: #{tpu_custom_call.1} parent=1 // pred_region
      _
    $region65: #{tpu_custom_call.1} parent=1 // pred_fallthru
      _
    // Predicated region
    $region66: #{tpu_custom_call.1} parent=1 // pred_check
      _
    $region67: #{tpu_custom_call.1} parent=1 // pred_check_branch
      %84 = sbr.rel (0) target = $region69
    $region68: #{tpu_custom_call.1} parent=1 // pred_region
      _
    $region69: #{tpu_custom_call.1} parent=1 // pred_fallthru
      _
    // Predicated region
    $region70: #{tpu_custom_call.1} parent=1 // pred_check
      _
    $region71: #{tpu_custom_call.1} parent=1 // pred_check_branch
      %86 = sbr.rel (0) target = $region73
    $region72: #{tpu_custom_call.1} parent=1 // pred_region
      _
    $region73: #{tpu_custom_call.1} parent=1 // pred_fallthru
      _
    // Predicated region
    $region74: #{tpu_custom_call.1} parent=1 // pred_check
      _
    $region75: #{tpu_custom_call.1} parent=1 // pred_check_branch
      %88 = sbr.rel (0) target = $region77
    $region76: #{tpu_custom_call.1} parent=1 // pred_region
      _
    $region77: #{tpu_custom_call.1} parent=1 // pred_fallthru
      _
    // Predicated region
    $region78: #{tpu_custom_call.1} parent=1 // pred_check
      _
    $region79: #{tpu_custom_call.1} parent=1 // pred_check_branch
      %90 = sbr.rel (0) target = $region81
    $region80: #{tpu_custom_call.1} parent=1 // pred_region
      _
    $region81: #{tpu_custom_call.1} parent=1 // pred_fallthru
      _
    // Predicated region
    $region82: #{tpu_custom_call.1} parent=1 // pred_check
      _
    $region83: #{tpu_custom_call.1} parent=1 // pred_check_branch
      %92 = sbr.rel (0) target = $region85
    $region84: #{tpu_custom_call.1} parent=1 // pred_region
      _
    $region85: #{tpu_custom_call.1} parent=1 // pred_fallthru
      _
    // Predicated region
    $region86: #{tpu_custom_call.1} parent=1 // pred_check
      _
    $region87: #{tpu_custom_call.1} parent=1 // pred_check_branch
      %94 = sbr.rel (0) target = $region89
    $region88: #{tpu_custom_call.1} parent=1 // pred_region
      _
    $region89: #{tpu_custom_call.1} parent=1 // pred_fallthru
      _
    // Predicated region
    $region90: #{tpu_custom_call.1} parent=1 // pred_check
      _
    $region91: #{tpu_custom_call.1} parent=1 // pred_check_branch
      %96 = sbr.rel (0) target = $region93
    $region92: #{tpu_custom_call.1} parent=1 // pred_region
      _
    $region93: #{tpu_custom_call.1} parent=1 // pred_fallthru
      _
    // Predicated region
    $region94: #{tpu_custom_call.1} parent=1 // pred_check
      _
    $region95: #{tpu_custom_call.1} parent=1 // pred_check_branch
      %98 = sbr.rel (0) target = $region97
    $region96: #{tpu_custom_call.1} parent=1 // pred_region
      %99 = dma.done [#allocation5], 12288
    $region97: #{tpu_custom_call.1} parent=1 // pred_fallthru
      _
    // Predicated region
    $region98: #{tpu_custom_call.1} parent=1 // pred_check
      _
    $region99: #{tpu_custom_call.1} parent=1 // pred_check_branch
      %101 = sbr.rel (0) target = $region101
    $region100: #{tpu_custom_call.1} parent=1 // pred_region
      %102 = dma.done [#allocation8], 6144
    $region101: #{tpu_custom_call.1} parent=1 // pred_fallthru
      _
    %v103 = vld [vmem:[%s0] sm:$0xff]
    %v104 = vld [vmem:[%s0 + $0x8] sm:$0xff]
    %v105 = vld [vmem:[%s3] sm:$0xff]
    %v106 = vld [vmem:[%s3 + $0x8] sm:$0xff]
    %v107 = vld [vmem:[%s3 + $0x10] sm:$0xff]
    %v108 = vld [vmem:[%s3 + $0x18] sm:$0xff]
    %vm109 = vcmask 261120
    %v111 = vsel %vm109, %v103, 0
    %v114 = vsel %vm109, %v104, 0
    %116 = vmatprep.subr.mxu0 0.0
    %117 = vmatpush1.msra.mxu0 %v105
    %118 = vmatprep.subr.mxu0 0.0
    %119 = vmatpush1.msra.mxu0 %v106
    %120 = vmatprep.subr.mxu0 0.0
    %121 = vmatpush1.msra.mxu0 %v107
    %122 = vmatprep.subr.mxu0 0.0
    %123 = vmatpush1.msra.mxu0 %v108
    %124 = vmatprep.subr.mxu0 0.0
    %125 = vmatpush1.msra.mxu0 0.0
    %126 = vmatprep.subr.mxu0 0.0
    %127 = vmatpush1.msra.mxu0 0.0
    %128 = vmatprep.subr.mxu0 0.0
    %129 = vmatpush1.msra.mxu0 0.0
    %130 = vmatprep.subr.mxu0 0.0
    %131 = vmatpush1.msra.mxu0 0.0
    %132 = vmatprep.subr.mxu0 0.0
    %133 = vmatpush1.msra.mxu0 0.0
    %134 = vmatprep.subr.mxu0 0.0
    %135 = vmatpush1.msra.mxu0 0.0
    %136 = vmatprep.subr.mxu0 0.0
    %137 = vmatpush1.msra.mxu0 0.0
    %138 = vmatprep.subr.mxu0 0.0
    %139 = vmatpush1.msra.mxu0 0.0
    %140 = vmatprep.subr.mxu0 0.0
    %141 = vmatpush1.msra.mxu0 0.0
    %142 = vmatprep.subr.mxu0 0.0
    %143 = vmatpush1.msra.mxu0 0.0
    %144 = vmatprep.subr.mxu0 0.0
    %145 = vmatpush1.msra.mxu0 0.0
    %146 = vmatprep.subr.mxu0 0.0
    %147 = vmatpush1.msra.mxu0 0.0
    %148 = vmatprep.subr.mxu0 0.0
    %149 = vmatpush1.msra.mxu0 0.0
    %150 = vmatprep.subr.mxu0 0.0
    %151 = vmatpush1.msra.mxu0 0.0
    %152 = vmatprep.subr.mxu0 0.0
    %153 = vmatpush1.msra.mxu0 0.0
    %154 = vmatprep.subr.mxu0 0.0
    %155 = vmatpush1.msra.mxu0 0.0
    %156 = vmatprep.subr.mxu0 0.0
    %157 = vmatpush1.msra.mxu0 0.0
    %158 = vmatprep.subr.mxu0 0.0
    %159 = vmatpush1.msra.mxu0 0.0
    %160 = vmatprep.subr.mxu0 0.0
    %161 = vmatpush1.msra.mxu0 0.0
    %162 = vmatprep.subr.mxu0 0.0
    %163 = vmatpush1.msra.mxu0 0.0
    %164 = vmatprep.subr.mxu0 0.0
    %165 = vmatpush1.msra.mxu0 0.0
    %166 = vmatprep.subr.mxu0 0.0
    %167 = vmatpush1.msra.mxu0 0.0
    %168 = vmatprep.subr.mxu0 0.0
    %169 = vmatpush1.msra.mxu0 0.0
    %170 = vmatprep.subr.mxu0 0.0
    %171 = vmatpush1.msra.mxu0 0.0
    %172 = vmatprep.subr.mxu0 0.0
    %173 = vmatpush1.msra.mxu0 0.0
    %174 = vmatprep.subr.mxu0 0.0
    %175 = vmatpush1.msra.mxu0 0.0
    %176 = vmatprep.subr.mxu0 0.0
    %177 = vmatpush1.msra.mxu0 0.0
    %178 = vmatprep.subr.mxu0 0.0
    %179 = vmatpush1.msra.mxu0 0.0
    %180 = vmatprep.mubr.f32.mxu0 0.0
    %181 = vmatmul.mubr.f32.gmra.mrb[0].mxu0 %v111
    %v182 = vpop.f32.mrb[0].mxu0
    %v183 = vadd.f32 0.0, %v182
    %v184 = vpop.f32.mrb[0].mxu0
    %185 = vmatprep.mubr.f32.mxu0 0.0
    %186 = vmatmul.mubr.f32.gmra.mrb[0].mxu0 %v114
    %v187 = vpop.f32.mrb[0].mxu0
    %v188 = vadd.f32 0.0, %v187
    %v189 = vpop.f32.mrb[0].mxu0
    %190 = vdwg.mxu0
    %v191 = vld [vmem:[%s2] sm:$0xff]
    %v192 = vld [vmem:[%s2 + $0x8] sm:$0xff]
    %v193 = vld [vmem:[%s2 + $0x10] sm:$0xff]
    %v194 = vld [vmem:[%s2 + $0x18] sm:$0xff]
    %v195 = vld [vmem:[%s4] sm:$0x1]
    %v197 = vlaneseq
    %v198 = vshrl.u32 %v197, 7
    %v199 = vsub.s32 0, %v198
    %v200 = vrot.slane %v195, %v199
    %vm202 = vcmask 130048
    %v204 = vsel %vm202, %v191, 0
    %v207 = vsel %vm202, %v192, 0
    %v210 = vsel %vm202, %v193, 0
    %v213 = vsel %vm202, %v194, 0
    %215 = vmatprep.subr.mxu0 0.0
    %216 = vmatpush1.msra.mxu0 %v183
    %217 = vmatprep.subr.mxu0 0.0
    %218 = vmatpush1.msra.mxu0 %v188
    %219 = vmatprep.subr.mxu0 0.0
    %220 = vmatpush1.msra.mxu0 0.0
    %221 = vmatprep.subr.mxu0 0.0
    %222 = vmatpush1.msra.mxu0 0.0
    %223 = vmatprep.subr.mxu0 0.0
    %224 = vmatpush1.msra.mxu0 0.0
    %225 = vmatprep.subr.mxu0 0.0
    %226 = vmatpush1.msra.mxu0 0.0
    %227 = vmatprep.subr.mxu0 0.0
    %228 = vmatpush1.msra.mxu0 0.0
    %229 = vmatprep.subr.mxu0 0.0
    %230 = vmatpush1.msra.mxu0 0.0
    %231 = vmatprep.subr.mxu0 0.0
    %232 = vmatpush1.msra.mxu0 0.0
    %233 = vmatprep.subr.mxu0 0.0
    %234 = vmatpush1.msra.mxu0 0.0
    %235 = vmatprep.subr.mxu0 0.0
    %236 = vmatpush1.msra.mxu0 0.0
    %237 = vmatprep.subr.mxu0 0.0
    %238 = vmatpush1.msra.mxu0 0.0
    %239 = vmatprep.subr.mxu0 0.0
    %240 = vmatpush1.msra.mxu0 0.0
    %241 = vmatprep.subr.mxu0 0.0
    %242 = vmatpush1.msra.mxu0 0.0
    %243 = vmatprep.subr.mxu0 0.0
    %244 = vmatpush1.msra.mxu0 0.0
    %245 = vmatprep.subr.mxu0 0.0
    %246 = vmatpush1.msra.mxu0 0.0
    %247 = vmatprep.subr.mxu0 0.0
    %248 = vmatpush1.msra.mxu0 0.0
    %249 = vmatprep.subr.mxu0 0.0
    %250 = vmatpush1.msra.mxu0 0.0
    %251 = vmatprep.subr.mxu0 0.0
    %252 = vmatpush1.msra.mxu0 0.0
    %253 = vmatprep.subr.mxu0 0.0
    %254 = vmatpush1.msra.mxu0 0.0
    %255 = vmatprep.subr.mxu0 0.0
    %256 = vmatpush1.msra.mxu0 0.0
    %257 = vmatprep.subr.mxu0 0.0
    %258 = vmatpush1.msra.mxu0 0.0
    %259 = vmatprep.subr.mxu0 0.0
    %260 = vmatpush1.msra.mxu0 0.0
    %261 = vmatprep.subr.mxu0 0.0
    %262 = vmatpush1.msra.mxu0 0.0
    %263 = vmatprep.subr.mxu0 0.0
    %264 = vmatpush1.msra.mxu0 0.0
    %265 = vmatprep.subr.mxu0 0.0
    %266 = vmatpush1.msra.mxu0 0.0
    %267 = vmatprep.subr.mxu0 0.0
    %268 = vmatpush1.msra.mxu0 0.0
    %269 = vmatprep.subr.mxu0 0.0
    %270 = vmatpush1.msra.mxu0 0.0
    %271 = vmatprep.subr.mxu0 0.0
    %272 = vmatpush1.msra.mxu0 0.0
    %273 = vmatprep.subr.mxu0 0.0
    %274 = vmatpush1.msra.mxu0 0.0
    %275 = vmatprep.subr.mxu0 0.0
    %276 = vmatpush1.msra.mxu0 0.0
    %277 = vmatprep.subr.mxu0 0.0
    %278 = vmatpush1.msra.mxu0 0.0
    %279 = vmatprep.mubr.f32.mxu0 0.0
    %280 = vmatmul.mubr.f32.gmra.mrb[0].mxu0 %v204
    %v281 = vpop.f32.mrb[0].mxu0
    %v282 = vadd.f32 %v200, %v281
    %v283 = vpop.f32.mrb[0].mxu0
    %284 = vmatprep.mubr.f32.mxu0 0.0
    %285 = vmatmul.mubr.f32.gmra.mrb[0].mxu0 %v207
    %v286 = vpop.f32.mrb[0].mxu0
    %v287 = vadd.f32 %v200, %v286
    %v288 = vpop.f32.mrb[0].mxu0
    %289 = vmatprep.mubr.f32.mxu0 0.0
    %290 = vmatmul.mubr.f32.gmra.mrb[0].mxu0 %v210
    %v291 = vpop.f32.mrb[0].mxu0
    %v292 = vadd.f32 %v200, %v291
    %v293 = vpop.f32.mrb[0].mxu0
    %294 = vmatprep.mubr.f32.mxu0 0.0
    %295 = vmatmul.mubr.f32.gmra.mrb[0].mxu0 %v213
    %v296 = vpop.f32.mrb[0].mxu0
    %v297 = vadd.f32 %v200, %v296
    %v298 = vpop.f32.mrb[0].mxu0
    %299 = vdwg.mxu0
    %v300 = vlaneseq
    %vm301 = vcmp.ge.s32.totalorder %v300, 0
    %vm302 = vcmp.lt.s32.totalorder %v300, 256
    %vm303 = vmand %vm301, %vm302
    %304 = vst.msk [vmem:[#allocation2] ss:$8 sm:$0x3] %vm303, 0.0
    %305 = vst.msk [vmem:[#allocation2] ss:$8 sm:$0x0] %vm303, 0.0
    %s306 = scalar_lea.vmem [#allocation2], 48
    %307 = vst.msk [vmem:[%s306] ss:$8 sm:$0x3] %vm303, 0.0
    %308 = vst.msk [vmem:[%s306] ss:$8 sm:$0x0] %vm303, 0.0
    %s309 = scalar_lea.vmem [#allocation2], 33
    %310 = vst.msk [vmem:[%s309] ss:$8 sm:$0x3] %vm303, 0.0
    %311 = vst.msk [vmem:[%s309] ss:$8 sm:$0x0] %vm303, 0.0
    %s312 = scalar_lea.vmem [#allocation2], 81
    %313 = vst.msk [vmem:[%s312] ss:$8 sm:$0x3] %vm303, 0.0
    %314 = vst.msk [vmem:[%s312] ss:$8 sm:$0x0] %vm303, 0.0
    %v315 = vld [vmem:[%s1] sm:$0xff]
    %v316 = vld [vmem:[%s1 + $0x8] sm:$0xff]
    %v317 = vld [vmem:[%s1 + $0x10] sm:$0xff]
    %v318 = vld [vmem:[%s1 + $0x18] sm:$0xff]
    %vm323 = vcmask 1040384
    %v324 = vrot.slane %v315, 7
    %v325 = vrot.slane %v316, 7
    %v326 = vsel %vm323, %v324, %v325
    %v327 = vrot.slane %v317, 7
    %v328 = vrot.slane %v318, 7
    %v329 = vsel %vm323, %v327, %v328
    %336 = vst [vmem:[#allocation2] sm:$0xfe] %v324
    %337 = vst [vmem:[#allocation2 + $0x10] sm:$0xff] %v326
    %338 = vst [vmem:[#allocation2 + $0x20] sm:$0x1] %v325
    %339 = vst [vmem:[#allocation2 + $0x30] sm:$0xfe] %v327
    %340 = vst [vmem:[#allocation2 + $0x40] sm:$0xff] %v329
    %341 = vst [vmem:[#allocation2 + $0x50] sm:$0x1] %v328
    %v346 = vrot.slane %v282, 7
    %v347 = vrot.slane %v287, 7
    %v348 = vsel %vm323, %v346, %v347
    %v349 = vrot.slane %v292, 7
    %v350 = vrot.slane %v297, 7
    %v351 = vsel %vm323, %v349, %v350
    %358 = vst [vmem:[#allocation2 + $0x8] sm:$0xfe] %v346
    %359 = vst [vmem:[#allocation2 + $0x18] sm:$0xff] %v348
    %360 = vst [vmem:[#allocation2 + $0x28] sm:$0x1] %v347
    %361 = vst [vmem:[#allocation2 + $0x38] sm:$0xfe] %v349
    %362 = vst [vmem:[#allocation2 + $0x48] sm:$0xff] %v351
    %363 = vst [vmem:[#allocation2 + $0x58] sm:$0x1] %v350
    %v364 = vld [vmem:[%s6] sm:$0x1]
    %v365 = vld [vmem:[#allocation2] sm:$0xff]
    %v366 = vld [vmem:[#allocation2 + $0x8] sm:$0xff]
    %v367 = vld [vmem:[#allocation2 + $0x10] sm:$0xff]
    %v368 = vld [vmem:[#allocation2 + $0x18] sm:$0xff]
    %v369 = vld [vmem:[#allocation2 + $0x30] sm:$0xff]
    %v370 = vld [vmem:[#allocation2 + $0x38] sm:$0xff]
    %v371 = vld [vmem:[#allocation2 + $0x40] sm:$0xff]
    %v372 = vld [vmem:[#allocation2 + $0x48] sm:$0xff]
    %v373 = vld [vmem:[#allocation4] sm:$0xff]
    %v374 = vld [vmem:[#allocation4 + $0x8] sm:$0xff]
    %v375 = vld [vmem:[#allocation4 + $0x10] sm:$0xff]
    %v376 = vld [vmem:[#allocation4 + $0x18] sm:$0xff]
    %v377 = vld [vmem:[#allocation4 + $0x20] sm:$0xff]
    %v378 = vld [vmem:[#allocation4 + $0x28] sm:$0xff]
    %v379 = vld [vmem:[#allocation4 + $0x30] sm:$0xff]
    %v380 = vld [vmem:[#allocation4 + $0x38] sm:$0xff]
    %v381 = vld [vmem:[#allocation4 + $0x40] sm:$0xff]
    %v382 = vld [vmem:[#allocation4 + $0x48] sm:$0xff]
    %v383 = vld [vmem:[#allocation4 + $0x50] sm:$0xff]
    %v384 = vld [vmem:[#allocation4 + $0x58] sm:$0xff]
    %v385 = vld [vmem:[#allocation4 + $0x60] sm:$0xff]
    %v386 = vld [vmem:[#allocation4 + $0x68] sm:$0xff]
    %v387 = vld [vmem:[#allocation4 + $0x70] sm:$0xff]
    %v388 = vld [vmem:[#allocation4 + $0x78] sm:$0xff]
    %v389 = vld [vmem:[#allocation4 + $0x80] sm:$0xff]
    %v390 = vld [vmem:[#allocation4 + $0x88] sm:$0xff]
    %v391 = vld [vmem:[#allocation4 + $0x90] sm:$0xff]
    %v392 = vld [vmem:[#allocation4 + $0x98] sm:$0xff]
    %v393 = vld [vmem:[#allocation4 + $0xa0] sm:$0xff]
    %v394 = vld [vmem:[#allocation4 + $0xa8] sm:$0xff]
    %v395 = vld [vmem:[#allocation4 + $0xb0] sm:$0xff]
    %v396 = vld [vmem:[#allocation4 + $0xb8] sm:$0xff]
    %v397 = vld [vmem:[#allocation4 + $0xc0] sm:$0xff]
    %v398 = vld [vmem:[#allocation4 + $0xc8] sm:$0xff]
    %v399 = vld [vmem:[#allocation4 + $0xd0] sm:$0xff]
    %v400 = vld [vmem:[#allocation4 + $0xd8] sm:$0xff]
    %v401 = vld [vmem:[#allocation4 + $0xe0] sm:$0xff]
    %v402 = vld [vmem:[#allocation4 + $0xe8] sm:$0xff]
    %v403 = vld [vmem:[#allocation4 + $0xf0] sm:$0xff]
    %v404 = vld [vmem:[#allocation4 + $0xf8] sm:$0xff]
    %v405 = vld [vmem:[#allocation2] sm:$0xfe]
    %v406 = vld [vmem:[#allocation2 + $0x8] sm:$0xfe]
    %v407 = vld [vmem:[#allocation2 + $0x20] sm:$0x1]
    %v408 = vld [vmem:[#allocation2 + $0x28] sm:$0x1]
    %v409 = vld [vmem:[#allocation2 + $0x30] sm:$0xfe]
    %v410 = vld [vmem:[#allocation2 + $0x38] sm:$0xfe]
    %v411 = vld [vmem:[#allocation2 + $0x50] sm:$0x1]
    %v412 = vld [vmem:[#allocation2 + $0x58] sm:$0x1]
    %vm425 = vcmask 1046528
    %v426 = vrot.slane %v405, 1
    %v427 = vrot.slane %v367, 1
    %v428 = vsel %vm425, %v426, %v427
    %v429 = vrot.slane %v406, 1
    %v430 = vrot.slane %v368, 1
    %v431 = vsel %vm425, %v429, %v430
    %v432 = vrot.slane %v407, 1
    %v433 = vsel %vm425, %v427, %v432
    %v434 = vrot.slane %v408, 1
    %v435 = vsel %vm425, %v430, %v434
    %v436 = vrot.slane %v409, 1
    %v437 = vrot.slane %v371, 1
    %v438 = vsel %vm425, %v436, %v437
    %v439 = vrot.slane %v410, 1
    %v440 = vrot.slane %v372, 1
    %v441 = vsel %vm425, %v439, %v440
    %v442 = vrot.slane %v411, 1
    %v443 = vsel %vm425, %v437, %v442
    %v444 = vrot.slane %v412, 1
    %v445 = vsel %vm425, %v440, %v444
    %s454 = scalar_lea.vmem [#allocation4], 256
    %v455 = vld [vmem:[%s454] sm:$0xff]
    %v456 = vld [vmem:[%s454 + $0x8] sm:$0xff]
    %v457 = vld [vmem:[%s454 + $0x10] sm:$0xff]
    %v458 = vld [vmem:[%s454 + $0x18] sm:$0xff]
    %v459 = vld [vmem:[%s454 + $0x20] sm:$0xff]
    %v460 = vld [vmem:[%s454 + $0x28] sm:$0xff]
    %v461 = vld [vmem:[%s454 + $0x30] sm:$0xff]
    %v462 = vld [vmem:[%s454 + $0x38] sm:$0xff]
    %v463 = vld [vmem:[%s454 + $0x40] sm:$0xff]
    %v464 = vld [vmem:[%s454 + $0x48] sm:$0xff]
    %v465 = vld [vmem:[%s454 + $0x50] sm:$0xff]
    %v466 = vld [vmem:[%s454 + $0x58] sm:$0xff]
    %v467 = vld [vmem:[%s454 + $0x60] sm:$0xff]
    %v468 = vld [vmem:[%s454 + $0x68] sm:$0xff]
    %v469 = vld [vmem:[%s454 + $0x70] sm:$0xff]
    %v470 = vld [vmem:[%s454 + $0x78] sm:$0xff]
    %v471 = vld [vmem:[%s454 + $0x80] sm:$0xff]
    %v472 = vld [vmem:[%s454 + $0x88] sm:$0xff]
    %v473 = vld [vmem:[%s454 + $0x90] sm:$0xff]
    %v474 = vld [vmem:[%s454 + $0x98] sm:$0xff]
    %v475 = vld [vmem:[%s454 + $0xa0] sm:$0xff]
    %v476 = vld [vmem:[%s454 + $0xa8] sm:$0xff]
    %v477 = vld [vmem:[%s454 + $0xb0] sm:$0xff]
    %v478 = vld [vmem:[%s454 + $0xb8] sm:$0xff]
    %v479 = vld [vmem:[%s454 + $0xc0] sm:$0xff]
    %v480 = vld [vmem:[%s454 + $0xc8] sm:$0xff]
    %v481 = vld [vmem:[%s454 + $0xd0] sm:$0xff]
    %v482 = vld [vmem:[%s454 + $0xd8] sm:$0xff]
    %v483 = vld [vmem:[%s454 + $0xe0] sm:$0xff]
    %v484 = vld [vmem:[%s454 + $0xe8] sm:$0xff]
    %v485 = vld [vmem:[%s454 + $0xf0] sm:$0xff]
    %v486 = vld [vmem:[%s454 + $0xf8] sm:$0xff]
    %487 = vmatprep.subr.mxu0 0.0
    %488 = vmatpush1.msra.mxu0 %v455
    %489 = vmatprep.subr.mxu0 0.0
    %490 = vmatpush1.msra.mxu0 %v456
    %491 = vmatprep.subr.mxu0 0.0
    %492 = vmatpush1.msra.mxu0 %v457
    %493 = vmatprep.subr.mxu0 0.0
    %494 = vmatpush1.msra.mxu0 %v458
    %495 = vmatprep.subr.mxu0 0.0
    %496 = vmatpush1.msra.mxu0 %v459
    %497 = vmatprep.subr.mxu0 0.0
    %498 = vmatpush1.msra.mxu0 %v460
    %499 = vmatprep.subr.mxu0 0.0
    %500 = vmatpush1.msra.mxu0 %v461
    %501 = vmatprep.subr.mxu0 0.0
    %502 = vmatpush1.msra.mxu0 %v462
    %503 = vmatprep.subr.mxu0 0.0
    %504 = vmatpush1.msra.mxu0 %v463
    %505 = vmatprep.subr.mxu0 0.0
    %506 = vmatpush1.msra.mxu0 %v464
    %507 = vmatprep.subr.mxu0 0.0
    %508 = vmatpush1.msra.mxu0 %v465
    %509 = vmatprep.subr.mxu0 0.0
    %510 = vmatpush1.msra.mxu0 %v466
    %511 = vmatprep.subr.mxu0 0.0
    %512 = vmatpush1.msra.mxu0 %v467
    %513 = vmatprep.subr.mxu0 0.0
    %514 = vmatpush1.msra.mxu0 %v468
    %515 = vmatprep.subr.mxu0 0.0
    %516 = vmatpush1.msra.mxu0 %v469
    %517 = vmatprep.subr.mxu0 0.0
    %518 = vmatpush1.msra.mxu0 %v470
    %519 = vmatprep.subr.mxu0 0.0
    %520 = vmatpush1.msra.mxu0 %v471
    %521 = vmatprep.subr.mxu0 0.0
    %522 = vmatpush1.msra.mxu0 %v472
    %523 = vmatprep.subr.mxu0 0.0
    %524 = vmatpush1.msra.mxu0 %v473
    %525 = vmatprep.subr.mxu0 0.0
    %526 = vmatpush1.msra.mxu0 %v474
    %527 = vmatprep.subr.mxu0 0.0
    %528 = vmatpush1.msra.mxu0 %v475
    %529 = vmatprep.subr.mxu0 0.0
    %530 = vmatpush1.msra.mxu0 %v476
    %531 = vmatprep.subr.mxu0 0.0
    %532 = vmatpush1.msra.mxu0 %v477
    %533 = vmatprep.subr.mxu0 0.0
    %534 = vmatpush1.msra.mxu0 %v478
    %535 = vmatprep.subr.mxu0 0.0
    %536 = vmatpush1.msra.mxu0 %v479
    %537 = vmatprep.subr.mxu0 0.0
    %538 = vmatpush1.msra.mxu0 %v480
    %539 = vmatprep.subr.mxu0 0.0
    %540 = vmatpush1.msra.mxu0 %v481
    %541 = vmatprep.subr.mxu0 0.0
    %542 = vmatpush1.msra.mxu0 %v482
    %543 = vmatprep.subr.mxu0 0.0
    %544 = vmatpush1.msra.mxu0 %v483
    %545 = vmatprep.subr.mxu0 0.0
    %546 = vmatpush1.msra.mxu0 %v484
    %547 = vmatprep.subr.mxu0 0.0
    %548 = vmatpush1.msra.mxu0 %v485
    %549 = vmatprep.subr.mxu0 0.0
    %550 = vmatpush1.msra.mxu0 %v486
    %551 = vmatprep.mubr.f32.mxu0 %v431
    %552 = vmatmul.mubr.f32.gmra.mrb[0].mxu0 %v428
    %v553 = vpop.f32.mrb[0].mxu0
    %v554 = vadd.f32 0.0, %v553
    %v555 = vpop.f32.mrb[0].mxu0
    %556 = vmatprep.mubr.f32.mxu0 %v435
    %557 = vmatmul.mubr.f32.gmra.mrb[0].mxu0 %v433
    %v558 = vpop.f32.mrb[0].mxu0
    %v559 = vadd.f32 0.0, %v558
    %v560 = vpop.f32.mrb[0].mxu0
    %561 = vmatprep.mubr.f32.mxu0 %v441
    %562 = vmatmul.mubr.f32.gmra.mrb[0].mxu0 %v438
    %v563 = vpop.f32.mrb[0].mxu0
    %v564 = vadd.f32 0.0, %v563
    %v565 = vpop.f32.mrb[0].mxu0
    %566 = vmatprep.mubr.f32.mxu0 %v445
    %567 = vmatmul.mubr.f32.gmra.mrb[0].mxu0 %v443
    %v568 = vpop.f32.mrb[0].mxu0
    %v569 = vadd.f32 0.0, %v568
    %v570 = vpop.f32.mrb[0].mxu0
    %571 = vdwg.mxu0
    %572 = vmatprep.subr.mxu0 0.0
    %573 = vmatpush1.msra.mxu0 %v373
    %574 = vmatprep.subr.mxu0 0.0
    %575 = vmatpush1.msra.mxu0 %v374
    %576 = vmatprep.subr.mxu0 0.0
    %577 = vmatpush1.msra.mxu0 %v375
    %578 = vmatprep.subr.mxu0 0.0
    %579 = vmatpush1.msra.mxu0 %v376
    %580 = vmatprep.subr.mxu0 0.0
    %581 = vmatpush1.msra.mxu0 %v377
    %582 = vmatprep.subr.mxu0 0.0
    %583 = vmatpush1.msra.mxu0 %v378
    %584 = vmatprep.subr.mxu0 0.0
    %585 = vmatpush1.msra.mxu0 %v379
    %586 = vmatprep.subr.mxu0 0.0
    %587 = vmatpush1.msra.mxu0 %v380
    %588 = vmatprep.subr.mxu0 0.0
    %589 = vmatpush1.msra.mxu0 %v381
    %590 = vmatprep.subr.mxu0 0.0
    %591 = vmatpush1.msra.mxu0 %v382
    %592 = vmatprep.subr.mxu0 0.0
    %593 = vmatpush1.msra.mxu0 %v383
    %594 = vmatprep.subr.mxu0 0.0
    %595 = vmatpush1.msra.mxu0 %v384
    %596 = vmatprep.subr.mxu0 0.0
    %597 = vmatpush1.msra.mxu0 %v385
    %598 = vmatprep.subr.mxu0 0.0
    %599 = vmatpush1.msra.mxu0 %v386
    %600 = vmatprep.subr.mxu0 0.0
    %601 = vmatpush1.msra.mxu0 %v387
    %602 = vmatprep.subr.mxu0 0.0
    %603 = vmatpush1.msra.mxu0 %v388
    %604 = vmatprep.subr.mxu0 0.0
    %605 = vmatpush1.msra.mxu0 %v389
    %606 = vmatprep.subr.mxu0 0.0
    %607 = vmatpush1.msra.mxu0 %v390
    %608 = vmatprep.subr.mxu0 0.0
    %609 = vmatpush1.msra.mxu0 %v391
    %610 = vmatprep.subr.mxu0 0.0
    %611 = vmatpush1.msra.mxu0 %v392
    %612 = vmatprep.subr.mxu0 0.0
    %613 = vmatpush1.msra.mxu0 %v393
    %614 = vmatprep.subr.mxu0 0.0
    %615 = vmatpush1.msra.mxu0 %v394
    %616 = vmatprep.subr.mxu0 0.0
    %617 = vmatpush1.msra.mxu0 %v395
    %618 = vmatprep.subr.mxu0 0.0
    %619 = vmatpush1.msra.mxu0 %v396
    %620 = vmatprep.subr.mxu0 0.0
    %621 = vmatpush1.msra.mxu0 %v397
    %622 = vmatprep.subr.mxu0 0.0
    %623 = vmatpush1.msra.mxu0 %v398
    %624 = vmatprep.subr.mxu0 0.0
    %625 = vmatpush1.msra.mxu0 %v399
    %626 = vmatprep.subr.mxu0 0.0
    %627 = vmatpush1.msra.mxu0 %v400
    %628 = vmatprep.subr.mxu0 0.0
    %629 = vmatpush1.msra.mxu0 %v401
    %630 = vmatprep.subr.mxu0 0.0
    %631 = vmatpush1.msra.mxu0 %v402
    %632 = vmatprep.subr.mxu0 0.0
    %633 = vmatpush1.msra.mxu0 %v403
    %634 = vmatprep.subr.mxu0 0.0
    %635 = vmatpush1.msra.mxu0 %v404
    %636 = vmatprep.mubr.f32.mxu0 %v366
    %637 = vmatmul.mubr.f32.gmra.mrb[0].mxu0 %v365
    %v638 = vpop.f32.mrb[0].mxu0
    %v639 = vadd.f32 %v554, %v638
    %v640 = vpop.f32.mrb[0].mxu0
    %641 = vmatprep.mubr.f32.mxu0 %v368
    %642 = vmatmul.mubr.f32.gmra.mrb[0].mxu0 %v367
    %v643 = vpop.f32.mrb[0].mxu0
    %v644 = vadd.f32 %v559, %v643
    %v645 = vpop.f32.mrb[0].mxu0
    %646 = vmatprep.mubr.f32.mxu0 %v370
    %647 = vmatmul.mubr.f32.gmra.mrb[0].mxu0 %v369
    %v648 = vpop.f32.mrb[0].mxu0
    %v649 = vadd.f32 %v564, %v648
    %v650 = vpop.f32.mrb[0].mxu0
    %651 = vmatprep.mubr.f32.mxu0 %v372
    %652 = vmatmul.mubr.f32.gmra.mrb[0].mxu0 %v371
    %v653 = vpop.f32.mrb[0].mxu0
    %v654 = vadd.f32 %v569, %v653
    %v655 = vpop.f32.mrb[0].mxu0
    %656 = vdwg.mxu0
    %v657 = vld [vmem:[#allocation2] sm:$0xfc]
    %v658 = vld [vmem:[#allocation2 + $0x8] sm:$0xfc]
    %v659 = vld [vmem:[#allocation2 + $0x20] sm:$0x3]
    %v660 = vld [vmem:[#allocation2 + $0x28] sm:$0x3]
    %v661 = vld [vmem:[#allocation2 + $0x30] sm:$0xfc]
    %v662 = vld [vmem:[#allocation2 + $0x38] sm:$0xfc]
    %v663 = vld [vmem:[#allocation2 + $0x50] sm:$0x3]
    %v664 = vld [vmem:[#allocation2 + $0x58] sm:$0x3]
    %vm673 = vcmask 1045504
    %v674 = vrot.slane %v657, 2
    %v675 = vrot.slane %v367, 2
    %v676 = vsel %vm673, %v674, %v675
    %v677 = vrot.slane %v658, 2
    %v678 = vrot.slane %v368, 2
    %v679 = vsel %vm673, %v677, %v678
    %v680 = vrot.slane %v659, 2
    %v681 = vsel %vm673, %v675, %v680
    %v682 = vrot.slane %v660, 2
    %v683 = vsel %vm673, %v678, %v682
    %v684 = vrot.slane %v661, 2
    %v685 = vrot.slane %v371, 2
    %v686 = vsel %vm673, %v684, %v685
    %v687 = vrot.slane %v662, 2
    %v688 = vrot.slane %v372, 2
    %v689 = vsel %vm673, %v687, %v688
    %v690 = vrot.slane %v663, 2
    %v691 = vsel %vm673, %v685, %v690
    %v692 = vrot.slane %v664, 2
    %v693 = vsel %vm673, %v688, %v692
    %s702 = scalar_lea.vmem [#allocation4], 512
    %v703 = vld [vmem:[%s702] sm:$0xff]
    %v704 = vld [vmem:[%s702 + $0x8] sm:$0xff]
    %v705 = vld [vmem:[%s702 + $0x10] sm:$0xff]
    %v706 = vld [vmem:[%s702 + $0x18] sm:$0xff]
    %v707 = vld [vmem:[%s702 + $0x20] sm:$0xff]
    %v708 = vld [vmem:[%s702 + $0x28] sm:$0xff]
    %v709 = vld [vmem:[%s702 + $0x30] sm:$0xff]
    %v710 = vld [vmem:[%s702 + $0x38] sm:$0xff]
    %v711 = vld [vmem:[%s702 + $0x40] sm:$0xff]
    %v712 = vld [vmem:[%s702 + $0x48] sm:$0xff]
    %v713 = vld [vmem:[%s702 + $0x50] sm:$0xff]
    %v714 = vld [vmem:[%s702 + $0x58] sm:$0xff]
    %v715 = vld [vmem:[%s702 + $0x60] sm:$0xff]
    %v716 = vld [vmem:[%s702 + $0x68] sm:$0xff]
    %v717 = vld [vmem:[%s702 + $0x70] sm:$0xff]
    %v718 = vld [vmem:[%s702 + $0x78] sm:$0xff]
    %v719 = vld [vmem:[%s702 + $0x80] sm:$0xff]
    %v720 = vld [vmem:[%s702 + $0x88] sm:$0xff]
    %v721 = vld [vmem:[%s702 + $0x90] sm:$0xff]
    %v722 = vld [vmem:[%s702 + $0x98] sm:$0xff]
    %v723 = vld [vmem:[%s702 + $0xa0] sm:$0xff]
    %v724 = vld [vmem:[%s702 + $0xa8] sm:$0xff]
    %v725 = vld [vmem:[%s702 + $0xb0] sm:$0xff]
    %v726 = vld [vmem:[%s702 + $0xb8] sm:$0xff]
    %v727 = vld [vmem:[%s702 + $0xc0] sm:$0xff]
    %v728 = vld [vmem:[%s702 + $0xc8] sm:$0xff]
    %v729 = vld [vmem:[%s702 + $0xd0] sm:$0xff]
    %v730 = vld [vmem:[%s702 + $0xd8] sm:$0xff]
    %v731 = vld [vmem:[%s702 + $0xe0] sm:$0xff]
    %v732 = vld [vmem:[%s702 + $0xe8] sm:$0xff]
    %v733 = vld [vmem:[%s702 + $0xf0] sm:$0xff]
    %v734 = vld [vmem:[%s702 + $0xf8] sm:$0xff]
    %735 = vmatprep.subr.mxu0 0.0
    %736 = vmatpush1.msra.mxu0 %v703
    %737 = vmatprep.subr.mxu0 0.0
    %738 = vmatpush1.msra.mxu0 %v704
    %739 = vmatprep.subr.mxu0 0.0
    %740 = vmatpush1.msra.mxu0 %v705
    %741 = vmatprep.subr.mxu0 0.0
    %742 = vmatpush1.msra.mxu0 %v706
    %743 = vmatprep.subr.mxu0 0.0
    %744 = vmatpush1.msra.mxu0 %v707
    %745 = vmatprep.subr.mxu0 0.0
    %746 = vmatpush1.msra.mxu0 %v708
    %747 = vmatprep.subr.mxu0 0.0
    %748 = vmatpush1.msra.mxu0 %v709
    %749 = vmatprep.subr.mxu0 0.0
    %750 = vmatpush1.msra.mxu0 %v710
    %751 = vmatprep.subr.mxu0 0.0
    %752 = vmatpush1.msra.mxu0 %v711
    %753 = vmatprep.subr.mxu0 0.0
    %754 = vmatpush1.msra.mxu0 %v712
    %755 = vmatprep.subr.mxu0 0.0
    %756 = vmatpush1.msra.mxu0 %v713
    %757 = vmatprep.subr.mxu0 0.0
    %758 = vmatpush1.msra.mxu0 %v714
    %759 = vmatprep.subr.mxu0 0.0
    %760 = vmatpush1.msra.mxu0 %v715
    %761 = vmatprep.subr.mxu0 0.0
    %762 = vmatpush1.msra.mxu0 %v716
    %763 = vmatprep.subr.mxu0 0.0
    %764 = vmatpush1.msra.mxu0 %v717
    %765 = vmatprep.subr.mxu0 0.0
    %766 = vmatpush1.msra.mxu0 %v718
    %767 = vmatprep.subr.mxu0 0.0
    %768 = vmatpush1.msra.mxu0 %v719
    %769 = vmatprep.subr.mxu0 0.0
    %770 = vmatpush1.msra.mxu0 %v720
    %771 = vmatprep.subr.mxu0 0.0
    %772 = vmatpush1.msra.mxu0 %v721
    %773 = vmatprep.subr.mxu0 0.0
    %774 = vmatpush1.msra.mxu0 %v722
    %775 = vmatprep.subr.mxu0 0.0
    %776 = vmatpush1.msra.mxu0 %v723
    %777 = vmatprep.subr.mxu0 0.0
    %778 = vmatpush1.msra.mxu0 %v724
    %779 = vmatprep.subr.mxu0 0.0
    %780 = vmatpush1.msra.mxu0 %v725
    %781 = vmatprep.subr.mxu0 0.0
    %782 = vmatpush1.msra.mxu0 %v726
    %783 = vmatprep.subr.mxu0 0.0
    %784 = vmatpush1.msra.mxu0 %v727
    %785 = vmatprep.subr.mxu0 0.0
    %786 = vmatpush1.msra.mxu0 %v728
    %787 = vmatprep.subr.mxu0 0.0
    %788 = vmatpush1.msra.mxu0 %v729
    %789 = vmatprep.subr.mxu0 0.0
    %790 = vmatpush1.msra.mxu0 %v730
    %791 = vmatprep.subr.mxu0 0.0
    %792 = vmatpush1.msra.mxu0 %v731
    %793 = vmatprep.subr.mxu0 0.0
    %794 = vmatpush1.msra.mxu0 %v732
    %795 = vmatprep.subr.mxu0 0.0
    %796 = vmatpush1.msra.mxu0 %v733
    %797 = vmatprep.subr.mxu0 0.0
    %798 = vmatpush1.msra.mxu0 %v734
    %799 = vmatprep.mubr.f32.mxu0 %v679
    %800 = vmatmul.mubr.f32.gmra.mrb[0].mxu0 %v676
    %v801 = vpop.f32.mrb[0].mxu0
    %v802 = vadd.f32 0.0, %v801
    %v803 = vpop.f32.mrb[0].mxu0
    %804 = vmatprep.mubr.f32.mxu0 %v683
    %805 = vmatmul.mubr.f32.gmra.mrb[0].mxu0 %v681
    %v806 = vpop.f32.mrb[0].mxu0
    %v807 = vadd.f32 0.0, %v806
    %v808 = vpop.f32.mrb[0].mxu0
    %809 = vmatprep.mubr.f32.mxu0 %v689
    %810 = vmatmul.mubr.f32.gmra.mrb[0].mxu0 %v686
    %v811 = vpop.f32.mrb[0].mxu0
    %v812 = vadd.f32 0.0, %v811
    %v813 = vpop.f32.mrb[0].mxu0
    %814 = vmatprep.mubr.f32.mxu0 %v693
    %815 = vmatmul.mubr.f32.gmra.mrb[0].mxu0 %v691
    %v816 = vpop.f32.mrb[0].mxu0
    %v817 = vadd.f32 0.0, %v816
    %v818 = vpop.f32.mrb[0].mxu0
    %819 = vdwg.mxu0
    %v820 = vadd.f32 %v639, %v802
    %v821 = vadd.f32 %v644, %v807
    %v822 = vadd.f32 %v649, %v812
    %v823 = vadd.f32 %v654, %v817
    %v825 = vlaneseq
    %v826 = vshrl.u32 %v825, 7
    %v827 = vsub.s32 0, %v826
    %v828 = vrot.slane %v364, %v827
    %v830 = vadd.f32 %v820, %v828
    %v831 = vadd.f32 %v821, %v828
    %v832 = vadd.f32 %v822, %v828
    %v833 = vadd.f32 %v823, %v828
    %v834 = vld [vmem:[%s7] sm:$0x1]
    %v835 = vld [vmem:[%s8] sm:$0x1]
    %v836 = vld [vmem:[%s19] sm:$0xff]
    %v837 = vld [vmem:[%s19 + $0x8] sm:$0xff]
    %v838 = vld [vmem:[%s19 + $0x10] sm:$0xff]
    %v839 = vld [vmem:[%s19 + $0x18] sm:$0xff]
    %v840 = vld [vmem:[%s19 + $0x20] sm:$0xff]
    %v841 = vld [vmem:[%s19 + $0x28] sm:$0xff]
    %v842 = vld [vmem:[%s19 + $0x30] sm:$0xff]
    %v843 = vld [vmem:[%s19 + $0x38] sm:$0xff]
    %v844 = vld [vmem:[%s19 + $0x40] sm:$0xff]
    %v845 = vld [vmem:[%s19 + $0x48] sm:$0xff]
    %v846 = vld [vmem:[%s19 + $0x50] sm:$0xff]
    %v847 = vld [vmem:[%s19 + $0x58] sm:$0xff]
    %v848 = vld [vmem:[%s19 + $0x60] sm:$0xff]
    %v849 = vld [vmem:[%s19 + $0x68] sm:$0xff]
    %v850 = vld [vmem:[%s19 + $0x70] sm:$0xff]
    %v851 = vld [vmem:[%s19 + $0x78] sm:$0xff]
    %v852 = vld [vmem:[%s20] sm:$0xff]
    %v853 = vadd.f32 %v830, %v831
    %v854 = vadd.f32 %v853, %v832
    %v855 = vadd.f32 %v854, %v833
    %v856 = vrot.slane %v855, 4
    %v857 = vadd.f32 %v855, %v856
    %v858 = vrot.slane %v857, 2
    %v859 = vadd.f32 %v857, %v858
    %v860 = vrot.slane %v859, 1
    %v861 = vadd.f32 %v859, %v860
    %v862 = vmul.f32 %v830, %v830
    %v863 = vmul.f32 %v831, %v831
    %v864 = vmul.f32 %v832, %v832
    %v865 = vmul.f32 %v833, %v833
    %v866 = vadd.f32 %v862, %v863
    %v867 = vadd.f32 %v866, %v864
    %v868 = vadd.f32 %v867, %v865
    %v869 = vrot.slane %v868, 4
    %v870 = vadd.f32 %v868, %v869
    %v871 = vrot.slane %v870, 2
    %v872 = vadd.f32 %v870, %v871
    %v873 = vrot.slane %v872, 1
    %v874 = vadd.f32 %v872, %v873
    %875 = vmatprep.subr.mxu0 0.0
    %876 = vmatpush1.msra.mxu0 %v836
    %877 = vmatprep.subr.mxu0 0.0
    %878 = vmatpush1.msra.mxu0 %v837
    %879 = vmatprep.subr.mxu0 0.0
    %880 = vmatpush1.msra.mxu0 %v838
    %881 = vmatprep.subr.mxu0 0.0
    %882 = vmatpush1.msra.mxu0 %v839
    %883 = vmatprep.subr.mxu0 0.0
    %884 = vmatpush1.msra.mxu0 %v840
    %885 = vmatprep.subr.mxu0 0.0
    %886 = vmatpush1.msra.mxu0 %v841
    %887 = vmatprep.subr.mxu0 0.0
    %888 = vmatpush1.msra.mxu0 %v842
    %889 = vmatprep.subr.mxu0 0.0
    %890 = vmatpush1.msra.mxu0 %v843
    %891 = vmatprep.subr.mxu0 0.0
    %892 = vmatpush1.msra.mxu0 %v844
    %893 = vmatprep.subr.mxu0 0.0
    %894 = vmatpush1.msra.mxu0 %v845
    %895 = vmatprep.subr.mxu0 0.0
    %896 = vmatpush1.msra.mxu0 %v846
    %897 = vmatprep.subr.mxu0 0.0
    %898 = vmatpush1.msra.mxu0 %v847
    %899 = vmatprep.subr.mxu0 0.0
    %900 = vmatpush1.msra.mxu0 %v848
    %901 = vmatprep.subr.mxu0 0.0
    %902 = vmatpush1.msra.mxu0 %v849
    %903 = vmatprep.subr.mxu0 0.0
    %904 = vmatpush1.msra.mxu0 %v850
    %905 = vmatprep.subr.mxu0 0.0
    %906 = vmatpush1.msra.mxu0 %v851
    %907 = vmatprep.subr.mxu0 0.0
    %908 = vmatpush1.msra.mxu0 0.0
    %909 = vmatprep.subr.mxu0 0.0
    %910 = vmatpush1.msra.mxu0 0.0
    %911 = vmatprep.subr.mxu0 0.0
    %912 = vmatpush1.msra.mxu0 0.0
    %913 = vmatprep.subr.mxu0 0.0
    %914 = vmatpush1.msra.mxu0 0.0
    %915 = vmatprep.subr.mxu0 0.0
    %916 = vmatpush1.msra.mxu0 0.0
    %917 = vmatprep.subr.mxu0 0.0
    %918 = vmatpush1.msra.mxu0 0.0
    %919 = vmatprep.subr.mxu0 0.0
    %920 = vmatpush1.msra.mxu0 0.0
    %921 = vmatprep.subr.mxu0 0.0
    %922 = vmatpush1.msra.mxu0 0.0
    %923 = vmatprep.subr.mxu0 0.0
    %924 = vmatpush1.msra.mxu0 0.0
    %925 = vmatprep.subr.mxu0 0.0
    %926 = vmatpush1.msra.mxu0 0.0
    %927 = vmatprep.subr.mxu0 0.0
    %928 = vmatpush1.msra.mxu0 0.0
    %929 = vmatprep.subr.mxu0 0.0
    %930 = vmatpush1.msra.mxu0 0.0
    %931 = vmatprep.subr.mxu0 0.0
    %932 = vmatpush1.msra.mxu0 0.0
    %933 = vmatprep.subr.mxu0 0.0
    %934 = vmatpush1.msra.mxu0 0.0
    %935 = vmatprep.subr.mxu0 0.0
    %936 = vmatpush1.msra.mxu0 0.0
    %937 = vmatprep.subr.mxu0 0.0
    %938 = vmatpush1.msra.mxu0 0.0
    %939 = vmatprep.mubr.f32.mxu0 0.0
    %940 = vmatmul.mubr.f32.gmra.mrb[0].mxu0 %v861
    %v941 = vpop.f32.mrb[0].mxu0
    %v942 = vadd.f32 0.0, %v941
    %v943 = vpop.f32.mrb[0].mxu0
    %944 = vdwg.mxu0
    %v945 = vmul.f32 %v942, 0.001953125
    %946 = vmatprep.subr.mxu0 0.0
    %947 = vmatpush1.msra.mxu0 %v836
    %948 = vmatprep.subr.mxu0 0.0
    %949 = vmatpush1.msra.mxu0 %v837
    %950 = vmatprep.subr.mxu0 0.0
    %951 = vmatpush1.msra.mxu0 %v838
    %952 = vmatprep.subr.mxu0 0.0
    %953 = vmatpush1.msra.mxu0 %v839
    %954 = vmatprep.subr.mxu0 0.0
    %955 = vmatpush1.msra.mxu0 %v840
    %956 = vmatprep.subr.mxu0 0.0
    %957 = vmatpush1.msra.mxu0 %v841
    %958 = vmatprep.subr.mxu0 0.0
    %959 = vmatpush1.msra.mxu0 %v842
    %960 = vmatprep.subr.mxu0 0.0
    %961 = vmatpush1.msra.mxu0 %v843
    %962 = vmatprep.subr.mxu0 0.0
    %963 = vmatpush1.msra.mxu0 %v844
    %964 = vmatprep.subr.mxu0 0.0
    %965 = vmatpush1.msra.mxu0 %v845
    %966 = vmatprep.subr.mxu0 0.0
    %967 = vmatpush1.msra.mxu0 %v846
    %968 = vmatprep.subr.mxu0 0.0
    %969 = vmatpush1.msra.mxu0 %v847
    %970 = vmatprep.subr.mxu0 0.0
    %971 = vmatpush1.msra.mxu0 %v848
    %972 = vmatprep.subr.mxu0 0.0
    %973 = vmatpush1.msra.mxu0 %v849
    %974 = vmatprep.subr.mxu0 0.0
    %975 = vmatpush1.msra.mxu0 %v850
    %976 = vmatprep.subr.mxu0 0.0
    %977 = vmatpush1.msra.mxu0 %v851
    %978 = vmatprep.subr.mxu0 0.0
    %979 = vmatpush1.msra.mxu0 0.0
    %980 = vmatprep.subr.mxu0 0.0
    %981 = vmatpush1.msra.mxu0 0.0
    %982 = vmatprep.subr.mxu0 0.0
    %983 = vmatpush1.msra.mxu0 0.0
    %984 = vmatprep.subr.mxu0 0.0
    %985 = vmatpush1.msra.mxu0 0.0
    %986 = vmatprep.subr.mxu0 0.0
    %987 = vmatpush1.msra.mxu0 0.0
    %988 = vmatprep.subr.mxu0 0.0
    %989 = vmatpush1.msra.mxu0 0.0
    %990 = vmatprep.subr.mxu0 0.0
    %991 = vmatpush1.msra.mxu0 0.0
    %992 = vmatprep.subr.mxu0 0.0
    %993 = vmatpush1.msra.mxu0 0.0
    %994 = vmatprep.subr.mxu0 0.0
    %995 = vmatpush1.msra.mxu0 0.0
    %996 = vmatprep.subr.mxu0 0.0
    %997 = vmatpush1.msra.mxu0 0.0
    %998 = vmatprep.subr.mxu0 0.0
    %999 = vmatpush1.msra.mxu0 0.0
    %1000 = vmatprep.subr.mxu0 0.0
    %1001 = vmatpush1.msra.mxu0 0.0
    %1002 = vmatprep.subr.mxu0 0.0
    %1003 = vmatpush1.msra.mxu0 0.0
    %1004 = vmatprep.subr.mxu0 0.0
    %1005 = vmatpush1.msra.mxu0 0.0
    %1006 = vmatprep.subr.mxu0 0.0
    %1007 = vmatpush1.msra.mxu0 0.0
    %1008 = vmatprep.subr.mxu0 0.0
    %1009 = vmatpush1.msra.mxu0 0.0
    %1010 = vmatprep.mubr.f32.mxu0 0.0
    %1011 = vmatmul.mubr.f32.gmra.mrb[0].mxu0 %v874
    %v1012 = vpop.f32.mrb[0].mxu0
    %v1013 = vadd.f32 0.0, %v1012
    %v1014 = vpop.f32.mrb[0].mxu0
    %1015 = vdwg.mxu0
    %v1016 = vmul.f32 %v1013, 0.001953125
    %v1017 = vmul.f32 %v945, %v945
    %v1018 = vsub.f32 %v1016, %v1017
    %v1019 = vmax.f32 %v1018, 0.0
    %v1020 = vadd.f32 %v1019, 1e-05
    %v1021 = vrsqrt.pop %v1020
    %v1022 = vmul.f32 %v834, %v1021
    %v1023 = vmul.f32 %v945, %v1022
    %v1024 = vsub.f32 %v835, %v1023
    %vm1025 = vcmask 64512
    %v1027 = vsel %vm1025, %v1022, 0
    %1029 = vmatprep.subr.mxu0 0.0
    %1030 = vmatpush1.msra.mxu0 %v852
    %1031 = vmatprep.subr.mxu0 0.0
    %1032 = vmatpush1.msra.mxu0 0.0
    %1033 = vmatprep.subr.mxu0 0.0
    %1034 = vmatpush1.msra.mxu0 0.0
    %1035 = vmatprep.subr.mxu0 0.0
    %1036 = vmatpush1.msra.mxu0 0.0
    %1037 = vmatprep.subr.mxu0 0.0
    %1038 = vmatpush1.msra.mxu0 0.0
    %1039 = vmatprep.subr.mxu0 0.0
    %1040 = vmatpush1.msra.mxu0 0.0
    %1041 = vmatprep.subr.mxu0 0.0
    %1042 = vmatpush1.msra.mxu0 0.0
    %1043 = vmatprep.subr.mxu0 0.0
    %1044 = vmatpush1.msra.mxu0 0.0
    %1045 = vmatprep.subr.mxu0 0.0
    %1046 = vmatpush1.msra.mxu0 0.0
    %1047 = vmatprep.subr.mxu0 0.0
    %1048 = vmatpush1.msra.mxu0 0.0
    %1049 = vmatprep.subr.mxu0 0.0
    %1050 = vmatpush1.msra.mxu0 0.0
    %1051 = vmatprep.subr.mxu0 0.0
    %1052 = vmatpush1.msra.mxu0 0.0
    %1053 = vmatprep.subr.mxu0 0.0
    %1054 = vmatpush1.msra.mxu0 0.0
    %1055 = vmatprep.subr.mxu0 0.0
    %1056 = vmatpush1.msra.mxu0 0.0
    %1057 = vmatprep.subr.mxu0 0.0
    %1058 = vmatpush1.msra.mxu0 0.0
    %1059 = vmatprep.subr.mxu0 0.0
    %1060 = vmatpush1.msra.mxu0 0.0
    %1061 = vmatprep.subr.mxu0 0.0
    %1062 = vmatpush1.msra.mxu0 0.0
    %1063 = vmatprep.subr.mxu0 0.0
    %1064 = vmatpush1.msra.mxu0 0.0
    %1065 = vmatprep.subr.mxu0 0.0
    %1066 = vmatpush1.msra.mxu0 0.0
    %1067 = vmatprep.subr.mxu0 0.0
    %1068 = vmatpush1.msra.mxu0 0.0
    %1069 = vmatprep.subr.mxu0 0.0
    %1070 = vmatpush1.msra.mxu0 0.0
    %1071 = vmatprep.subr.mxu0 0.0
    %1072 = vmatpush1.msra.mxu0 0.0
    %1073 = vmatprep.subr.mxu0 0.0
    %1074 = vmatpush1.msra.mxu0 0.0
    %1075 = vmatprep.subr.mxu0 0.0
    %1076 = vmatpush1.msra.mxu0 0.0
    %1077 = vmatprep.subr.mxu0 0.0
    %1078 = vmatpush1.msra.mxu0 0.0
    %1079 = vmatprep.subr.mxu0 0.0
    %1080 = vmatpush1.msra.mxu0 0.0
    %1081 = vmatprep.subr.mxu0 0.0
    %1082 = vmatpush1.msra.mxu0 0.0
    %1083 = vmatprep.subr.mxu0 0.0
    %1084 = vmatpush1.msra.mxu0 0.0
    %1085 = vmatprep.subr.mxu0 0.0
    %1086 = vmatpush1.msra.mxu0 0.0
    %1087 = vmatprep.subr.mxu0 0.0
    %1088 = vmatpush1.msra.mxu0 0.0
    %1089 = vmatprep.subr.mxu0 0.0
    %1090 = vmatpush1.msra.mxu0 0.0
    %1091 = vmatprep.subr.mxu0 0.0
    %1092 = vmatpush1.msra.mxu0 0.0
    %1093 = vmatprep.mubr.f32.mxu0 0.0
    %1094 = vmatmul.mubr.f32.gmra.mrb[0].mxu0 %v1027
    %v1095 = vpop.f32.mrb[0].mxu0
    %v1096 = vadd.f32 0.0, %v1095
    %v1097 = vpop.f32.mrb[0].mxu0
    %1098 = vdwg.mxu0
    %v1100 = vsel %vm1025, %v1024, 0
    %1102 = vmatprep.subr.mxu0 0.0
    %1103 = vmatpush1.msra.mxu0 %v852
    %1104 = vmatprep.subr.mxu0 0.0
    %1105 = vmatpush1.msra.mxu0 0.0
    %1106 = vmatprep.subr.mxu0 0.0
    %1107 = vmatpush1.msra.mxu0 0.0
    %1108 = vmatprep.subr.mxu0 0.0
    %1109 = vmatpush1.msra.mxu0 0.0
    %1110 = vmatprep.subr.mxu0 0.0
    %1111 = vmatpush1.msra.mxu0 0.0
    %1112 = vmatprep.subr.mxu0 0.0
    %1113 = vmatpush1.msra.mxu0 0.0
    %1114 = vmatprep.subr.mxu0 0.0
    %1115 = vmatpush1.msra.mxu0 0.0
    %1116 = vmatprep.subr.mxu0 0.0
    %1117 = vmatpush1.msra.mxu0 0.0
    %1118 = vmatprep.subr.mxu0 0.0
    %1119 = vmatpush1.msra.mxu0 0.0
    %1120 = vmatprep.subr.mxu0 0.0
    %1121 = vmatpush1.msra.mxu0 0.0
    %1122 = vmatprep.subr.mxu0 0.0
    %1123 = vmatpush1.msra.mxu0 0.0
    %1124 = vmatprep.subr.mxu0 0.0
    %1125 = vmatpush1.msra.mxu0 0.0
    %1126 = vmatprep.subr.mxu0 0.0
    %1127 = vmatpush1.msra.mxu0 0.0
    %1128 = vmatprep.subr.mxu0 0.0
    %1129 = vmatpush1.msra.mxu0 0.0
    %1130 = vmatprep.subr.mxu0 0.0
    %1131 = vmatpush1.msra.mxu0 0.0
    %1132 = vmatprep.subr.mxu0 0.0
    %1133 = vmatpush1.msra.mxu0 0.0
    %1134 = vmatprep.subr.mxu0 0.0
    %1135 = vmatpush1.msra.mxu0 0.0
    %1136 = vmatprep.subr.mxu0 0.0
    %1137 = vmatpush1.msra.mxu0 0.0
    %1138 = vmatprep.subr.mxu0 0.0
    %1139 = vmatpush1.msra.mxu0 0.0
    %1140 = vmatprep.subr.mxu0 0.0
    %1141 = vmatpush1.msra.mxu0 0.0
    %1142 = vmatprep.subr.mxu0 0.0
    %1143 = vmatpush1.msra.mxu0 0.0
    %1144 = vmatprep.subr.mxu0 0.0
    %1145 = vmatpush1.msra.mxu0 0.0
    %1146 = vmatprep.subr.mxu0 0.0
    %1147 = vmatpush1.msra.mxu0 0.0
    %1148 = vmatprep.subr.mxu0 0.0
    %1149 = vmatpush1.msra.mxu0 0.0
    %1150 = vmatprep.subr.mxu0 0.0
    %1151 = vmatpush1.msra.mxu0 0.0
    %1152 = vmatprep.subr.mxu0 0.0
    %1153 = vmatpush1.msra.mxu0 0.0
    %1154 = vmatprep.subr.mxu0 0.0
    %1155 = vmatpush1.msra.mxu0 0.0
    %1156 = vmatprep.subr.mxu0 0.0
    %1157 = vmatpush1.msra.mxu0 0.0
    %1158 = vmatprep.subr.mxu0 0.0
    %1159 = vmatpush1.msra.mxu0 0.0
    %1160 = vmatprep.subr.mxu0 0.0
    %1161 = vmatpush1.msra.mxu0 0.0
    %1162 = vmatprep.subr.mxu0 0.0
    %1163 = vmatpush1.msra.mxu0 0.0
    %1164 = vmatprep.subr.mxu0 0.0
    %1165 = vmatpush1.msra.mxu0 0.0
    %1166 = vmatprep.mubr.f32.mxu0 0.0
    %1167 = vmatmul.mubr.f32.gmra.mrb[0].mxu0 %v1100
    %v1168 = vpop.f32.mrb[0].mxu0
    %v1169 = vadd.f32 0.0, %v1168
    %v1170 = vpop.f32.mrb[0].mxu0
    %1171 = vdwg.mxu0
    %v1172 = vlaneseq
    %v1173 = vshrl.u32 %v1172, 7
    %v1174 = vsub.s32 0, %v1173
    %v1175 = vrot.slane %v1096, %v1174
    %v1176 = vmul.f32 %v830, %v1175
    %v1177 = vmul.f32 %v831, %v1175
    %v1178 = vmul.f32 %v832, %v1175
    %v1179 = vmul.f32 %v833, %v1175
    %v1180 = vlaneseq
    %v1181 = vshrl.u32 %v1180, 7
    %v1182 = vsub.s32 0, %v1181
    %v1183 = vrot.slane %v1169, %v1182
    %v1184 = vadd.f32 %v1176, %v1183
    %v1185 = vadd.f32 %v1177, %v1183
    %v1186 = vadd.f32 %v1178, %v1183
    %v1187 = vadd.f32 %v1179, %v1183
    %v1188 = vmul.f32 %v1184, 0.5
    %v1189 = vmul.f32 %v1185, 0.5
    %v1190 = vmul.f32 %v1186, 0.5
    %v1191 = vmul.f32 %v1187, 0.5
    %v1192 = vmul.f32 %v1184, 0.044715
    %v1193 = vmul.f32 %v1185, 0.044715
    %v1194 = vmul.f32 %v1186, 0.044715
    %v1195 = vmul.f32 %v1187, 0.044715
    %v1196 = vmul.f32 %v1192, %v1184
    %v1197 = vmul.f32 %v1193, %v1185
    %v1198 = vmul.f32 %v1194, %v1186
    %v1199 = vmul.f32 %v1195, %v1187
    %v1200 = vmul.f32 %v1196, %v1184
    %v1201 = vmul.f32 %v1197, %v1185
    %v1202 = vmul.f32 %v1198, %v1186
    %v1203 = vmul.f32 %v1199, %v1187
    %v1204 = vadd.f32 %v1184, %v1200
    %v1205 = vadd.f32 %v1185, %v1201
    %v1206 = vadd.f32 %v1186, %v1202
    %v1207 = vadd.f32 %v1187, %v1203
    %v1208 = vmul.f32 %v1204, 0.7978846
    %v1209 = vmul.f32 %v1205, 0.7978846
    %v1210 = vmul.f32 %v1206, 0.7978846
    %v1211 = vmul.f32 %v1207, 0.7978846
    %v1212 = vtanh.pop %v1208
    %v1213 = vtanh.pop %v1209
    %v1214 = vtanh.pop %v1210
    %v1215 = vtanh.pop %v1211
    %v1216 = vadd.f32 %v1212, 1.0
    %v1217 = vadd.f32 %v1213, 1.0
    %v1218 = vadd.f32 %v1214, 1.0
    %v1219 = vadd.f32 %v1215, 1.0
    %v1220 = vmul.f32 %v1188, %v1216
    %v1221 = vmul.f32 %v1189, %v1217
    %v1222 = vmul.f32 %v1190, %v1218
    %v1223 = vmul.f32 %v1191, %v1219
    %1224 = vst [vmem:[#allocation3] sm:$0x1] 0.0
    %1225 = vst [vmem:[#allocation3 + $0x18] sm:$0x1] 0.0
    %1226 = vst [vmem:[#allocation3 + $0x11] sm:$0x1] 0.0
    %1227 = vst [vmem:[#allocation3 + $0x29] sm:$0x1] 0.0
    %1228 = vst [vmem:[#allocation3 + $0x1] sm:$0xff] %v1220
    %1229 = vst [vmem:[#allocation3 + $0x9] sm:$0xff] %v1221
    %1230 = vst [vmem:[#allocation3 + $0x19] sm:$0xff] %v1222
    %1231 = vst [vmem:[#allocation3 + $0x21] sm:$0xff] %v1223
    %v1232 = vld [vmem:[%s10] sm:$0x1]
    %v1233 = vld [vmem:[#allocation3] sm:$0xff]
    %v1234 = vld [vmem:[#allocation3 + $0x8] sm:$0xff]
    %v1235 = vld [vmem:[#allocation3 + $0x18] sm:$0xff]
    %v1236 = vld [vmem:[#allocation3 + $0x20] sm:$0xff]
    %v1237 = vld [vmem:[#allocation7] sm:$0xff]
    %v1238 = vld [vmem:[#allocation7 + $0x8] sm:$0xff]
    %v1239 = vld [vmem:[#allocation7 + $0x10] sm:$0xff]
    %v1240 = vld [vmem:[#allocation7 + $0x18] sm:$0xff]
    %v1241 = vld [vmem:[#allocation7 + $0x20] sm:$0xff]
    %v1242 = vld [vmem:[#allocation7 + $0x28] sm:$0xff]
    %v1243 = vld [vmem:[#allocation7 + $0x30] sm:$0xff]
    %v1244 = vld [vmem:[#allocation7 + $0x38] sm:$0xff]
    %v1245 = vld [vmem:[#allocation7 + $0x40] sm:$0xff]
    %v1246 = vld [vmem:[#allocation7 + $0x48] sm:$0xff]
    %v1247 = vld [vmem:[#allocation7 + $0x50] sm:$0xff]
    %v1248 = vld [vmem:[#allocation7 + $0x58] sm:$0xff]
    %v1249 = vld [vmem:[#allocation7 + $0x60] sm:$0xff]
    %v1250 = vld [vmem:[#allocation7 + $0x68] sm:$0xff]
    %v1251 = vld [vmem:[#allocation7 + $0x70] sm:$0xff]
    %v1252 = vld [vmem:[#allocation7 + $0x78] sm:$0xff]
    %v1253 = vld [vmem:[#allocation3 + $0x1] sm:$0xff]
    %v1254 = vld [vmem:[#allocation3 + $0x9] sm:$0xff]
    %v1255 = vld [vmem:[#allocation3 + $0x19] sm:$0xff]
    %v1256 = vld [vmem:[#allocation3 + $0x21] sm:$0xff]
    %s1257 = scalar_lea.vmem [#allocation7], 128
    %v1258 = vld [vmem:[%s1257] sm:$0xff]
    %v1259 = vld [vmem:[%s1257 + $0x8] sm:$0xff]
    %v1260 = vld [vmem:[%s1257 + $0x10] sm:$0xff]
    %v1261 = vld [vmem:[%s1257 + $0x18] sm:$0xff]
    %v1262 = vld [vmem:[%s1257 + $0x20] sm:$0xff]
    %v1263 = vld [vmem:[%s1257 + $0x28] sm:$0xff]
    %v1264 = vld [vmem:[%s1257 + $0x30] sm:$0xff]
    %v1265 = vld [vmem:[%s1257 + $0x38] sm:$0xff]
    %v1266 = vld [vmem:[%s1257 + $0x40] sm:$0xff]
    %v1267 = vld [vmem:[%s1257 + $0x48] sm:$0xff]
    %v1268 = vld [vmem:[%s1257 + $0x50] sm:$0xff]
    %v1269 = vld [vmem:[%s1257 + $0x58] sm:$0xff]
    %v1270 = vld [vmem:[%s1257 + $0x60] sm:$0xff]
    %v1271 = vld [vmem:[%s1257 + $0x68] sm:$0xff]
    %v1272 = vld [vmem:[%s1257 + $0x70] sm:$0xff]
    %v1273 = vld [vmem:[%s1257 + $0x78] sm:$0xff]
    %1274 = vmatprep.subr.mxu0 0.0
    %1275 = vmatpush1.msra.mxu0 %v1258
    %1276 = vmatprep.subr.mxu0 0.0
    %1277 = vmatpush1.msra.mxu0 %v1259
    %1278 = vmatprep.subr.mxu0 0.0
    %1279 = vmatpush1.msra.mxu0 %v1260
    %1280 = vmatprep.subr.mxu0 0.0
    %1281 = vmatpush1.msra.mxu0 %v1261
    %1282 = vmatprep.subr.mxu0 0.0
    %1283 = vmatpush1.msra.mxu0 %v1262
    %1284 = vmatprep.subr.mxu0 0.0
    %1285 = vmatpush1.msra.mxu0 %v1263
    %1286 = vmatprep.subr.mxu0 0.0
    %1287 = vmatpush1.msra.mxu0 %v1264
    %1288 = vmatprep.subr.mxu0 0.0
    %1289 = vmatpush1.msra.mxu0 %v1265
    %1290 = vmatprep.subr.mxu0 0.0
    %1291 = vmatpush1.msra.mxu0 %v1266
    %1292 = vmatprep.subr.mxu0 0.0
    %1293 = vmatpush1.msra.mxu0 %v1267
    %1294 = vmatprep.subr.mxu0 0.0
    %1295 = vmatpush1.msra.mxu0 %v1268
    %1296 = vmatprep.subr.mxu0 0.0
    %1297 = vmatpush1.msra.mxu0 %v1269
    %1298 = vmatprep.subr.mxu0 0.0
    %1299 = vmatpush1.msra.mxu0 %v1270
    %1300 = vmatprep.subr.mxu0 0.0
    %1301 = vmatpush1.msra.mxu0 %v1271
    %1302 = vmatprep.subr.mxu0 0.0
    %1303 = vmatpush1.msra.mxu0 %v1272
    %1304 = vmatprep.subr.mxu0 0.0
    %1305 = vmatpush1.msra.mxu0 %v1273
    %1306 = vmatprep.subr.mxu0 0.0
    %1307 = vmatpush1.msra.mxu0 0.0
    %1308 = vmatprep.subr.mxu0 0.0
    %1309 = vmatpush1.msra.mxu0 0.0
    %1310 = vmatprep.subr.mxu0 0.0
    %1311 = vmatpush1.msra.mxu0 0.0
    %1312 = vmatprep.subr.mxu0 0.0
    %1313 = vmatpush1.msra.mxu0 0.0
    %1314 = vmatprep.subr.mxu0 0.0
    %1315 = vmatpush1.msra.mxu0 0.0
    %1316 = vmatprep.subr.mxu0 0.0
    %1317 = vmatpush1.msra.mxu0 0.0
    %1318 = vmatprep.subr.mxu0 0.0
    %1319 = vmatpush1.msra.mxu0 0.0
    %1320 = vmatprep.subr.mxu0 0.0
    %1321 = vmatpush1.msra.mxu0 0.0
    %1322 = vmatprep.subr.mxu0 0.0
    %1323 = vmatpush1.msra.mxu0 0.0
    %1324 = vmatprep.subr.mxu0 0.0
    %1325 = vmatpush1.msra.mxu0 0.0
    %1326 = vmatprep.subr.mxu0 0.0
    %1327 = vmatpush1.msra.mxu0 0.0
    %1328 = vmatprep.subr.mxu0 0.0
    %1329 = vmatpush1.msra.mxu0 0.0
    %1330 = vmatprep.subr.mxu0 0.0
    %1331 = vmatpush1.msra.mxu0 0.0
    %1332 = vmatprep.subr.mxu0 0.0
    %1333 = vmatpush1.msra.mxu0 0.0
    %1334 = vmatprep.subr.mxu0 0.0
    %1335 = vmatpush1.msra.mxu0 0.0
    %1336 = vmatprep.subr.mxu0 0.0
    %1337 = vmatpush1.msra.mxu0 0.0
    %1338 = vmatprep.mubr.f32.mxu0 0.0
    %1339 = vmatmul.mubr.f32.gmra.mrb[0].mxu0 %v1253
    %v1340 = vpop.f32.mrb[0].mxu0
    %v1341 = vadd.f32 0.0, %v1340
    %v1342 = vpop.f32.mrb[0].mxu0
    %1343 = vmatprep.mubr.f32.mxu0 0.0
    %1344 = vmatmul.mubr.f32.gmra.mrb[0].mxu0 %v1254
    %v1345 = vpop.f32.mrb[0].mxu0
    %v1346 = vadd.f32 0.0, %v1345
    %v1347 = vpop.f32.mrb[0].mxu0
    %1348 = vmatprep.mubr.f32.mxu0 0.0
    %1349 = vmatmul.mubr.f32.gmra.mrb[0].mxu0 %v1255
    %v1350 = vpop.f32.mrb[0].mxu0
    %v1351 = vadd.f32 0.0, %v1350
    %v1352 = vpop.f32.mrb[0].mxu0
    %1353 = vmatprep.mubr.f32.mxu0 0.0
    %1354 = vmatmul.mubr.f32.gmra.mrb[0].mxu0 %v1256
    %v1355 = vpop.f32.mrb[0].mxu0
    %v1356 = vadd.f32 0.0, %v1355
    %v1357 = vpop.f32.mrb[0].mxu0
    %1358 = vdwg.mxu0
    %1359 = vmatprep.subr.mxu0 0.0
    %1360 = vmatpush1.msra.mxu0 %v1237
    %1361 = vmatprep.subr.mxu0 0.0
    %1362 = vmatpush1.msra.mxu0 %v1238
    %1363 = vmatprep.subr.mxu0 0.0
    %1364 = vmatpush1.msra.mxu0 %v1239
    %1365 = vmatprep.subr.mxu0 0.0
    %1366 = vmatpush1.msra.mxu0 %v1240
    %1367 = vmatprep.subr.mxu0 0.0
    %1368 = vmatpush1.msra.mxu0 %v1241
    %1369 = vmatprep.subr.mxu0 0.0
    %1370 = vmatpush1.msra.mxu0 %v1242
    %1371 = vmatprep.subr.mxu0 0.0
    %1372 = vmatpush1.msra.mxu0 %v1243
    %1373 = vmatprep.subr.mxu0 0.0
    %1374 = vmatpush1.msra.mxu0 %v1244
    %1375 = vmatprep.subr.mxu0 0.0
    %1376 = vmatpush1.msra.mxu0 %v1245
    %1377 = vmatprep.subr.mxu0 0.0
    %1378 = vmatpush1.msra.mxu0 %v1246
    %1379 = vmatprep.subr.mxu0 0.0
    %1380 = vmatpush1.msra.mxu0 %v1247
    %1381 = vmatprep.subr.mxu0 0.0
    %1382 = vmatpush1.msra.mxu0 %v1248
    %1383 = vmatprep.subr.mxu0 0.0
    %1384 = vmatpush1.msra.mxu0 %v1249
    %1385 = vmatprep.subr.mxu0 0.0
    %1386 = vmatpush1.msra.mxu0 %v1250
    %1387 = vmatprep.subr.mxu0 0.0
    %1388 = vmatpush1.msra.mxu0 %v1251
    %1389 = vmatprep.subr.mxu0 0.0
    %1390 = vmatpush1.msra.mxu0 %v1252
    %1391 = vmatprep.subr.mxu0 0.0
    %1392 = vmatpush1.msra.mxu0 0.0
    %1393 = vmatprep.subr.mxu0 0.0
    %1394 = vmatpush1.msra.mxu0 0.0
    %1395 = vmatprep.subr.mxu0 0.0
    %1396 = vmatpush1.msra.mxu0 0.0
    %1397 = vmatprep.subr.mxu0 0.0
    %1398 = vmatpush1.msra.mxu0 0.0
    %1399 = vmatprep.subr.mxu0 0.0
    %1400 = vmatpush1.msra.mxu0 0.0
    %1401 = vmatprep.subr.mxu0 0.0
    %1402 = vmatpush1.msra.mxu0 0.0
    %1403 = vmatprep.subr.mxu0 0.0
    %1404 = vmatpush1.msra.mxu0 0.0
    %1405 = vmatprep.subr.mxu0 0.0
    %1406 = vmatpush1.msra.mxu0 0.0
    %1407 = vmatprep.subr.mxu0 0.0
    %1408 = vmatpush1.msra.mxu0 0.0
    %1409 = vmatprep.subr.mxu0 0.0
    %1410 = vmatpush1.msra.mxu0 0.0
    %1411 = vmatprep.subr.mxu0 0.0
    %1412 = vmatpush1.msra.mxu0 0.0
    %1413 = vmatprep.subr.mxu0 0.0
    %1414 = vmatpush1.msra.mxu0 0.0
    %1415 = vmatprep.subr.mxu0 0.0
    %1416 = vmatpush1.msra.mxu0 0.0
    %1417 = vmatprep.subr.mxu0 0.0
    %1418 = vmatpush1.msra.mxu0 0.0
    %1419 = vmatprep.subr.mxu0 0.0
    %1420 = vmatpush1.msra.mxu0 0.0
    %1421 = vmatprep.subr.mxu0 0.0
    %1422 = vmatpush1.msra.mxu0 0.0
    %1423 = vmatprep.mubr.f32.mxu0 0.0
    %1424 = vmatmul.mubr.f32.gmra.mrb[0].mxu0 %v1233
    %v1425 = vpop.f32.mrb[0].mxu0
    %v1426 = vadd.f32 %v1341, %v1425
    %v1427 = vpop.f32.mrb[0].mxu0
    %1428 = vmatprep.mubr.f32.mxu0 0.0
    %1429 = vmatmul.mubr.f32.gmra.mrb[0].mxu0 %v1234
    %v1430 = vpop.f32.mrb[0].mxu0
    %v1431 = vadd.f32 %v1346, %v1430
    %v1432 = vpop.f32.mrb[0].mxu0
    %1433 = vmatprep.mubr.f32.mxu0 0.0
    %1434 = vmatmul.mubr.f32.gmra.mrb[0].mxu0 %v1235
    %v1435 = vpop.f32.mrb[0].mxu0
    %v1436 = vadd.f32 %v1351, %v1435
    %v1437 = vpop.f32.mrb[0].mxu0
    %1438 = vmatprep.mubr.f32.mxu0 0.0
    %1439 = vmatmul.mubr.f32.gmra.mrb[0].mxu0 %v1236
    %v1440 = vpop.f32.mrb[0].mxu0
    %v1441 = vadd.f32 %v1356, %v1440
    %v1442 = vpop.f32.mrb[0].mxu0
    %1443 = vdwg.mxu0
    %v1444 = vld [vmem:[#allocation3 + $0x2] sm:$0xff]
    %v1445 = vld [vmem:[#allocation3 + $0xa] sm:$0xff]
    %v1446 = vld [vmem:[#allocation3 + $0x1a] sm:$0xff]
    %v1447 = vld [vmem:[#allocation3 + $0x22] sm:$0xff]
    %s1448 = scalar_lea.vmem [#allocation7], 256
    %v1449 = vld [vmem:[%s1448] sm:$0xff]
    %v1450 = vld [vmem:[%s1448 + $0x8] sm:$0xff]
    %v1451 = vld [vmem:[%s1448 + $0x10] sm:$0xff]
    %v1452 = vld [vmem:[%s1448 + $0x18] sm:$0xff]
    %v1453 = vld [vmem:[%s1448 + $0x20] sm:$0xff]
    %v1454 = vld [vmem:[%s1448 + $0x28] sm:$0xff]
    %v1455 = vld [vmem:[%s1448 + $0x30] sm:$0xff]
    %v1456 = vld [vmem:[%s1448 + $0x38] sm:$0xff]
    %v1457 = vld [vmem:[%s1448 + $0x40] sm:$0xff]
    %v1458 = vld [vmem:[%s1448 + $0x48] sm:$0xff]
    %v1459 = vld [vmem:[%s1448 + $0x50] sm:$0xff]
    %v1460 = vld [vmem:[%s1448 + $0x58] sm:$0xff]
    %v1461 = vld [vmem:[%s1448 + $0x60] sm:$0xff]
    %v1462 = vld [vmem:[%s1448 + $0x68] sm:$0xff]
    %v1463 = vld [vmem:[%s1448 + $0x70] sm:$0xff]
    %v1464 = vld [vmem:[%s1448 + $0x78] sm:$0xff]
    %1465 = vmatprep.subr.mxu0 0.0
    %1466 = vmatpush1.msra.mxu0 %v1449
    %1467 = vmatprep.subr.mxu0 0.0
    %1468 = vmatpush1.msra.mxu0 %v1450
    %1469 = vmatprep.subr.mxu0 0.0
    %1470 = vmatpush1.msra.mxu0 %v1451
    %1471 = vmatprep.subr.mxu0 0.0
    %1472 = vmatpush1.msra.mxu0 %v1452
    %1473 = vmatprep.subr.mxu0 0.0
    %1474 = vmatpush1.msra.mxu0 %v1453
    %1475 = vmatprep.subr.mxu0 0.0
    %1476 = vmatpush1.msra.mxu0 %v1454
    %1477 = vmatprep.subr.mxu0 0.0
    %1478 = vmatpush1.msra.mxu0 %v1455
    %1479 = vmatprep.subr.mxu0 0.0
    %1480 = vmatpush1.msra.mxu0 %v1456
    %1481 = vmatprep.subr.mxu0 0.0
    %1482 = vmatpush1.msra.mxu0 %v1457
    %1483 = vmatprep.subr.mxu0 0.0
    %1484 = vmatpush1.msra.mxu0 %v1458
    %1485 = vmatprep.subr.mxu0 0.0
    %1486 = vmatpush1.msra.mxu0 %v1459
    %1487 = vmatprep.subr.mxu0 0.0
    %1488 = vmatpush1.msra.mxu0 %v1460
    %1489 = vmatprep.subr.mxu0 0.0
    %1490 = vmatpush1.msra.mxu0 %v1461
    %1491 = vmatprep.subr.mxu0 0.0
    %1492 = vmatpush1.msra.mxu0 %v1462
    %1493 = vmatprep.subr.mxu0 0.0
    %1494 = vmatpush1.msra.mxu0 %v1463
    %1495 = vmatprep.subr.mxu0 0.0
    %1496 = vmatpush1.msra.mxu0 %v1464
    %1497 = vmatprep.subr.mxu0 0.0
    %1498 = vmatpush1.msra.mxu0 0.0
    %1499 = vmatprep.subr.mxu0 0.0
    %1500 = vmatpush1.msra.mxu0 0.0
    %1501 = vmatprep.subr.mxu0 0.0
    %1502 = vmatpush1.msra.mxu0 0.0
    %1503 = vmatprep.subr.mxu0 0.0
    %1504 = vmatpush1.msra.mxu0 0.0
    %1505 = vmatprep.subr.mxu0 0.0
    %1506 = vmatpush1.msra.mxu0 0.0
    %1507 = vmatprep.subr.mxu0 0.0
    %1508 = vmatpush1.msra.mxu0 0.0
    %1509 = vmatprep.subr.mxu0 0.0
    %1510 = vmatpush1.msra.mxu0 0.0
    %1511 = vmatprep.subr.mxu0 0.0
    %1512 = vmatpush1.msra.mxu0 0.0
    %1513 = vmatprep.subr.mxu0 0.0
    %1514 = vmatpush1.msra.mxu0 0.0
    %1515 = vmatprep.subr.mxu0 0.0
    %1516 = vmatpush1.msra.mxu0 0.0
    %1517 = vmatprep.subr.mxu0 0.0
    %1518 = vmatpush1.msra.mxu0 0.0
    %1519 = vmatprep.subr.mxu0 0.0
    %1520 = vmatpush1.msra.mxu0 0.0
    %1521 = vmatprep.subr.mxu0 0.0
    %1522 = vmatpush1.msra.mxu0 0.0
    %1523 = vmatprep.subr.mxu0 0.0
    %1524 = vmatpush1.msra.mxu0 0.0
    %1525 = vmatprep.subr.mxu0 0.0
    %1526 = vmatpush1.msra.mxu0 0.0
    %1527 = vmatprep.subr.mxu0 0.0
    %1528 = vmatpush1.msra.mxu0 0.0
    %1529 = vmatprep.mubr.f32.mxu0 0.0
    %1530 = vmatmul.mubr.f32.gmra.mrb[0].mxu0 %v1444
    %v1531 = vpop.f32.mrb[0].mxu0
    %v1532 = vadd.f32 0.0, %v1531
    %v1533 = vpop.f32.mrb[0].mxu0
    %1534 = vmatprep.mubr.f32.mxu0 0.0
    %1535 = vmatmul.mubr.f32.gmra.mrb[0].mxu0 %v1445
    %v1536 = vpop.f32.mrb[0].mxu0
    %v1537 = vadd.f32 0.0, %v1536
    %v1538 = vpop.f32.mrb[0].mxu0
    %1539 = vmatprep.mubr.f32.mxu0 0.0
    %1540 = vmatmul.mubr.f32.gmra.mrb[0].mxu0 %v1446
    %v1541 = vpop.f32.mrb[0].mxu0
    %v1542 = vadd.f32 0.0, %v1541
    %v1543 = vpop.f32.mrb[0].mxu0
    %1544 = vmatprep.mubr.f32.mxu0 0.0
    %1545 = vmatmul.mubr.f32.gmra.mrb[0].mxu0 %v1447
    %v1546 = vpop.f32.mrb[0].mxu0
    %v1547 = vadd.f32 0.0, %v1546
    %v1548 = vpop.f32.mrb[0].mxu0
    %1549 = vdwg.mxu0
    %v1550 = vadd.f32 %v1426, %v1532
    %v1551 = vadd.f32 %v1431, %v1537
    %v1552 = vadd.f32 %v1436, %v1542
    %v1553 = vadd.f32 %v1441, %v1547
    %v1555 = vlaneseq
    %v1556 = vshrl.u32 %v1555, 7
    %v1557 = vsub.s32 0, %v1556
    %v1558 = vrot.slane %v1232, %v1557
    %v1560 = vadd.f32 %v1550, %v1558
    %v1561 = vadd.f32 %v1551, %v1558
    %v1562 = vadd.f32 %v1552, %v1558
    %v1563 = vadd.f32 %v1553, %v1558
    %v1564 = vld [vmem:[%s11] sm:$0x1]
    %v1565 = vld [vmem:[%s12] sm:$0x1]
    %v1566 = vld [vmem:[%s19] sm:$0xff]
    %v1567 = vld [vmem:[%s19 + $0x8] sm:$0xff]
    %v1568 = vld [vmem:[%s19 + $0x10] sm:$0xff]
    %v1569 = vld [vmem:[%s19 + $0x18] sm:$0xff]
    %v1570 = vld [vmem:[%s19 + $0x20] sm:$0xff]
    %v1571 = vld [vmem:[%s19 + $0x28] sm:$0xff]
    %v1572 = vld [vmem:[%s19 + $0x30] sm:$0xff]
    %v1573 = vld [vmem:[%s19 + $0x38] sm:$0xff]
    %v1574 = vld [vmem:[%s19 + $0x40] sm:$0xff]
    %v1575 = vld [vmem:[%s19 + $0x48] sm:$0xff]
    %v1576 = vld [vmem:[%s19 + $0x50] sm:$0xff]
    %v1577 = vld [vmem:[%s19 + $0x58] sm:$0xff]
    %v1578 = vld [vmem:[%s19 + $0x60] sm:$0xff]
    %v1579 = vld [vmem:[%s19 + $0x68] sm:$0xff]
    %v1580 = vld [vmem:[%s19 + $0x70] sm:$0xff]
    %v1581 = vld [vmem:[%s19 + $0x78] sm:$0xff]
    %v1582 = vld [vmem:[%s20] sm:$0xff]
    %v1583 = vadd.f32 %v1560, %v1561
    %v1584 = vadd.f32 %v1583, %v1562
    %v1585 = vadd.f32 %v1584, %v1563
    %v1586 = vrot.slane %v1585, 4
    %v1587 = vadd.f32 %v1585, %v1586
    %v1588 = vrot.slane %v1587, 2
    %v1589 = vadd.f32 %v1587, %v1588
    %v1590 = vrot.slane %v1589, 1
    %v1591 = vadd.f32 %v1589, %v1590
    %v1592 = vmul.f32 %v1560, %v1560
    %v1593 = vmul.f32 %v1561, %v1561
    %v1594 = vmul.f32 %v1562, %v1562
    %v1595 = vmul.f32 %v1563, %v1563
    %v1596 = vadd.f32 %v1592, %v1593
    %v1597 = vadd.f32 %v1596, %v1594
    %v1598 = vadd.f32 %v1597, %v1595
    %v1599 = vrot.slane %v1598, 4
    %v1600 = vadd.f32 %v1598, %v1599
    %v1601 = vrot.slane %v1600, 2
    %v1602 = vadd.f32 %v1600, %v1601
    %v1603 = vrot.slane %v1602, 1
    %v1604 = vadd.f32 %v1602, %v1603
    %1605 = vmatprep.subr.mxu0 0.0
    %1606 = vmatpush1.msra.mxu0 %v1566
    %1607 = vmatprep.subr.mxu0 0.0
    %1608 = vmatpush1.msra.mxu0 %v1567
    %1609 = vmatprep.subr.mxu0 0.0
    %1610 = vmatpush1.msra.mxu0 %v1568
    %1611 = vmatprep.subr.mxu0 0.0
    %1612 = vmatpush1.msra.mxu0 %v1569
    %1613 = vmatprep.subr.mxu0 0.0
    %1614 = vmatpush1.msra.mxu0 %v1570
    %1615 = vmatprep.subr.mxu0 0.0
    %1616 = vmatpush1.msra.mxu0 %v1571
    %1617 = vmatprep.subr.mxu0 0.0
    %1618 = vmatpush1.msra.mxu0 %v1572
    %1619 = vmatprep.subr.mxu0 0.0
    %1620 = vmatpush1.msra.mxu0 %v1573
    %1621 = vmatprep.subr.mxu0 0.0
    %1622 = vmatpush1.msra.mxu0 %v1574
    %1623 = vmatprep.subr.mxu0 0.0
    %1624 = vmatpush1.msra.mxu0 %v1575
    %1625 = vmatprep.subr.mxu0 0.0
    %1626 = vmatpush1.msra.mxu0 %v1576
    %1627 = vmatprep.subr.mxu0 0.0
    %1628 = vmatpush1.msra.mxu0 %v1577
    %1629 = vmatprep.subr.mxu0 0.0
    %1630 = vmatpush1.msra.mxu0 %v1578
    %1631 = vmatprep.subr.mxu0 0.0
    %1632 = vmatpush1.msra.mxu0 %v1579
    %1633 = vmatprep.subr.mxu0 0.0
    %1634 = vmatpush1.msra.mxu0 %v1580
    %1635 = vmatprep.subr.mxu0 0.0
    %1636 = vmatpush1.msra.mxu0 %v1581
    %1637 = vmatprep.subr.mxu0 0.0
    %1638 = vmatpush1.msra.mxu0 0.0
    %1639 = vmatprep.subr.mxu0 0.0
    %1640 = vmatpush1.msra.mxu0 0.0
    %1641 = vmatprep.subr.mxu0 0.0
    %1642 = vmatpush1.msra.mxu0 0.0
    %1643 = vmatprep.subr.mxu0 0.0
    %1644 = vmatpush1.msra.mxu0 0.0
    %1645 = vmatprep.subr.mxu0 0.0
    %1646 = vmatpush1.msra.mxu0 0.0
    %1647 = vmatprep.subr.mxu0 0.0
    %1648 = vmatpush1.msra.mxu0 0.0
    %1649 = vmatprep.subr.mxu0 0.0
    %1650 = vmatpush1.msra.mxu0 0.0
    %1651 = vmatprep.subr.mxu0 0.0
    %1652 = vmatpush1.msra.mxu0 0.0
    %1653 = vmatprep.subr.mxu0 0.0
    %1654 = vmatpush1.msra.mxu0 0.0
    %1655 = vmatprep.subr.mxu0 0.0
    %1656 = vmatpush1.msra.mxu0 0.0
    %1657 = vmatprep.subr.mxu0 0.0
    %1658 = vmatpush1.msra.mxu0 0.0
    %1659 = vmatprep.subr.mxu0 0.0
    %1660 = vmatpush1.msra.mxu0 0.0
    %1661 = vmatprep.subr.mxu0 0.0
    %1662 = vmatpush1.msra.mxu0 0.0
    %1663 = vmatprep.subr.mxu0 0.0
    %1664 = vmatpush1.msra.mxu0 0.0
    %1665 = vmatprep.subr.mxu0 0.0
    %1666 = vmatpush1.msra.mxu0 0.0
    %1667 = vmatprep.subr.mxu0 0.0
    %1668 = vmatpush1.msra.mxu0 0.0
    %1669 = vmatprep.mubr.f32.mxu0 0.0
    %1670 = vmatmul.mubr.f32.gmra.mrb[0].mxu0 %v1591
    %v1671 = vpop.f32.mrb[0].mxu0
    %v1672 = vadd.f32 0.0, %v1671
    %v1673 = vpop.f32.mrb[0].mxu0
    %1674 = vdwg.mxu0
    %v1675 = vmul.f32 %v1672, 0.001953125
    %1676 = vmatprep.subr.mxu0 0.0
    %1677 = vmatpush1.msra.mxu0 %v1566
    %1678 = vmatprep.subr.mxu0 0.0
    %1679 = vmatpush1.msra.mxu0 %v1567
    %1680 = vmatprep.subr.mxu0 0.0
    %1681 = vmatpush1.msra.mxu0 %v1568
    %1682 = vmatprep.subr.mxu0 0.0
    %1683 = vmatpush1.msra.mxu0 %v1569
    %1684 = vmatprep.subr.mxu0 0.0
    %1685 = vmatpush1.msra.mxu0 %v1570
    %1686 = vmatprep.subr.mxu0 0.0
    %1687 = vmatpush1.msra.mxu0 %v1571
    %1688 = vmatprep.subr.mxu0 0.0
    %1689 = vmatpush1.msra.mxu0 %v1572
    %1690 = vmatprep.subr.mxu0 0.0
    %1691 = vmatpush1.msra.mxu0 %v1573
    %1692 = vmatprep.subr.mxu0 0.0
    %1693 = vmatpush1.msra.mxu0 %v1574
    %1694 = vmatprep.subr.mxu0 0.0
    %1695 = vmatpush1.msra.mxu0 %v1575
    %1696 = vmatprep.subr.mxu0 0.0
    %1697 = vmatpush1.msra.mxu0 %v1576
    %1698 = vmatprep.subr.mxu0 0.0
    %1699 = vmatpush1.msra.mxu0 %v1577
    %1700 = vmatprep.subr.mxu0 0.0
    %1701 = vmatpush1.msra.mxu0 %v1578
    %1702 = vmatprep.subr.mxu0 0.0
    %1703 = vmatpush1.msra.mxu0 %v1579
    %1704 = vmatprep.subr.mxu0 0.0
    %1705 = vmatpush1.msra.mxu0 %v1580
    %1706 = vmatprep.subr.mxu0 0.0
    %1707 = vmatpush1.msra.mxu0 %v1581
    %1708 = vmatprep.subr.mxu0 0.0
    %1709 = vmatpush1.msra.mxu0 0.0
    %1710 = vmatprep.subr.mxu0 0.0
    %1711 = vmatpush1.msra.mxu0 0.0
    %1712 = vmatprep.subr.mxu0 0.0
    %1713 = vmatpush1.msra.mxu0 0.0
    %1714 = vmatprep.subr.mxu0 0.0
    %1715 = vmatpush1.msra.mxu0 0.0
    %1716 = vmatprep.subr.mxu0 0.0
    %1717 = vmatpush1.msra.mxu0 0.0
    %1718 = vmatprep.subr.mxu0 0.0
    %1719 = vmatpush1.msra.mxu0 0.0
    %1720 = vmatprep.subr.mxu0 0.0
    %1721 = vmatpush1.msra.mxu0 0.0
    %1722 = vmatprep.subr.mxu0 0.0
    %1723 = vmatpush1.msra.mxu0 0.0
    %1724 = vmatprep.subr.mxu0 0.0
    %1725 = vmatpush1.msra.mxu0 0.0
    %1726 = vmatprep.subr.mxu0 0.0
    %1727 = vmatpush1.msra.mxu0 0.0
    %1728 = vmatprep.subr.mxu0 0.0
    %1729 = vmatpush1.msra.mxu0 0.0
    %1730 = vmatprep.subr.mxu0 0.0
    %1731 = vmatpush1.msra.mxu0 0.0
    %1732 = vmatprep.subr.mxu0 0.0
    %1733 = vmatpush1.msra.mxu0 0.0
    %1734 = vmatprep.subr.mxu0 0.0
    %1735 = vmatpush1.msra.mxu0 0.0
    %1736 = vmatprep.subr.mxu0 0.0
    %1737 = vmatpush1.msra.mxu0 0.0
    %1738 = vmatprep.subr.mxu0 0.0
    %1739 = vmatpush1.msra.mxu0 0.0
    %1740 = vmatprep.mubr.f32.mxu0 0.0
    %1741 = vmatmul.mubr.f32.gmra.mrb[0].mxu0 %v1604
    %v1742 = vpop.f32.mrb[0].mxu0
    %v1743 = vadd.f32 0.0, %v1742
    %v1744 = vpop.f32.mrb[0].mxu0
    %1745 = vdwg.mxu0
    %v1746 = vmul.f32 %v1743, 0.001953125
    %v1747 = vmul.f32 %v1675, %v1675
    %v1748 = vsub.f32 %v1746, %v1747
    %v1749 = vmax.f32 %v1748, 0.0
    %v1750 = vadd.f32 %v1749, 1e-05
    %v1751 = vrsqrt.pop %v1750
    %v1752 = vmul.f32 %v1564, %v1751
    %v1753 = vmul.f32 %v1675, %v1752
    %v1754 = vsub.f32 %v1565, %v1753
    %v1756 = vsel %vm1025, %v1752, 0
    %1758 = vmatprep.subr.mxu0 0.0
    %1759 = vmatpush1.msra.mxu0 %v1582
    %1760 = vmatprep.subr.mxu0 0.0
    %1761 = vmatpush1.msra.mxu0 0.0
    %1762 = vmatprep.subr.mxu0 0.0
    %1763 = vmatpush1.msra.mxu0 0.0
    %1764 = vmatprep.subr.mxu0 0.0
    %1765 = vmatpush1.msra.mxu0 0.0
    %1766 = vmatprep.subr.mxu0 0.0
    %1767 = vmatpush1.msra.mxu0 0.0
    %1768 = vmatprep.subr.mxu0 0.0
    %1769 = vmatpush1.msra.mxu0 0.0
    %1770 = vmatprep.subr.mxu0 0.0
    %1771 = vmatpush1.msra.mxu0 0.0
    %1772 = vmatprep.subr.mxu0 0.0
    %1773 = vmatpush1.msra.mxu0 0.0
    %1774 = vmatprep.subr.mxu0 0.0
    %1775 = vmatpush1.msra.mxu0 0.0
    %1776 = vmatprep.subr.mxu0 0.0
    %1777 = vmatpush1.msra.mxu0 0.0
    %1778 = vmatprep.subr.mxu0 0.0
    %1779 = vmatpush1.msra.mxu0 0.0
    %1780 = vmatprep.subr.mxu0 0.0
    %1781 = vmatpush1.msra.mxu0 0.0
    %1782 = vmatprep.subr.mxu0 0.0
    %1783 = vmatpush1.msra.mxu0 0.0
    %1784 = vmatprep.subr.mxu0 0.0
    %1785 = vmatpush1.msra.mxu0 0.0
    %1786 = vmatprep.subr.mxu0 0.0
    %1787 = vmatpush1.msra.mxu0 0.0
    %1788 = vmatprep.subr.mxu0 0.0
    %1789 = vmatpush1.msra.mxu0 0.0
    %1790 = vmatprep.subr.mxu0 0.0
    %1791 = vmatpush1.msra.mxu0 0.0
    %1792 = vmatprep.subr.mxu0 0.0
    %1793 = vmatpush1.msra.mxu0 0.0
    %1794 = vmatprep.subr.mxu0 0.0
    %1795 = vmatpush1.msra.mxu0 0.0
    %1796 = vmatprep.subr.mxu0 0.0
    %1797 = vmatpush1.msra.mxu0 0.0
    %1798 = vmatprep.subr.mxu0 0.0
    %1799 = vmatpush1.msra.mxu0 0.0
    %1800 = vmatprep.subr.mxu0 0.0
    %1801 = vmatpush1.msra.mxu0 0.0
    %1802 = vmatprep.subr.mxu0 0.0
    %1803 = vmatpush1.msra.mxu0 0.0
    %1804 = vmatprep.subr.mxu0 0.0
    %1805 = vmatpush1.msra.mxu0 0.0
    %1806 = vmatprep.subr.mxu0 0.0
    %1807 = vmatpush1.msra.mxu0 0.0
    %1808 = vmatprep.subr.mxu0 0.0
    %1809 = vmatpush1.msra.mxu0 0.0
    %1810 = vmatprep.subr.mxu0 0.0
    %1811 = vmatpush1.msra.mxu0 0.0
    %1812 = vmatprep.subr.mxu0 0.0
    %1813 = vmatpush1.msra.mxu0 0.0
    %1814 = vmatprep.subr.mxu0 0.0
    %1815 = vmatpush1.msra.mxu0 0.0
    %1816 = vmatprep.subr.mxu0 0.0
    %1817 = vmatpush1.msra.mxu0 0.0
    %1818 = vmatprep.subr.mxu0 0.0
    %1819 = vmatpush1.msra.mxu0 0.0
    %1820 = vmatprep.subr.mxu0 0.0
    %1821 = vmatpush1.msra.mxu0 0.0
    %1822 = vmatprep.mubr.f32.mxu0 0.0
    %1823 = vmatmul.mubr.f32.gmra.mrb[0].mxu0 %v1756
    %v1824 = vpop.f32.mrb[0].mxu0
    %v1825 = vadd.f32 0.0, %v1824
    %v1826 = vpop.f32.mrb[0].mxu0
    %1827 = vdwg.mxu0
    %v1829 = vsel %vm1025, %v1754, 0
    %1831 = vmatprep.subr.mxu0 0.0
    %1832 = vmatpush1.msra.mxu0 %v1582
    %1833 = vmatprep.subr.mxu0 0.0
    %1834 = vmatpush1.msra.mxu0 0.0
    %1835 = vmatprep.subr.mxu0 0.0
    %1836 = vmatpush1.msra.mxu0 0.0
    %1837 = vmatprep.subr.mxu0 0.0
    %1838 = vmatpush1.msra.mxu0 0.0
    %1839 = vmatprep.subr.mxu0 0.0
    %1840 = vmatpush1.msra.mxu0 0.0
    %1841 = vmatprep.subr.mxu0 0.0
    %1842 = vmatpush1.msra.mxu0 0.0
    %1843 = vmatprep.subr.mxu0 0.0
    %1844 = vmatpush1.msra.mxu0 0.0
    %1845 = vmatprep.subr.mxu0 0.0
    %1846 = vmatpush1.msra.mxu0 0.0
    %1847 = vmatprep.subr.mxu0 0.0
    %1848 = vmatpush1.msra.mxu0 0.0
    %1849 = vmatprep.subr.mxu0 0.0
    %1850 = vmatpush1.msra.mxu0 0.0
    %1851 = vmatprep.subr.mxu0 0.0
    %1852 = vmatpush1.msra.mxu0 0.0
    %1853 = vmatprep.subr.mxu0 0.0
    %1854 = vmatpush1.msra.mxu0 0.0
    %1855 = vmatprep.subr.mxu0 0.0
    %1856 = vmatpush1.msra.mxu0 0.0
    %1857 = vmatprep.subr.mxu0 0.0
    %1858 = vmatpush1.msra.mxu0 0.0
    %1859 = vmatprep.subr.mxu0 0.0
    %1860 = vmatpush1.msra.mxu0 0.0
    %1861 = vmatprep.subr.mxu0 0.0
    %1862 = vmatpush1.msra.mxu0 0.0
    %1863 = vmatprep.subr.mxu0 0.0
    %1864 = vmatpush1.msra.mxu0 0.0
    %1865 = vmatprep.subr.mxu0 0.0
    %1866 = vmatpush1.msra.mxu0 0.0
    %1867 = vmatprep.subr.mxu0 0.0
    %1868 = vmatpush1.msra.mxu0 0.0
    %1869 = vmatprep.subr.mxu0 0.0
    %1870 = vmatpush1.msra.mxu0 0.0
    %1871 = vmatprep.subr.mxu0 0.0
    %1872 = vmatpush1.msra.mxu0 0.0
    %1873 = vmatprep.subr.mxu0 0.0
    %1874 = vmatpush1.msra.mxu0 0.0
    %1875 = vmatprep.subr.mxu0 0.0
    %1876 = vmatpush1.msra.mxu0 0.0
    %1877 = vmatprep.subr.mxu0 0.0
    %1878 = vmatpush1.msra.mxu0 0.0
    %1879 = vmatprep.subr.mxu0 0.0
    %1880 = vmatpush1.msra.mxu0 0.0
    %1881 = vmatprep.subr.mxu0 0.0
    %1882 = vmatpush1.msra.mxu0 0.0
    %1883 = vmatprep.subr.mxu0 0.0
    %1884 = vmatpush1.msra.mxu0 0.0
    %1885 = vmatprep.subr.mxu0 0.0
    %1886 = vmatpush1.msra.mxu0 0.0
    %1887 = vmatprep.subr.mxu0 0.0
    %1888 = vmatpush1.msra.mxu0 0.0
    %1889 = vmatprep.subr.mxu0 0.0
    %1890 = vmatpush1.msra.mxu0 0.0
    %1891 = vmatprep.subr.mxu0 0.0
    %1892 = vmatpush1.msra.mxu0 0.0
    %1893 = vmatprep.subr.mxu0 0.0
    %1894 = vmatpush1.msra.mxu0 0.0
    %1895 = vmatprep.mubr.f32.mxu0 0.0
    %1896 = vmatmul.mubr.f32.gmra.mrb[0].mxu0 %v1829
    %v1897 = vpop.f32.mrb[0].mxu0
    %v1898 = vadd.f32 0.0, %v1897
    %v1899 = vpop.f32.mrb[0].mxu0
    %1900 = vdwg.mxu0
    %v1901 = vlaneseq
    %v1902 = vshrl.u32 %v1901, 7
    %v1903 = vsub.s32 0, %v1902
    %v1904 = vrot.slane %v1825, %v1903
    %v1905 = vmul.f32 %v1560, %v1904
    %v1906 = vmul.f32 %v1561, %v1904
    %v1907 = vmul.f32 %v1562, %v1904
    %v1908 = vmul.f32 %v1563, %v1904
    %v1909 = vlaneseq
    %v1910 = vshrl.u32 %v1909, 7
    %v1911 = vsub.s32 0, %v1910
    %v1912 = vrot.slane %v1898, %v1911
    %v1913 = vadd.f32 %v1905, %v1912
    %v1914 = vadd.f32 %v1906, %v1912
    %v1915 = vadd.f32 %v1907, %v1912
    %v1916 = vadd.f32 %v1908, %v1912
    %v1917 = vmul.f32 %v1913, 0.5
    %v1918 = vmul.f32 %v1914, 0.5
    %v1919 = vmul.f32 %v1915, 0.5
    %v1920 = vmul.f32 %v1916, 0.5
    %v1921 = vmul.f32 %v1913, 0.044715
    %v1922 = vmul.f32 %v1914, 0.044715
    %v1923 = vmul.f32 %v1915, 0.044715
    %v1924 = vmul.f32 %v1916, 0.044715
    %v1925 = vmul.f32 %v1921, %v1913
    %v1926 = vmul.f32 %v1922, %v1914
    %v1927 = vmul.f32 %v1923, %v1915
    %v1928 = vmul.f32 %v1924, %v1916
    %v1929 = vmul.f32 %v1925, %v1913
    %v1930 = vmul.f32 %v1926, %v1914
    %v1931 = vmul.f32 %v1927, %v1915
    %v1932 = vmul.f32 %v1928, %v1916
    %v1933 = vadd.f32 %v1913, %v1929
    %v1934 = vadd.f32 %v1914, %v1930
    %v1935 = vadd.f32 %v1915, %v1931
    %v1936 = vadd.f32 %v1916, %v1932
    %v1937 = vmul.f32 %v1933, 0.7978846
    %v1938 = vmul.f32 %v1934, 0.7978846
    %v1939 = vmul.f32 %v1935, 0.7978846
    %v1940 = vmul.f32 %v1936, 0.7978846
    %v1941 = vtanh.pop %v1937
    %v1942 = vtanh.pop %v1938
    %v1943 = vtanh.pop %v1939
    %v1944 = vtanh.pop %v1940
    %v1945 = vadd.f32 %v1941, 1.0
    %v1946 = vadd.f32 %v1942, 1.0
    %v1947 = vadd.f32 %v1943, 1.0
    %v1948 = vadd.f32 %v1944, 1.0
    %v1949 = vmul.f32 %v1917, %v1945
    %v1950 = vmul.f32 %v1918, %v1946
    %v1951 = vmul.f32 %v1919, %v1947
    %v1952 = vmul.f32 %v1920, %v1948
    %v1953 = vld [vmem:[%s1] sm:$0xff]
    %v1954 = vld [vmem:[%s1 + $0x8] sm:$0xff]
    %v1955 = vld [vmem:[%s1 + $0x10] sm:$0xff]
    %v1956 = vld [vmem:[%s1 + $0x18] sm:$0xff]
    %v1957 = vld [vmem:[%s13] sm:$0x1]
    %v1958 = vld [vmem:[%s14] sm:$0x1]
    %v1959 = vld [vmem:[%s21] sm:$0xff]
    %v1960 = vld [vmem:[%s21 + $0x8] sm:$0xff]
    %v1961 = vld [vmem:[%s21 + $0x10] sm:$0xff]
    %v1962 = vld [vmem:[%s21 + $0x18] sm:$0xff]
    %v1963 = vld [vmem:[%s21 + $0x20] sm:$0xff]
    %v1964 = vld [vmem:[%s21 + $0x28] sm:$0xff]
    %v1965 = vld [vmem:[%s21 + $0x30] sm:$0xff]
    %v1966 = vld [vmem:[%s21 + $0x38] sm:$0xff]
    %v1967 = vld [vmem:[%s21 + $0x40] sm:$0xff]
    %v1968 = vld [vmem:[%s21 + $0x48] sm:$0xff]
    %v1969 = vld [vmem:[%s21 + $0x50] sm:$0xff]
    %v1970 = vld [vmem:[%s21 + $0x58] sm:$0xff]
    %v1971 = vld [vmem:[%s21 + $0x60] sm:$0xff]
    %v1972 = vld [vmem:[%s21 + $0x68] sm:$0xff]
    %v1973 = vld [vmem:[%s21 + $0x70] sm:$0xff]
    %v1974 = vld [vmem:[%s21 + $0x78] sm:$0xff]
    %v1975 = vld [vmem:[%s22] sm:$0xff]
    %v1976 = vadd.f32 %v1953, %v1954
    %v1977 = vadd.f32 %v1976, %v1955
    %v1978 = vadd.f32 %v1977, %v1956
    %v1979 = vrot.slane %v1978, 4
    %v1980 = vadd.f32 %v1978, %v1979
    %v1981 = vrot.slane %v1980, 2
    %v1982 = vadd.f32 %v1980, %v1981
    %v1983 = vrot.slane %v1982, 1
    %v1984 = vadd.f32 %v1982, %v1983
    %v1985 = vmul.f32 %v1953, %v1953
    %v1986 = vmul.f32 %v1954, %v1954
    %v1987 = vmul.f32 %v1955, %v1955
    %v1988 = vmul.f32 %v1956, %v1956
    %v1989 = vadd.f32 %v1985, %v1986
    %v1990 = vadd.f32 %v1989, %v1987
    %v1991 = vadd.f32 %v1990, %v1988
    %v1992 = vrot.slane %v1991, 4
    %v1993 = vadd.f32 %v1991, %v1992
    %v1994 = vrot.slane %v1993, 2
    %v1995 = vadd.f32 %v1993, %v1994
    %v1996 = vrot.slane %v1995, 1
    %v1997 = vadd.f32 %v1995, %v1996
    %1998 = vmatprep.subr.mxu0 0.0
    %1999 = vmatpush1.msra.mxu0 %v1959
    %2000 = vmatprep.subr.mxu0 0.0
    %2001 = vmatpush1.msra.mxu0 %v1960
    %2002 = vmatprep.subr.mxu0 0.0
    %2003 = vmatpush1.msra.mxu0 %v1961
    %2004 = vmatprep.subr.mxu0 0.0
    %2005 = vmatpush1.msra.mxu0 %v1962
    %2006 = vmatprep.subr.mxu0 0.0
    %2007 = vmatpush1.msra.mxu0 %v1963
    %2008 = vmatprep.subr.mxu0 0.0
    %2009 = vmatpush1.msra.mxu0 %v1964
    %2010 = vmatprep.subr.mxu0 0.0
    %2011 = vmatpush1.msra.mxu0 %v1965
    %2012 = vmatprep.subr.mxu0 0.0
    %2013 = vmatpush1.msra.mxu0 %v1966
    %2014 = vmatprep.subr.mxu0 0.0
    %2015 = vmatpush1.msra.mxu0 %v1967
    %2016 = vmatprep.subr.mxu0 0.0
    %2017 = vmatpush1.msra.mxu0 %v1968
    %2018 = vmatprep.subr.mxu0 0.0
    %2019 = vmatpush1.msra.mxu0 %v1969
    %2020 = vmatprep.subr.mxu0 0.0
    %2021 = vmatpush1.msra.mxu0 %v1970
    %2022 = vmatprep.subr.mxu0 0.0
    %2023 = vmatpush1.msra.mxu0 %v1971
    %2024 = vmatprep.subr.mxu0 0.0
    %2025 = vmatpush1.msra.mxu0 %v1972
    %2026 = vmatprep.subr.mxu0 0.0
    %2027 = vmatpush1.msra.mxu0 %v1973
    %2028 = vmatprep.subr.mxu0 0.0
    %2029 = vmatpush1.msra.mxu0 %v1974
    %2030 = vmatprep.subr.mxu0 0.0
    %2031 = vmatpush1.msra.mxu0 0.0
    %2032 = vmatprep.subr.mxu0 0.0
    %2033 = vmatpush1.msra.mxu0 0.0
    %2034 = vmatprep.subr.mxu0 0.0
    %2035 = vmatpush1.msra.mxu0 0.0
    %2036 = vmatprep.subr.mxu0 0.0
    %2037 = vmatpush1.msra.mxu0 0.0
    %2038 = vmatprep.subr.mxu0 0.0
    %2039 = vmatpush1.msra.mxu0 0.0
    %2040 = vmatprep.subr.mxu0 0.0
    %2041 = vmatpush1.msra.mxu0 0.0
    %2042 = vmatprep.subr.mxu0 0.0
    %2043 = vmatpush1.msra.mxu0 0.0
    %2044 = vmatprep.subr.mxu0 0.0
    %2045 = vmatpush1.msra.mxu0 0.0
    %2046 = vmatprep.subr.mxu0 0.0
    %2047 = vmatpush1.msra.mxu0 0.0
    %2048 = vmatprep.subr.mxu0 0.0
    %2049 = vmatpush1.msra.mxu0 0.0
    %2050 = vmatprep.subr.mxu0 0.0
    %2051 = vmatpush1.msra.mxu0 0.0
    %2052 = vmatprep.subr.mxu0 0.0
    %2053 = vmatpush1.msra.mxu0 0.0
    %2054 = vmatprep.subr.mxu0 0.0
    %2055 = vmatpush1.msra.mxu0 0.0
    %2056 = vmatprep.subr.mxu0 0.0
    %2057 = vmatpush1.msra.mxu0 0.0
    %2058 = vmatprep.subr.mxu0 0.0
    %2059 = vmatpush1.msra.mxu0 0.0
    %2060 = vmatprep.subr.mxu0 0.0
    %2061 = vmatpush1.msra.mxu0 0.0
    %2062 = vmatprep.mubr.f32.mxu0 0.0
    %2063 = vmatmul.mubr.f32.gmra.mrb[0].mxu0 %v1984
    %v2064 = vpop.f32.mrb[0].mxu0
    %v2065 = vadd.f32 0.0, %v2064
    %v2066 = vpop.f32.mrb[0].mxu0
    %2067 = vdwg.mxu0
    %v2068 = vmul.f32 %v2065, 0.001953125
    %2069 = vmatprep.subr.mxu0 0.0
    %2070 = vmatpush1.msra.mxu0 %v1959
    %2071 = vmatprep.subr.mxu0 0.0
    %2072 = vmatpush1.msra.mxu0 %v1960
    %2073 = vmatprep.subr.mxu0 0.0
    %2074 = vmatpush1.msra.mxu0 %v1961
    %2075 = vmatprep.subr.mxu0 0.0
    %2076 = vmatpush1.msra.mxu0 %v1962
    %2077 = vmatprep.subr.mxu0 0.0
    %2078 = vmatpush1.msra.mxu0 %v1963
    %2079 = vmatprep.subr.mxu0 0.0
    %2080 = vmatpush1.msra.mxu0 %v1964
    %2081 = vmatprep.subr.mxu0 0.0
    %2082 = vmatpush1.msra.mxu0 %v1965
    %2083 = vmatprep.subr.mxu0 0.0
    %2084 = vmatpush1.msra.mxu0 %v1966
    %2085 = vmatprep.subr.mxu0 0.0
    %2086 = vmatpush1.msra.mxu0 %v1967
    %2087 = vmatprep.subr.mxu0 0.0
    %2088 = vmatpush1.msra.mxu0 %v1968
    %2089 = vmatprep.subr.mxu0 0.0
    %2090 = vmatpush1.msra.mxu0 %v1969
    %2091 = vmatprep.subr.mxu0 0.0
    %2092 = vmatpush1.msra.mxu0 %v1970
    %2093 = vmatprep.subr.mxu0 0.0
    %2094 = vmatpush1.msra.mxu0 %v1971
    %2095 = vmatprep.subr.mxu0 0.0
    %2096 = vmatpush1.msra.mxu0 %v1972
    %2097 = vmatprep.subr.mxu0 0.0
    %2098 = vmatpush1.msra.mxu0 %v1973
    %2099 = vmatprep.subr.mxu0 0.0
    %2100 = vmatpush1.msra.mxu0 %v1974
    %2101 = vmatprep.subr.mxu0 0.0
    %2102 = vmatpush1.msra.mxu0 0.0
    %2103 = vmatprep.subr.mxu0 0.0
    %2104 = vmatpush1.msra.mxu0 0.0
    %2105 = vmatprep.subr.mxu0 0.0
    %2106 = vmatpush1.msra.mxu0 0.0
    %2107 = vmatprep.subr.mxu0 0.0
    %2108 = vmatpush1.msra.mxu0 0.0
    %2109 = vmatprep.subr.mxu0 0.0
    %2110 = vmatpush1.msra.mxu0 0.0
    %2111 = vmatprep.subr.mxu0 0.0
    %2112 = vmatpush1.msra.mxu0 0.0
    %2113 = vmatprep.subr.mxu0 0.0
    %2114 = vmatpush1.msra.mxu0 0.0
    %2115 = vmatprep.subr.mxu0 0.0
    %2116 = vmatpush1.msra.mxu0 0.0
    %2117 = vmatprep.subr.mxu0 0.0
    %2118 = vmatpush1.msra.mxu0 0.0
    %2119 = vmatprep.subr.mxu0 0.0
    %2120 = vmatpush1.msra.mxu0 0.0
    %2121 = vmatprep.subr.mxu0 0.0
    %2122 = vmatpush1.msra.mxu0 0.0
    %2123 = vmatprep.subr.mxu0 0.0
    %2124 = vmatpush1.msra.mxu0 0.0
    %2125 = vmatprep.subr.mxu0 0.0
    %2126 = vmatpush1.msra.mxu0 0.0
    %2127 = vmatprep.subr.mxu0 0.0
    %2128 = vmatpush1.msra.mxu0 0.0
    %2129 = vmatprep.subr.mxu0 0.0
    %2130 = vmatpush1.msra.mxu0 0.0
    %2131 = vmatprep.subr.mxu0 0.0
    %2132 = vmatpush1.msra.mxu0 0.0
    %2133 = vmatprep.mubr.f32.mxu0 0.0
    %2134 = vmatmul.mubr.f32.gmra.mrb[0].mxu0 %v1997
    %v2135 = vpop.f32.mrb[0].mxu0
    %v2136 = vadd.f32 0.0, %v2135
    %v2137 = vpop.f32.mrb[0].mxu0
    %2138 = vdwg.mxu0
    %v2139 = vmul.f32 %v2136, 0.001953125
    %v2140 = vmul.f32 %v2068, %v2068
    %v2141 = vsub.f32 %v2139, %v2140
    %v2142 = vmax.f32 %v2141, 0.0
    %v2143 = vadd.f32 %v2142, 1e-05
    %v2144 = vrsqrt.pop %v2143
    %v2145 = vmul.f32 %v1957, %v2144
    %v2146 = vmul.f32 %v2068, %v2145
    %v2147 = vsub.f32 %v1958, %v2146
    %v2149 = vsel %vm1025, %v2145, 0
    %2151 = vmatprep.subr.mxu0 0.0
    %2152 = vmatpush1.msra.mxu0 %v1975
    %2153 = vmatprep.subr.mxu0 0.0
    %2154 = vmatpush1.msra.mxu0 0.0
    %2155 = vmatprep.subr.mxu0 0.0
    %2156 = vmatpush1.msra.mxu0 0.0
    %2157 = vmatprep.subr.mxu0 0.0
    %2158 = vmatpush1.msra.mxu0 0.0
    %2159 = vmatprep.subr.mxu0 0.0
    %2160 = vmatpush1.msra.mxu0 0.0
    %2161 = vmatprep.subr.mxu0 0.0
    %2162 = vmatpush1.msra.mxu0 0.0
    %2163 = vmatprep.subr.mxu0 0.0
    %2164 = vmatpush1.msra.mxu0 0.0
    %2165 = vmatprep.subr.mxu0 0.0
    %2166 = vmatpush1.msra.mxu0 0.0
    %2167 = vmatprep.subr.mxu0 0.0
    %2168 = vmatpush1.msra.mxu0 0.0
    %2169 = vmatprep.subr.mxu0 0.0
    %2170 = vmatpush1.msra.mxu0 0.0
    %2171 = vmatprep.subr.mxu0 0.0
    %2172 = vmatpush1.msra.mxu0 0.0
    %2173 = vmatprep.subr.mxu0 0.0
    %2174 = vmatpush1.msra.mxu0 0.0
    %2175 = vmatprep.subr.mxu0 0.0
    %2176 = vmatpush1.msra.mxu0 0.0
    %2177 = vmatprep.subr.mxu0 0.0
    %2178 = vmatpush1.msra.mxu0 0.0
    %2179 = vmatprep.subr.mxu0 0.0
    %2180 = vmatpush1.msra.mxu0 0.0
    %2181 = vmatprep.subr.mxu0 0.0
    %2182 = vmatpush1.msra.mxu0 0.0
    %2183 = vmatprep.subr.mxu0 0.0
    %2184 = vmatpush1.msra.mxu0 0.0
    %2185 = vmatprep.subr.mxu0 0.0
    %2186 = vmatpush1.msra.mxu0 0.0
    %2187 = vmatprep.subr.mxu0 0.0
    %2188 = vmatpush1.msra.mxu0 0.0
    %2189 = vmatprep.subr.mxu0 0.0
    %2190 = vmatpush1.msra.mxu0 0.0
    %2191 = vmatprep.subr.mxu0 0.0
    %2192 = vmatpush1.msra.mxu0 0.0
    %2193 = vmatprep.subr.mxu0 0.0
    %2194 = vmatpush1.msra.mxu0 0.0
    %2195 = vmatprep.subr.mxu0 0.0
    %2196 = vmatpush1.msra.mxu0 0.0
    %2197 = vmatprep.subr.mxu0 0.0
    %2198 = vmatpush1.msra.mxu0 0.0
    %2199 = vmatprep.subr.mxu0 0.0
    %2200 = vmatpush1.msra.mxu0 0.0
    %2201 = vmatprep.subr.mxu0 0.0
    %2202 = vmatpush1.msra.mxu0 0.0
    %2203 = vmatprep.subr.mxu0 0.0
    %2204 = vmatpush1.msra.mxu0 0.0
    %2205 = vmatprep.subr.mxu0 0.0
    %2206 = vmatpush1.msra.mxu0 0.0
    %2207 = vmatprep.subr.mxu0 0.0
    %2208 = vmatpush1.msra.mxu0 0.0
    %2209 = vmatprep.subr.mxu0 0.0
    %2210 = vmatpush1.msra.mxu0 0.0
    %2211 = vmatprep.subr.mxu0 0.0
    %2212 = vmatpush1.msra.mxu0 0.0
    %2213 = vmatprep.subr.mxu0 0.0
    %2214 = vmatpush1.msra.mxu0 0.0
    %2215 = vmatprep.mubr.f32.mxu0 0.0
    %2216 = vmatmul.mubr.f32.gmra.mrb[0].mxu0 %v2149
    %v2217 = vpop.f32.mrb[0].mxu0
    %v2218 = vadd.f32 0.0, %v2217
    %v2219 = vpop.f32.mrb[0].mxu0
    %2220 = vdwg.mxu0
    %v2222 = vsel %vm1025, %v2147, 0
    %2224 = vmatprep.subr.mxu0 0.0
    %2225 = vmatpush1.msra.mxu0 %v1975
    %2226 = vmatprep.subr.mxu0 0.0
    %2227 = vmatpush1.msra.mxu0 0.0
    %2228 = vmatprep.subr.mxu0 0.0
    %2229 = vmatpush1.msra.mxu0 0.0
    %2230 = vmatprep.subr.mxu0 0.0
    %2231 = vmatpush1.msra.mxu0 0.0
    %2232 = vmatprep.subr.mxu0 0.0
    %2233 = vmatpush1.msra.mxu0 0.0
    %2234 = vmatprep.subr.mxu0 0.0
    %2235 = vmatpush1.msra.mxu0 0.0
    %2236 = vmatprep.subr.mxu0 0.0
    %2237 = vmatpush1.msra.mxu0 0.0
    %2238 = vmatprep.subr.mxu0 0.0
    %2239 = vmatpush1.msra.mxu0 0.0
    %2240 = vmatprep.subr.mxu0 0.0
    %2241 = vmatpush1.msra.mxu0 0.0
    %2242 = vmatprep.subr.mxu0 0.0
    %2243 = vmatpush1.msra.mxu0 0.0
    %2244 = vmatprep.subr.mxu0 0.0
    %2245 = vmatpush1.msra.mxu0 0.0
    %2246 = vmatprep.subr.mxu0 0.0
    %2247 = vmatpush1.msra.mxu0 0.0
    %2248 = vmatprep.subr.mxu0 0.0
    %2249 = vmatpush1.msra.mxu0 0.0
    %2250 = vmatprep.subr.mxu0 0.0
    %2251 = vmatpush1.msra.mxu0 0.0
    %2252 = vmatprep.subr.mxu0 0.0
    %2253 = vmatpush1.msra.mxu0 0.0
    %2254 = vmatprep.subr.mxu0 0.0
    %2255 = vmatpush1.msra.mxu0 0.0
    %2256 = vmatprep.subr.mxu0 0.0
    %2257 = vmatpush1.msra.mxu0 0.0
    %2258 = vmatprep.subr.mxu0 0.0
    %2259 = vmatpush1.msra.mxu0 0.0
    %2260 = vmatprep.subr.mxu0 0.0
    %2261 = vmatpush1.msra.mxu0 0.0
    %2262 = vmatprep.subr.mxu0 0.0
    %2263 = vmatpush1.msra.mxu0 0.0
    %2264 = vmatprep.subr.mxu0 0.0
    %2265 = vmatpush1.msra.mxu0 0.0
    %2266 = vmatprep.subr.mxu0 0.0
    %2267 = vmatpush1.msra.mxu0 0.0
    %2268 = vmatprep.subr.mxu0 0.0
    %2269 = vmatpush1.msra.mxu0 0.0
    %2270 = vmatprep.subr.mxu0 0.0
    %2271 = vmatpush1.msra.mxu0 0.0
    %2272 = vmatprep.subr.mxu0 0.0
    %2273 = vmatpush1.msra.mxu0 0.0
    %2274 = vmatprep.subr.mxu0 0.0
    %2275 = vmatpush1.msra.mxu0 0.0
    %2276 = vmatprep.subr.mxu0 0.0
    %2277 = vmatpush1.msra.mxu0 0.0
    %2278 = vmatprep.subr.mxu0 0.0
    %2279 = vmatpush1.msra.mxu0 0.0
    %2280 = vmatprep.subr.mxu0 0.0
    %2281 = vmatpush1.msra.mxu0 0.0
    %2282 = vmatprep.subr.mxu0 0.0
    %2283 = vmatpush1.msra.mxu0 0.0
    %2284 = vmatprep.subr.mxu0 0.0
    %2285 = vmatpush1.msra.mxu0 0.0
    %2286 = vmatprep.subr.mxu0 0.0
    %2287 = vmatpush1.msra.mxu0 0.0
    %2288 = vmatprep.mubr.f32.mxu0 0.0
    %2289 = vmatmul.mubr.f32.gmra.mrb[0].mxu0 %v2222
    %v2290 = vpop.f32.mrb[0].mxu0
    %v2291 = vadd.f32 0.0, %v2290
    %v2292 = vpop.f32.mrb[0].mxu0
    %2293 = vdwg.mxu0
    %v2294 = vlaneseq
    %v2295 = vshrl.u32 %v2294, 7
    %v2296 = vsub.s32 0, %v2295
    %v2297 = vrot.slane %v2218, %v2296
    %v2298 = vmul.f32 %v1953, %v2297
    %v2299 = vmul.f32 %v1954, %v2297
    %v2300 = vmul.f32 %v1955, %v2297
    %v2301 = vmul.f32 %v1956, %v2297
    %v2302 = vlaneseq
    %v2303 = vshrl.u32 %v2302, 7
    %v2304 = vsub.s32 0, %v2303
    %v2305 = vrot.slane %v2291, %v2304
    %v2306 = vadd.f32 %v2298, %v2305
    %v2307 = vadd.f32 %v2299, %v2305
    %v2308 = vadd.f32 %v2300, %v2305
    %v2309 = vadd.f32 %v2301, %v2305
    %v2310 = vmul.f32 %v2306, 0.5
    %v2311 = vmul.f32 %v2307, 0.5
    %v2312 = vmul.f32 %v2308, 0.5
    %v2313 = vmul.f32 %v2309, 0.5
    %v2314 = vmul.f32 %v2306, 0.044715
    %v2315 = vmul.f32 %v2307, 0.044715
    %v2316 = vmul.f32 %v2308, 0.044715
    %v2317 = vmul.f32 %v2309, 0.044715
    %v2318 = vmul.f32 %v2314, %v2306
    %v2319 = vmul.f32 %v2315, %v2307
    %v2320 = vmul.f32 %v2316, %v2308
    %v2321 = vmul.f32 %v2317, %v2309
    %v2322 = vmul.f32 %v2318, %v2306
    %v2323 = vmul.f32 %v2319, %v2307
    %v2324 = vmul.f32 %v2320, %v2308
    %v2325 = vmul.f32 %v2321, %v2309
    %v2326 = vadd.f32 %v2306, %v2322
    %v2327 = vadd.f32 %v2307, %v2323
    %v2328 = vadd.f32 %v2308, %v2324
    %v2329 = vadd.f32 %v2309, %v2325
    %v2330 = vmul.f32 %v2326, 0.7978846
    %v2331 = vmul.f32 %v2327, 0.7978846
    %v2332 = vmul.f32 %v2328, 0.7978846
    %v2333 = vmul.f32 %v2329, 0.7978846
    %v2334 = vtanh.pop %v2330
    %v2335 = vtanh.pop %v2331
    %v2336 = vtanh.pop %v2332
    %v2337 = vtanh.pop %v2333
    %v2338 = vadd.f32 %v2334, 1.0
    %v2339 = vadd.f32 %v2335, 1.0
    %v2340 = vadd.f32 %v2336, 1.0
    %v2341 = vadd.f32 %v2337, 1.0
    %v2342 = vmul.f32 %v2310, %v2338
    %v2343 = vmul.f32 %v2311, %v2339
    %v2344 = vmul.f32 %v2312, %v2340
    %v2345 = vmul.f32 %v2313, %v2341
    %v2346 = vld [vmem:[%s15] sm:$0x1]
    %v2347 = vld [vmem:[%s16] sm:$0x1]
    %v2348 = vadd.f32 %v282, %v287
    %v2349 = vadd.f32 %v2348, %v292
    %v2350 = vadd.f32 %v2349, %v297
    %v2351 = vrot.slane %v2350, 4
    %v2352 = vadd.f32 %v2350, %v2351
    %v2353 = vrot.slane %v2352, 2
    %v2354 = vadd.f32 %v2352, %v2353
    %v2355 = vrot.slane %v2354, 1
    %v2356 = vadd.f32 %v2354, %v2355
    %v2357 = vmul.f32 %v282, %v282
    %v2358 = vmul.f32 %v287, %v287
    %v2359 = vmul.f32 %v292, %v292
    %v2360 = vmul.f32 %v297, %v297
    %v2361 = vadd.f32 %v2357, %v2358
    %v2362 = vadd.f32 %v2361, %v2359
    %v2363 = vadd.f32 %v2362, %v2360
    %v2364 = vrot.slane %v2363, 4
    %v2365 = vadd.f32 %v2363, %v2364
    %v2366 = vrot.slane %v2365, 2
    %v2367 = vadd.f32 %v2365, %v2366
    %v2368 = vrot.slane %v2367, 1
    %v2369 = vadd.f32 %v2367, %v2368
    %2370 = vmatprep.subr.mxu0 0.0
    %2371 = vmatpush1.msra.mxu0 %v1566
    %2372 = vmatprep.subr.mxu0 0.0
    %2373 = vmatpush1.msra.mxu0 %v1567
    %2374 = vmatprep.subr.mxu0 0.0
    %2375 = vmatpush1.msra.mxu0 %v1568
    %2376 = vmatprep.subr.mxu0 0.0
    %2377 = vmatpush1.msra.mxu0 %v1569
    %2378 = vmatprep.subr.mxu0 0.0
    %2379 = vmatpush1.msra.mxu0 %v1570
    %2380 = vmatprep.subr.mxu0 0.0
    %2381 = vmatpush1.msra.mxu0 %v1571
    %2382 = vmatprep.subr.mxu0 0.0
    %2383 = vmatpush1.msra.mxu0 %v1572
    %2384 = vmatprep.subr.mxu0 0.0
    %2385 = vmatpush1.msra.mxu0 %v1573
    %2386 = vmatprep.subr.mxu0 0.0
    %2387 = vmatpush1.msra.mxu0 %v1574
    %2388 = vmatprep.subr.mxu0 0.0
    %2389 = vmatpush1.msra.mxu0 %v1575
    %2390 = vmatprep.subr.mxu0 0.0
    %2391 = vmatpush1.msra.mxu0 %v1576
    %2392 = vmatprep.subr.mxu0 0.0
    %2393 = vmatpush1.msra.mxu0 %v1577
    %2394 = vmatprep.subr.mxu0 0.0
    %2395 = vmatpush1.msra.mxu0 %v1578
    %2396 = vmatprep.subr.mxu0 0.0
    %2397 = vmatpush1.msra.mxu0 %v1579
    %2398 = vmatprep.subr.mxu0 0.0
    %2399 = vmatpush1.msra.mxu0 %v1580
    %2400 = vmatprep.subr.mxu0 0.0
    %2401 = vmatpush1.msra.mxu0 %v1581
    %2402 = vmatprep.subr.mxu0 0.0
    %2403 = vmatpush1.msra.mxu0 0.0
    %2404 = vmatprep.subr.mxu0 0.0
    %2405 = vmatpush1.msra.mxu0 0.0
    %2406 = vmatprep.subr.mxu0 0.0
    %2407 = vmatpush1.msra.mxu0 0.0
    %2408 = vmatprep.subr.mxu0 0.0
    %2409 = vmatpush1.msra.mxu0 0.0
    %2410 = vmatprep.subr.mxu0 0.0
    %2411 = vmatpush1.msra.mxu0 0.0
    %2412 = vmatprep.subr.mxu0 0.0
    %2413 = vmatpush1.msra.mxu0 0.0
    %2414 = vmatprep.subr.mxu0 0.0
    %2415 = vmatpush1.msra.mxu0 0.0
    %2416 = vmatprep.subr.mxu0 0.0
    %2417 = vmatpush1.msra.mxu0 0.0
    %2418 = vmatprep.subr.mxu0 0.0
    %2419 = vmatpush1.msra.mxu0 0.0
    %2420 = vmatprep.subr.mxu0 0.0
    %2421 = vmatpush1.msra.mxu0 0.0
    %2422 = vmatprep.subr.mxu0 0.0
    %2423 = vmatpush1.msra.mxu0 0.0
    %2424 = vmatprep.subr.mxu0 0.0
    %2425 = vmatpush1.msra.mxu0 0.0
    %2426 = vmatprep.subr.mxu0 0.0
    %2427 = vmatpush1.msra.mxu0 0.0
    %2428 = vmatprep.subr.mxu0 0.0
    %2429 = vmatpush1.msra.mxu0 0.0
    %2430 = vmatprep.subr.mxu0 0.0
    %2431 = vmatpush1.msra.mxu0 0.0
    %2432 = vmatprep.subr.mxu0 0.0
    %2433 = vmatpush1.msra.mxu0 0.0
    %2434 = vmatprep.mubr.f32.mxu0 0.0
    %2435 = vmatmul.mubr.f32.gmra.mrb[0].mxu0 %v2356
    %v2436 = vpop.f32.mrb[0].mxu0
    %v2437 = vadd.f32 0.0, %v2436
    %v2438 = vpop.f32.mrb[0].mxu0
    %2439 = vdwg.mxu0
    %v2440 = vmul.f32 %v2437, 0.001953125
    %2441 = vmatprep.subr.mxu0 0.0
    %2442 = vmatpush1.msra.mxu0 %v1566
    %2443 = vmatprep.subr.mxu0 0.0
    %2444 = vmatpush1.msra.mxu0 %v1567
    %2445 = vmatprep.subr.mxu0 0.0
    %2446 = vmatpush1.msra.mxu0 %v1568
    %2447 = vmatprep.subr.mxu0 0.0
    %2448 = vmatpush1.msra.mxu0 %v1569
    %2449 = vmatprep.subr.mxu0 0.0
    %2450 = vmatpush1.msra.mxu0 %v1570
    %2451 = vmatprep.subr.mxu0 0.0
    %2452 = vmatpush1.msra.mxu0 %v1571
    %2453 = vmatprep.subr.mxu0 0.0
    %2454 = vmatpush1.msra.mxu0 %v1572
    %2455 = vmatprep.subr.mxu0 0.0
    %2456 = vmatpush1.msra.mxu0 %v1573
    %2457 = vmatprep.subr.mxu0 0.0
    %2458 = vmatpush1.msra.mxu0 %v1574
    %2459 = vmatprep.subr.mxu0 0.0
    %2460 = vmatpush1.msra.mxu0 %v1575
    %2461 = vmatprep.subr.mxu0 0.0
    %2462 = vmatpush1.msra.mxu0 %v1576
    %2463 = vmatprep.subr.mxu0 0.0
    %2464 = vmatpush1.msra.mxu0 %v1577
    %2465 = vmatprep.subr.mxu0 0.0
    %2466 = vmatpush1.msra.mxu0 %v1578
    %2467 = vmatprep.subr.mxu0 0.0
    %2468 = vmatpush1.msra.mxu0 %v1579
    %2469 = vmatprep.subr.mxu0 0.0
    %2470 = vmatpush1.msra.mxu0 %v1580
    %2471 = vmatprep.subr.mxu0 0.0
    %2472 = vmatpush1.msra.mxu0 %v1581
    %2473 = vmatprep.subr.mxu0 0.0
    %2474 = vmatpush1.msra.mxu0 0.0
    %2475 = vmatprep.subr.mxu0 0.0
    %2476 = vmatpush1.msra.mxu0 0.0
    %2477 = vmatprep.subr.mxu0 0.0
    %2478 = vmatpush1.msra.mxu0 0.0
    %2479 = vmatprep.subr.mxu0 0.0
    %2480 = vmatpush1.msra.mxu0 0.0
    %2481 = vmatprep.subr.mxu0 0.0
    %2482 = vmatpush1.msra.mxu0 0.0
    %2483 = vmatprep.subr.mxu0 0.0
    %2484 = vmatpush1.msra.mxu0 0.0
    %2485 = vmatprep.subr.mxu0 0.0
    %2486 = vmatpush1.msra.mxu0 0.0
    %2487 = vmatprep.subr.mxu0 0.0
    %2488 = vmatpush1.msra.mxu0 0.0
    %2489 = vmatprep.subr.mxu0 0.0
    %2490 = vmatpush1.msra.mxu0 0.0
    %2491 = vmatprep.subr.mxu0 0.0
    %2492 = vmatpush1.msra.mxu0 0.0
    %2493 = vmatprep.subr.mxu0 0.0
    %2494 = vmatpush1.msra.mxu0 0.0
    %2495 = vmatprep.subr.mxu0 0.0
    %2496 = vmatpush1.msra.mxu0 0.0
    %2497 = vmatprep.subr.mxu0 0.0
    %2498 = vmatpush1.msra.mxu0 0.0
    %2499 = vmatprep.subr.mxu0 0.0
    %2500 = vmatpush1.msra.mxu0 0.0
    %2501 = vmatprep.subr.mxu0 0.0
    %2502 = vmatpush1.msra.mxu0 0.0
    %2503 = vmatprep.subr.mxu0 0.0
    %2504 = vmatpush1.msra.mxu0 0.0
    %2505 = vmatprep.mubr.f32.mxu0 0.0
    %2506 = vmatmul.mubr.f32.gmra.mrb[0].mxu0 %v2369
    %v2507 = vpop.f32.mrb[0].mxu0
    %v2508 = vadd.f32 0.0, %v2507
    %v2509 = vpop.f32.mrb[0].mxu0
    %2510 = vdwg.mxu0
    %v2511 = vmul.f32 %v2508, 0.001953125
    %v2512 = vmul.f32 %v2440, %v2440
    %v2513 = vsub.f32 %v2511, %v2512
    %v2514 = vmax.f32 %v2513, 0.0
    %v2515 = vadd.f32 %v2514, 1e-05
    %v2516 = vrsqrt.pop %v2515
    %v2517 = vmul.f32 %v2346, %v2516
    %v2518 = vmul.f32 %v2440, %v2517
    %v2519 = vsub.f32 %v2347, %v2518
    %v2521 = vsel %vm1025, %v2517, 0
    %2523 = vmatprep.subr.mxu0 0.0
    %2524 = vmatpush1.msra.mxu0 %v1582
    %2525 = vmatprep.subr.mxu0 0.0
    %2526 = vmatpush1.msra.mxu0 0.0
    %2527 = vmatprep.subr.mxu0 0.0
    %2528 = vmatpush1.msra.mxu0 0.0
    %2529 = vmatprep.subr.mxu0 0.0
    %2530 = vmatpush1.msra.mxu0 0.0
    %2531 = vmatprep.subr.mxu0 0.0
    %2532 = vmatpush1.msra.mxu0 0.0
    %2533 = vmatprep.subr.mxu0 0.0
    %2534 = vmatpush1.msra.mxu0 0.0
    %2535 = vmatprep.subr.mxu0 0.0
    %2536 = vmatpush1.msra.mxu0 0.0
    %2537 = vmatprep.subr.mxu0 0.0
    %2538 = vmatpush1.msra.mxu0 0.0
    %2539 = vmatprep.subr.mxu0 0.0
    %2540 = vmatpush1.msra.mxu0 0.0
    %2541 = vmatprep.subr.mxu0 0.0
    %2542 = vmatpush1.msra.mxu0 0.0
    %2543 = vmatprep.subr.mxu0 0.0
    %2544 = vmatpush1.msra.mxu0 0.0
    %2545 = vmatprep.subr.mxu0 0.0
    %2546 = vmatpush1.msra.mxu0 0.0
    %2547 = vmatprep.subr.mxu0 0.0
    %2548 = vmatpush1.msra.mxu0 0.0
    %2549 = vmatprep.subr.mxu0 0.0
    %2550 = vmatpush1.msra.mxu0 0.0
    %2551 = vmatprep.subr.mxu0 0.0
    %2552 = vmatpush1.msra.mxu0 0.0
    %2553 = vmatprep.subr.mxu0 0.0
    %2554 = vmatpush1.msra.mxu0 0.0
    %2555 = vmatprep.subr.mxu0 0.0
    %2556 = vmatpush1.msra.mxu0 0.0
    %2557 = vmatprep.subr.mxu0 0.0
    %2558 = vmatpush1.msra.mxu0 0.0
    %2559 = vmatprep.subr.mxu0 0.0
    %2560 = vmatpush1.msra.mxu0 0.0
    %2561 = vmatprep.subr.mxu0 0.0
    %2562 = vmatpush1.msra.mxu0 0.0
    %2563 = vmatprep.subr.mxu0 0.0
    %2564 = vmatpush1.msra.mxu0 0.0
    %2565 = vmatprep.subr.mxu0 0.0
    %2566 = vmatpush1.msra.mxu0 0.0
    %2567 = vmatprep.subr.mxu0 0.0
    %2568 = vmatpush1.msra.mxu0 0.0
    %2569 = vmatprep.subr.mxu0 0.0
    %2570 = vmatpush1.msra.mxu0 0.0
    %2571 = vmatprep.subr.mxu0 0.0
    %2572 = vmatpush1.msra.mxu0 0.0
    %2573 = vmatprep.subr.mxu0 0.0
    %2574 = vmatpush1.msra.mxu0 0.0
    %2575 = vmatprep.subr.mxu0 0.0
    %2576 = vmatpush1.msra.mxu0 0.0
    %2577 = vmatprep.subr.mxu0 0.0
    %2578 = vmatpush1.msra.mxu0 0.0
    %2579 = vmatprep.subr.mxu0 0.0
    %2580 = vmatpush1.msra.mxu0 0.0
    %2581 = vmatprep.subr.mxu0 0.0
    %2582 = vmatpush1.msra.mxu0 0.0
    %2583 = vmatprep.subr.mxu0 0.0
    %2584 = vmatpush1.msra.mxu0 0.0
    %2585 = vmatprep.subr.mxu0 0.0
    %2586 = vmatpush1.msra.mxu0 0.0
    %2587 = vmatprep.mubr.f32.mxu0 0.0
    %2588 = vmatmul.mubr.f32.gmra.mrb[0].mxu0 %v2521
    %v2589 = vpop.f32.mrb[0].mxu0
    %v2590 = vadd.f32 0.0, %v2589
    %v2591 = vpop.f32.mrb[0].mxu0
    %2592 = vdwg.mxu0
    %v2594 = vsel %vm1025, %v2519, 0
    %2596 = vmatprep.subr.mxu0 0.0
    %2597 = vmatpush1.msra.mxu0 %v1582
    %2598 = vmatprep.subr.mxu0 0.0
    %2599 = vmatpush1.msra.mxu0 0.0
    %2600 = vmatprep.subr.mxu0 0.0
    %2601 = vmatpush1.msra.mxu0 0.0
    %2602 = vmatprep.subr.mxu0 0.0
    %2603 = vmatpush1.msra.mxu0 0.0
    %2604 = vmatprep.subr.mxu0 0.0
    %2605 = vmatpush1.msra.mxu0 0.0
    %2606 = vmatprep.subr.mxu0 0.0
    %2607 = vmatpush1.msra.mxu0 0.0
    %2608 = vmatprep.subr.mxu0 0.0
    %2609 = vmatpush1.msra.mxu0 0.0
    %2610 = vmatprep.subr.mxu0 0.0
    %2611 = vmatpush1.msra.mxu0 0.0
    %2612 = vmatprep.subr.mxu0 0.0
    %2613 = vmatpush1.msra.mxu0 0.0
    %2614 = vmatprep.subr.mxu0 0.0
    %2615 = vmatpush1.msra.mxu0 0.0
    %2616 = vmatprep.subr.mxu0 0.0
    %2617 = vmatpush1.msra.mxu0 0.0
    %2618 = vmatprep.subr.mxu0 0.0
    %2619 = vmatpush1.msra.mxu0 0.0
    %2620 = vmatprep.subr.mxu0 0.0
    %2621 = vmatpush1.msra.mxu0 0.0
    %2622 = vmatprep.subr.mxu0 0.0
    %2623 = vmatpush1.msra.mxu0 0.0
    %2624 = vmatprep.subr.mxu0 0.0
    %2625 = vmatpush1.msra.mxu0 0.0
    %2626 = vmatprep.subr.mxu0 0.0
    %2627 = vmatpush1.msra.mxu0 0.0
    %2628 = vmatprep.subr.mxu0 0.0
    %2629 = vmatpush1.msra.mxu0 0.0
    %2630 = vmatprep.subr.mxu0 0.0
    %2631 = vmatpush1.msra.mxu0 0.0
    %2632 = vmatprep.subr.mxu0 0.0
    %2633 = vmatpush1.msra.mxu0 0.0
    %2634 = vmatprep.subr.mxu0 0.0
    %2635 = vmatpush1.msra.mxu0 0.0
    %2636 = vmatprep.subr.mxu0 0.0
    %2637 = vmatpush1.msra.mxu0 0.0
    %2638 = vmatprep.subr.mxu0 0.0
    %2639 = vmatpush1.msra.mxu0 0.0
    %2640 = vmatprep.subr.mxu0 0.0
    %2641 = vmatpush1.msra.mxu0 0.0
    %2642 = vmatprep.subr.mxu0 0.0
    %2643 = vmatpush1.msra.mxu0 0.0
    %2644 = vmatprep.subr.mxu0 0.0
    %2645 = vmatpush1.msra.mxu0 0.0
    %2646 = vmatprep.subr.mxu0 0.0
    %2647 = vmatpush1.msra.mxu0 0.0
    %2648 = vmatprep.subr.mxu0 0.0
    %2649 = vmatpush1.msra.mxu0 0.0
    %2650 = vmatprep.subr.mxu0 0.0
    %2651 = vmatpush1.msra.mxu0 0.0
    %2652 = vmatprep.subr.mxu0 0.0
    %2653 = vmatpush1.msra.mxu0 0.0
    %2654 = vmatprep.subr.mxu0 0.0
    %2655 = vmatpush1.msra.mxu0 0.0
    %2656 = vmatprep.subr.mxu0 0.0
    %2657 = vmatpush1.msra.mxu0 0.0
    %2658 = vmatprep.subr.mxu0 0.0
    %2659 = vmatpush1.msra.mxu0 0.0
    %2660 = vmatprep.mubr.f32.mxu0 0.0
    %2661 = vmatmul.mubr.f32.gmra.mrb[0].mxu0 %v2594
    %v2662 = vpop.f32.mrb[0].mxu0
    %v2663 = vadd.f32 0.0, %v2662
    %v2664 = vpop.f32.mrb[0].mxu0
    %2665 = vdwg.mxu0
    %v2666 = vlaneseq
    %v2667 = vshrl.u32 %v2666, 7
    %v2668 = vsub.s32 0, %v2667
    %v2669 = vrot.slane %v2590, %v2668
    %v2670 = vmul.f32 %v282, %v2669
    %v2671 = vmul.f32 %v287, %v2669
    %v2672 = vmul.f32 %v292, %v2669
    %v2673 = vmul.f32 %v297, %v2669
    %v2674 = vlaneseq
    %v2675 = vshrl.u32 %v2674, 7
    %v2676 = vsub.s32 0, %v2675
    %v2677 = vrot.slane %v2663, %v2676
    %v2678 = vadd.f32 %v2670, %v2677
    %v2679 = vadd.f32 %v2671, %v2677
    %v2680 = vadd.f32 %v2672, %v2677
    %v2681 = vadd.f32 %v2673, %v2677
    %v2682 = vmul.f32 %v2678, 0.5
    %v2683 = vmul.f32 %v2679, 0.5
    %v2684 = vmul.f32 %v2680, 0.5
    %v2685 = vmul.f32 %v2681, 0.5
    %v2686 = vmul.f32 %v2678, 0.044715
    %v2687 = vmul.f32 %v2679, 0.044715
    %v2688 = vmul.f32 %v2680, 0.044715
    %v2689 = vmul.f32 %v2681, 0.044715
    %v2690 = vmul.f32 %v2686, %v2678
    %v2691 = vmul.f32 %v2687, %v2679
    %v2692 = vmul.f32 %v2688, %v2680
    %v2693 = vmul.f32 %v2689, %v2681
    %v2694 = vmul.f32 %v2690, %v2678
    %v2695 = vmul.f32 %v2691, %v2679
    %v2696 = vmul.f32 %v2692, %v2680
    %v2697 = vmul.f32 %v2693, %v2681
    %v2698 = vadd.f32 %v2678, %v2694
    %v2699 = vadd.f32 %v2679, %v2695
    %v2700 = vadd.f32 %v2680, %v2696
    %v2701 = vadd.f32 %v2681, %v2697
    %v2702 = vmul.f32 %v2698, 0.7978846
    %v2703 = vmul.f32 %v2699, 0.7978846
    %v2704 = vmul.f32 %v2700, 0.7978846
    %v2705 = vmul.f32 %v2701, 0.7978846
    %v2706 = vtanh.pop %v2702
    %v2707 = vtanh.pop %v2703
    %v2708 = vtanh.pop %v2704
    %v2709 = vtanh.pop %v2705
    %v2710 = vadd.f32 %v2706, 1.0
    %v2711 = vadd.f32 %v2707, 1.0
    %v2712 = vadd.f32 %v2708, 1.0
    %v2713 = vadd.f32 %v2709, 1.0
    %v2714 = vmul.f32 %v2682, %v2710
    %v2715 = vmul.f32 %v2683, %v2711
    %v2716 = vmul.f32 %v2684, %v2712
    %v2717 = vmul.f32 %v2685, %v2713
    %v2718 = vld [vmem:[%s17] sm:$0xff]
    %v2719 = vld [vmem:[%s17 + $0x8] sm:$0xff]
    %v2720 = vld [vmem:[%s17 + $0x10] sm:$0xff]
    %v2721 = vld [vmem:[%s17 + $0x18] sm:$0xff]
    %v2722 = vld [vmem:[%s17 + $0x20] sm:$0xff]
    %v2723 = vld [vmem:[%s17 + $0x28] sm:$0xff]
    %v2724 = vld [vmem:[%s17 + $0x30] sm:$0xff]
    %v2725 = vld [vmem:[%s17 + $0x38] sm:$0xff]
    %v2726 = vld [vmem:[%s17 + $0x40] sm:$0xff]
    %v2727 = vld [vmem:[%s17 + $0x48] sm:$0xff]
    %v2728 = vld [vmem:[%s17 + $0x50] sm:$0xff]
    %v2729 = vld [vmem:[%s17 + $0x58] sm:$0xff]
    %v2730 = vld [vmem:[%s17 + $0x60] sm:$0xff]
    %v2731 = vld [vmem:[%s17 + $0x68] sm:$0xff]
    %v2732 = vld [vmem:[%s17 + $0x70] sm:$0xff]
    %v2733 = vld [vmem:[%s17 + $0x78] sm:$0xff]
    %v2734 = vld [vmem:[%s17 + $0x80] sm:$0xff]
    %v2735 = vld [vmem:[%s17 + $0x88] sm:$0xff]
    %v2736 = vld [vmem:[%s17 + $0x90] sm:$0xff]
    %v2737 = vld [vmem:[%s17 + $0x98] sm:$0xff]
    %v2738 = vld [vmem:[%s17 + $0xa0] sm:$0xff]
    %v2739 = vld [vmem:[%s17 + $0xa8] sm:$0xff]
    %v2740 = vld [vmem:[%s17 + $0xb0] sm:$0xff]
    %v2741 = vld [vmem:[%s17 + $0xb8] sm:$0xff]
    %v2742 = vld [vmem:[%s17 + $0xc0] sm:$0xff]
    %v2743 = vld [vmem:[%s17 + $0xc8] sm:$0xff]
    %v2744 = vld [vmem:[%s17 + $0xd0] sm:$0xff]
    %v2745 = vld [vmem:[%s17 + $0xd8] sm:$0xff]
    %v2746 = vld [vmem:[%s17 + $0xe0] sm:$0xff]
    %v2747 = vld [vmem:[%s17 + $0xe8] sm:$0xff]
    %v2748 = vld [vmem:[%s17 + $0xf0] sm:$0xff]
    %v2749 = vld [vmem:[%s17 + $0xf8] sm:$0xff]
    %v2750 = vld [vmem:[%s18] sm:$0x1]
    %v2752 = vlaneseq
    %v2753 = vshrl.u32 %v2752, 7
    %v2754 = vsub.s32 0, %v2753
    %v2755 = vrot.slane %v2750, %v2754
    %2757 = vmatprep.subr.mxu0 0.0
    %2758 = vmatpush1.msra.mxu0 %v2718
    %2759 = vmatprep.subr.mxu0 0.0
    %2760 = vmatpush1.msra.mxu0 %v2719
    %2761 = vmatprep.subr.mxu0 0.0
    %2762 = vmatpush1.msra.mxu0 %v2720
    %2763 = vmatprep.subr.mxu0 0.0
    %2764 = vmatpush1.msra.mxu0 %v2721
    %2765 = vmatprep.subr.mxu0 0.0
    %2766 = vmatpush1.msra.mxu0 %v2722
    %2767 = vmatprep.subr.mxu0 0.0
    %2768 = vmatpush1.msra.mxu0 %v2723
    %2769 = vmatprep.subr.mxu0 0.0
    %2770 = vmatpush1.msra.mxu0 %v2724
    %2771 = vmatprep.subr.mxu0 0.0
    %2772 = vmatpush1.msra.mxu0 %v2725
    %2773 = vmatprep.subr.mxu0 0.0
    %2774 = vmatpush1.msra.mxu0 %v2726
    %2775 = vmatprep.subr.mxu0 0.0
    %2776 = vmatpush1.msra.mxu0 %v2727
    %2777 = vmatprep.subr.mxu0 0.0
    %2778 = vmatpush1.msra.mxu0 %v2728
    %2779 = vmatprep.subr.mxu0 0.0
    %2780 = vmatpush1.msra.mxu0 %v2729
    %2781 = vmatprep.subr.mxu0 0.0
    %2782 = vmatpush1.msra.mxu0 %v2730
    %2783 = vmatprep.subr.mxu0 0.0
    %2784 = vmatpush1.msra.mxu0 %v2731
    %2785 = vmatprep.subr.mxu0 0.0
    %2786 = vmatpush1.msra.mxu0 %v2732
    %2787 = vmatprep.subr.mxu0 0.0
    %2788 = vmatpush1.msra.mxu0 %v2733
    %2789 = vmatprep.subr.mxu0 0.0
    %2790 = vmatpush1.msra.mxu0 %v2734
    %2791 = vmatprep.subr.mxu0 0.0
    %2792 = vmatpush1.msra.mxu0 %v2735
    %2793 = vmatprep.subr.mxu0 0.0
    %2794 = vmatpush1.msra.mxu0 %v2736
    %2795 = vmatprep.subr.mxu0 0.0
    %2796 = vmatpush1.msra.mxu0 %v2737
    %2797 = vmatprep.subr.mxu0 0.0
    %2798 = vmatpush1.msra.mxu0 %v2738
    %2799 = vmatprep.subr.mxu0 0.0
    %2800 = vmatpush1.msra.mxu0 %v2739
    %2801 = vmatprep.subr.mxu0 0.0
    %2802 = vmatpush1.msra.mxu0 %v2740
    %2803 = vmatprep.subr.mxu0 0.0
    %2804 = vmatpush1.msra.mxu0 %v2741
    %2805 = vmatprep.subr.mxu0 0.0
    %2806 = vmatpush1.msra.mxu0 %v2742
    %2807 = vmatprep.subr.mxu0 0.0
    %2808 = vmatpush1.msra.mxu0 %v2743
    %2809 = vmatprep.subr.mxu0 0.0
    %2810 = vmatpush1.msra.mxu0 %v2744
    %2811 = vmatprep.subr.mxu0 0.0
    %2812 = vmatpush1.msra.mxu0 %v2745
    %2813 = vmatprep.subr.mxu0 0.0
    %2814 = vmatpush1.msra.mxu0 %v2746
    %2815 = vmatprep.subr.mxu0 0.0
    %2816 = vmatpush1.msra.mxu0 %v2747
    %2817 = vmatprep.subr.mxu0 0.0
    %2818 = vmatpush1.msra.mxu0 %v2748
    %2819 = vmatprep.subr.mxu0 0.0
    %2820 = vmatpush1.msra.mxu0 %v2749
    %2821 = vmatprep.mubr.f32.mxu0 %v2714
    %2822 = vmatmul.mubr.f32.gmra.mrb[0].mxu0 %v2342
    %v2823 = vpop.f32.mrb[0].mxu0
    %v2824 = vadd.f32 %v2755, %v2823
    %v2825 = vpop.f32.mrb[0].mxu0
    %2826 = vmatprep.mubr.f32.mxu0 %v2715
    %2827 = vmatmul.mubr.f32.gmra.mrb[0].mxu0 %v2343
    %v2828 = vpop.f32.mrb[0].mxu0
    %v2829 = vadd.f32 %v2755, %v2828
    %v2830 = vpop.f32.mrb[0].mxu0
    %2831 = vmatprep.mubr.f32.mxu0 %v2716
    %2832 = vmatmul.mubr.f32.gmra.mrb[0].mxu0 %v2344
    %v2833 = vpop.f32.mrb[0].mxu0
    %v2834 = vadd.f32 %v2755, %v2833
    %v2835 = vpop.f32.mrb[0].mxu0
    %2836 = vmatprep.mubr.f32.mxu0 %v2717
    %2837 = vmatmul.mubr.f32.gmra.mrb[0].mxu0 %v2345
    %v2838 = vpop.f32.mrb[0].mxu0
    %v2839 = vadd.f32 %v2755, %v2838
    %v2840 = vpop.f32.mrb[0].mxu0
    %2841 = vdwg.mxu0
    %v2842 = vadd.f32 %v1949, %v2824
    %v2843 = vadd.f32 %v1950, %v2829
    %v2844 = vadd.f32 %v1951, %v2834
    %v2845 = vadd.f32 %v1952, %v2839
    %2846 = vst [vmem:[#allocation9] sm:$0xff] %v2842
    %2847 = vst [vmem:[#allocation9 + $0x8] sm:$0xff] %v2843
    %2848 = vst [vmem:[#allocation9 + $0x10] sm:$0xff] %v2844
    %2849 = vst [vmem:[#allocation9 + $0x18] sm:$0xff] %v2845
    // Predicated region
    $region102: #{tpu_custom_call.1} parent=1 // pred_check
      _
    $region103: #{tpu_custom_call.1} parent=1 // pred_check_branch
      %2851 = sbr.rel (0) target = $region105
    $region104: #{tpu_custom_call.1} parent=1 // pred_region
      %s2853 = ssub.s32 512, 512
      %2854 = vsyncadd [#allocation6], %s2853
      %s2855 = sshll.u32 [#allocation9], 4
      %s2856 = int_to_ptr.vmem [resolvable:$true] %s2855
      %2861 = dma.vmem_to_hbm [thread:$0]  %s2856, 512, %s23, [#allocation6], 128, 128, 8
    $region105: #{tpu_custom_call.1} parent=1 // pred_fallthru
      _
    // Predicated region
    $region106: #{tpu_custom_call.1} parent=1 // pred_check
      _
    $region107: #{tpu_custom_call.1} parent=1 // pred_check_branch
      %2863 = sbr.rel (0) target = $region109
    $region108: #{tpu_custom_call.1} parent=1 // pred_region
      %2864 = dma.done [#allocation6], 512
    $region109: #{tpu_custom_call.1} parent=1 // pred_fallthru
      _
    %2865 = vsyncpa [#allocation5], 1
    %2866 = vsyncpa [#allocation8], 1
    %2867 = vsyncpa [#allocation6], 1

</llo_original>
